<compile_context>
chip_gen: v7x
topology: tpu7x:2x2x1
jax: 0.10.0
libtpu: 0.0.40
codegen_flags: <defaults>
</compile_context>

<pallas_src>
import jax
import jax.numpy as jnp
import numpy as np
from jax import lax
from jax.experimental import pallas as pl
from jax.experimental.pallas import tpu as pltpu


def _round_up(x, mult):
    return ((x + mult - 1) // mult) * mult


# ----------------------------------------------------------------------------
# Pallas kernel: grid = (batch, k_tiles).
# ----------------------------------------------------------------------------
def _make_lambda_conv_kernel(heads, kk, vv, kt, n_valid):
    H, K, V, KT = heads, kk, vv, kt
    HK = H * K

    def kernel(x_ref, w_ref, b_ref, rt_ref, o_ref, q4_s, v_s, acc_s):
        ks = pl.program_id(1)
        n_pad = x_ref.shape[-1]

        # --- per-batch init: fused 1x1 convs, softmax, content lambda, y_c ---
        @pl.when(ks == 0)
        def _init():
            x = x_ref[0]                                               # (C, n_pad)
            proj = jnp.dot(w_ref[...], x,
                           preferred_element_type=jnp.float32) + b_ref[...]
            q = proj[0:HK, :]                                          # (HK, n_pad) h-major rows
            kp = proj[HK:HK + K, :]                                    # (K, n_pad)
            v = proj[HK + K:HK + K + V, :]                             # (V, n_pad)

            if n_pad != n_valid:                                       # static branch
                col = lax.broadcasted_iota(jnp.int32, (K, n_pad), 1)
                kp = jnp.where(col < n_valid, kp, jnp.float32(-1e30))

            # softmax over spatial positions (all-f32 VPU math)
            e = jnp.exp(kp - jnp.max(kp, axis=-1, keepdims=True))
            sm = e * pl.reciprocal(jnp.sum(e, axis=-1, keepdims=True), approx=True)

            # content lambda (transposed): lam_cT[v, k] = sum_n v[v,n]*sm[k,n]
            lam_cT = lax.dot_general(v, sm, (((1,), (1,)), ((), ())),
                                     preferred_element_type=jnp.float32)   # (V, K)

            # y_c for all heads initialises the accumulator (once per batch).
            q4 = q.reshape(H, K, n_pad)                                # layout-preserving split
            lam_b = jnp.broadcast_to(lam_cT[None, :, :], (H, V, K))
            acc_s[...] = lax.dot_general(lam_b, q4, (((2,), (1,)), ((0,), (0,))),
                                         preferred_element_type=jnp.float32)  # (H, V, n_pad)

            q4_s[...] = q4
            v_s[...] = v.astype(v_s.dtype)                             # bf16 for the MXU only

        # --- per k-tile: lambda_p slice (one MXU matmul) + full-width FMAs ---
        kq0 = pl.multiple_of(ks * KT, KT)
        lp_all = jnp.dot(v_s[...], rt_ref[...],
                         preferred_element_type=jnp.float32)           # (V, KT*n_pad)
        q_blk = q4_s[:, pl.ds(kq0, KT), :]                              # (H, KT, n_pad)

        acc = acc_s[...]
        for j in range(KT):
            lp_j = lp_all[:, j * n_pad:(j + 1) * n_pad]                 # (V, n_pad) lane slice
            q_j = q_blk[:, j, :]                                        # (H, n_pad)
            acc = acc + q_j[:, None, :] * lp_j[None, :, :]              # (H, V, n_pad)
        acc_s[...] = acc

        # --- single dense store at the last k step -----------------------------
        @pl.when(ks == pl.num_programs(1) - 1)
        def _store():
            o_ref[0] = acc_s[...].reshape(H * V, n_pad).astype(o_ref.dtype)

    return kernel


# ----------------------------------------------------------------------------
# Relative-position operator (matches F.conv3d(values, emb, padding=(0,p,p)),
# u == 1).  Build ONCE per (embedding, spatial size); activation independent.
# ----------------------------------------------------------------------------
def _build_rel_pos_matrix(emb2, w, h, m):
    # emb2: (K, m, m);  R[k, no, ni] = emb2[k, xi-xo+pad, yi-yo+pad] (masked)
    pad = (m - 1) // 2
    K = emb2.shape[0]
    dx = jnp.arange(w)[None, :] - jnp.arange(w)[:, None] + pad   # (w_out, w_in)
    dy = jnp.arange(h)[None, :] - jnp.arange(h)[:, None] + pad   # (h_out, h_in)
    vx = (dx >= 0) & (dx < m)
    vy = (dy >= 0) & (dy < m)
    dxc = jnp.clip(dx, 0, m - 1)
    dyc = jnp.clip(dy, 0, m - 1)
    R5 = emb2[:, dxc[:, :, None, None], dyc[None, None, :, :]]   # (K, xo, xi, yo, yi)
    valid = vx[:, :, None, None] & vy[None, None, :, :]
    R5 = jnp.where(valid[None], R5, 0.0)
    R = jnp.transpose(R5, (0, 1, 3, 2, 4)).reshape(K, w * h, w * h)
    return R.astype(jnp.float32)


def build_position_operator(emb, w, h, m, n_pad=None):
    """RT[ni, k*n_pad + no] = R[k, no, ni], zero-padded to n_pad lanes, bf16.

    TODO(synk): for large n exploit the banded structure of R (radius (m-1)//2)
    instead of the dense (n_pad, K*n_pad) matrix.
    """
    K = emb.shape[0]
    n = w * h
    if n_pad is None:
        n_pad = _round_up(n, 128)
    emb2 = emb[:, 0, 0]                                          # (K, m, m), u == 1
    r = _build_rel_pos_matrix(emb2, w, h, m)                     # (K, n, n)
    rt = jnp.transpose(r, (2, 0, 1))                             # (n, K, n)
    if n_pad != n:
        rt = jnp.pad(rt, ((0, n_pad - n), (0, 0), (0, n_pad - n)))
    return rt.reshape(n_pad, K * n_pad).astype(jnp.bfloat16)


# ----------------------------------------------------------------------------
# Tile / VMEM budgeting
# ----------------------------------------------------------------------------
def _pick_k_tile(K, n_pad, budget_bytes=4 << 20):
    """Largest divisor of K whose double-buffered bf16 RT slice fits the budget
    (and keeps >= 2 k steps when K >= 2, bounding register pressure)."""
    if K <= 1:
        return max(K, 1)
    by_budget = max(1, budget_bytes // (2 * n_pad * n_pad))
    cap = min(by_budget, max(1, K // 2))
    kt = 1
    for d in range(1, K + 1):
        if K % d == 0 and d <= cap:
            kt = d
    return kt


def _vmem_limit_bytes(*, n_pad, C, Mp, kt, K, H, V, out_c):
    f32, bf16, lane = 4, 2, 128
    blocks = (
        2 * C * n_pad * f32 +                    # x block (double-buffered over batch)
        1 * Mp * max(C, lane) * f32 +            # stacked W  (Buffered(1))
        1 * Mp * lane * f32 +                    # stacked bias (Buffered(1))
        2 * n_pad * kt * n_pad * bf16 +          # RT k-tile (double-buffered)
        2 * out_c * n_pad * f32                  # output block
    )
    pad_v = _round_up(V, 8)
    scratch = (H * K * n_pad * f32 +             # q scratch
               _round_up(V, 16) * n_pad * bf16 + # v scratch (bf16 sublane packing)
               H * pad_v * n_pad * f32)          # accumulator scratch
    temps = (2 * Mp * n_pad * f32 +              # projection + copies
             3 * K * n_pad * f32 +               # softmax temporaries
             2 * pad_v * kt * n_pad * f32 +      # lp_all
             2 * H * pad_v * n_pad * f32)        # live accumulator values
    need = blocks + scratch + temps + (4 << 20)  # compiler-internal headroom
    try:
        capacity = int(pltpu.get_tpu_info().vmem_capacity_bytes)
    except Exception:
        capacity = 64 << 20                      # conservative: v7x per-core VMEM
    cap = max(32 << 20, (capacity * 3) // 4)     # headroom on v7x; ~96 MiB on v5e/v6e
    return int(min(max(need, 32 << 20), cap))


# ----------------------------------------------------------------------------
# Wrapper
# ----------------------------------------------------------------------------
def lambda_conv_forward(x_nchw, params, *, heads, k, u, vv, m,
                        rel_pos_op=None, k_tile=None):
    # TODO(synk): general u > 1 needs grouped (k,u)/(v,u) contractions; the
    # module default (and this kernel) uses u == 1.
    assert u == 1, "kernel implemented for the default u == 1"
    B, C, w, h = x_nchw.shape
    n = w * h
    n_pad = _round_up(n, 128)          # lane-dense last dim (masked softmax if padded)
    HK = heads * k
    out_c = heads * vv
    rows = HK + k + vv
    Mp = _round_up(rows, 8)

    xf = x_nchw.reshape(B, C, n).astype(jnp.float32)
    if n_pad != n:
        xf = jnp.pad(xf, ((0, 0), (0, 0), (0, n_pad - n)))

    # Stacked projection weight / bias (BatchNorm folded, zero-padded rows).
    ws = jnp.zeros((Mp, C), jnp.float32)
    ws = ws.at[0:HK].set(params["wq"])
    ws = ws.at[HK:HK + k].set(params["wk"])
    ws = ws.at[HK + k:HK + k + vv].set(params["wv"])
    bs = jnp.zeros((Mp,), jnp.float32)
    bs = bs.at[0:HK].set(params["bq"])
    bs = bs.at[HK + k:HK + k + vv].set(params["bv"])
    bs = bs.reshape(Mp, 1)

    if rel_pos_op is None:
        rel_pos_op = build_position_operator(params["emb"], w, h, m, n_pad=n_pad)
    assert rel_pos_op.shape == (n_pad, k * n_pad)
    assert rel_pos_op.dtype == jnp.bfloat16

    kt = k_tile if k_tile is not None else _pick_k_tile(k, n_pad)
    assert k % kt == 0
    ksteps = k // kt

    kernel = _make_lambda_conv_kernel(heads, k, vv, kt, n)
    vmem_limit = _vmem_limit_bytes(n_pad=n_pad, C=C, Mp=Mp, kt=kt, K=k,
                                   H=heads, V=vv, out_c=out_c)

    out = pl.pallas_call(
        kernel,
        out_shape=jax.ShapeDtypeStruct((B, out_c, n_pad), jnp.float32),
        grid_spec=pltpu.PrefetchScalarGridSpec(
            num_scalar_prefetch=0,
            grid=(B, ksteps),                                  # batch || , k-tiles reduce
            in_specs=[
                pl.BlockSpec((1, C, n_pad), lambda b, ks: (b, 0, 0)),       # x
                pl.BlockSpec((Mp, C), lambda b, ks: (0, 0),
                             pipeline_mode=pl.Buffered(1)),                 # stacked W
                pl.BlockSpec((Mp, 1), lambda b, ks: (0, 0),
                             pipeline_mode=pl.Buffered(1)),                 # stacked bias
                pl.BlockSpec((n_pad, kt * n_pad), lambda b, ks: (0, ks)),   # RT k-tile
            ],
            out_specs=pl.BlockSpec((1, out_c, n_pad), lambda b, ks: (b, 0, 0)),
            scratch_shapes=[
                pltpu.VMEM((heads, k, n_pad), jnp.float32),   # q (all k, per batch)
                pltpu.VMEM((vv, n_pad), jnp.bfloat16),        # v (MXU operand)
                pltpu.VMEM((heads, vv, n_pad), jnp.float32),  # accumulator
            ],
        ),
        compiler_params=pltpu.CompilerParams(
            dimension_semantics=("parallel", "arbitrary"),
            vmem_limit_bytes=vmem_limit,
        ),
    )(xf, ws, bs, rel_pos_op)

    out = out[:, :, :n]
    return out.reshape(B, out_c, w, h)


# ----------------------------------------------------------------------------
# Deterministic parameter init (BatchNorm folded as inference-mode affine).
# ----------------------------------------------------------------------------
def init_params(key, in_channels, out_channels, heads=4, k=16, u=1, m=23, eps=1e-5):
    vv = out_channels // heads
    ks = jax.random.split(key, 6)

    wq_conv = jax.random.normal(ks[0], (k * heads, in_channels), jnp.float32) / np.sqrt(in_channels)
    wk_conv = jax.random.normal(ks[1], (k * u, in_channels), jnp.float32) / np.sqrt(in_channels)
    wv_conv = jax.random.normal(ks[2], (vv * u, in_channels), jnp.float32) / np.sqrt(in_channels)

    def bn_affine(key, c):
        k1, k2, k3, k4 = jax.random.split(key, 4)
        gamma = 1.0 + 0.1 * jax.random.normal(k1, (c,), jnp.float32)
        beta = 0.1 * jax.random.normal(k2, (c,), jnp.float32)
        mean = 0.1 * jax.random.normal(k3, (c,), jnp.float32)
        var = 1.0 + 0.1 * jnp.abs(jax.random.normal(k4, (c,), jnp.float32))
        scale = gamma / jnp.sqrt(var + eps)
        shift = beta - mean * scale
        return scale, shift

    q_scale, q_shift = bn_affine(ks[3], k * heads)
    v_scale, v_shift = bn_affine(ks[4], vv * u)

    return dict(
        wq=wq_conv * q_scale[:, None], bq=q_shift,
        wk=wk_conv,
        wv=wv_conv * v_scale[:, None], bv=v_shift,
        emb=jax.random.normal(ks[5], (k, u, 1, m, m), jnp.float32),
    )


# ----------------------------------------------------------------------------
# Pure-JAX reference (mirrors the PyTorch forward, incl. F.conv3d).
# ----------------------------------------------------------------------------
def reference_forward(x_nchw, params, *, heads, k, u, vv, m):
    B, C, w, h = x_nchw.shape
    n = w * h
    pad = (m - 1) // 2
    hp = jax.lax.Precision.HIGHEST
    xf = x_nchw.reshape(B, C, n)

    q = jnp.einsum('oc,bcn->bon', params['wq'], xf, precision=hp) + params['bq'][None, :, None]
    queries = q.reshape(B, heads, k, n)
    kp = jnp.einsum('oc,bcn->bon', params['wk'], xf, precision=hp).reshape(B, k, u, n)
    sm = jax.nn.softmax(kp, axis=-1)
    vproj = (jnp.einsum('oc,bcn->bon', params['wv'], xf, precision=hp)
             + params['bv'][None, :, None]).reshape(B, vv, u, n)

    lam_c = jnp.einsum('bkum,bvum->bkv', sm, vproj, precision=hp)
    y_c = jnp.einsum('bhkn,bkv->bhvn', queries, lam_c, precision=hp)

    values_p = vproj.reshape(B, u, vv, w, h)
    lam_p = jax.lax.conv_general_dilated(
        values_p, params['emb'], window_strides=(1, 1, 1),
        padding=[(0, 0), (pad, pad), (pad, pad)],
        dimension_numbers=('NCDHW', 'OIDHW', 'NCDHW'), precision=hp)
    lam_p = lam_p.reshape(B, k, vv, n)
    y_p = jnp.einsum('bhkn,bkvn->bhvn', queries, lam_p, precision=hp)

    return (y_c + y_p).reshape(B, heads * vv, w, h)


if __name__ == "__main__":
    # Module config (defaults: heads=4, k=16, u=1, m=23); small in/out channels.
    B, C, w, h = 2, 8, 16, 16
    heads, k, u, m = 4, 16, 1, 23
    out_channels = 16
    vv = out_channels // heads

    key = jax.random.PRNGKey(0)
    kx, kparam = jax.random.split(key)
    x = jax.random.normal(kx, (B, C, w, h), dtype=jnp.float32)
    params = init_params(kparam, C, out_channels, heads=heads, k=k, u=u, m=m)

    # Build the relative-position operator ONCE (activation independent) and
    # reuse it across forward calls.
    rel_op = build_position_operator(params["emb"], w, h, m)

    out = lambda_conv_forward(x, params, heads=heads, k=k, u=u, vv=vv, m=m,
                              rel_pos_op=rel_op)
    out = jax.block_until_ready(out)

    ref = reference_forward(x, params, heads=heads, k=k, u=u, vv=vv, m=m)
    ref = jax.block_until_ready(ref)

    assert out.shape == (B, out_channels, w, h), out.shape
    max_err = float(jnp.max(jnp.abs(out - ref)))
    scale = max(1.0, float(jnp.max(jnp.abs(ref))))
    assert max_err <= 3e-2 * scale, f"mismatch: max_abs_err={max_err}, ref_scale={scale}"

    print("KERNEL_OK")
</pallas_src>

<mosaic_0001>
module attributes {stable_mosaic.version = 11 : i64} {
  func.func @kernel(%arg0: i32, %arg1: i32, %arg2: memref<1x8x256xf32, #tpu.memory_space<vmem>>, %arg3: memref<88x8xf32, #tpu.memory_space<vmem>>, %arg4: memref<88x1xf32, #tpu.memory_space<vmem>>, %arg5: memref<256x2048xbf16, #tpu.memory_space<vmem>>, %arg6: memref<1x16x256xf32, #tpu.memory_space<vmem>>, %arg7: memref<4x16x256xf32, #tpu.memory_space<vmem>>, %arg8: memref<4x256xbf16, #tpu.memory_space<vmem>>, %arg9: memref<4x4x256xf32, #tpu.memory_space<vmem>>) attributes {dimension_semantics = [#tpu.dimension_semantics<parallel>, #tpu.dimension_semantics<arbitrary>], iteration_bounds = array<i64: 2, 2>, scalar_prefetch = 0 : i64, scratch_operands = 3 : i64, tpu.core_type = #tpu.core_type<tc>, window_params = [{transform_indices = @transform_0, window_bounds = array<i64: 1, 8, 256>}, {pipeline_mode = #tpu.pipeline_mode<synchronous>, transform_indices = @transform_1, window_bounds = array<i64: 88, 8>}, {pipeline_mode = #tpu.pipeline_mode<synchronous>, transform_indices = @transform_2, window_bounds = array<i64: 88, 1>}, {transform_indices = @transform_3, window_bounds = array<i64: 256, 2048>}, {transform_indices = @transform_4, window_bounds = array<i64: 1, 16, 256>}]} {
    %c0_i32 = arith.constant 0 : i32
    %0 = arith.cmpi eq, %arg1, %c0_i32 : i32
    %1 = arith.extui %0 : i1 to i32
    %c0_i32_0 = arith.constant 0 : i32
    %2 = arith.cmpi ne, %1, %c0_i32_0 : i32
    scf.if %2 {
      %c0_13 = arith.constant 0 : index
      %c0_14 = arith.constant 0 : index
      %c0_15 = arith.constant 0 : index
      %87 = vector.load %arg2[%c0_13, %c0_14, %c0_15] : memref<1x8x256xf32, #tpu.memory_space<vmem>>, vector<1x8x256xf32>
      %88 = vector.shape_cast %87 : vector<1x8x256xf32> to vector<8x256xf32>
      %c0_16 = arith.constant 0 : index
      %c0_17 = arith.constant 0 : index
      %89 = vector.load %arg3[%c0_16, %c0_17] : memref<88x8xf32, #tpu.memory_space<vmem>>, vector<88x8xf32>
      %cst_18 = arith.constant dense<0.000000e+00> : vector<88x256xf32>
      %90 = tpu.matmul %89, %88, %cst_18 {dimension_numbers = #tpu.dot_dimension_numbers<[1], [0], [0], [1], [0, 0, 1, 1], [], []>} : vector<88x8xf32>, vector<8x256xf32>, vector<88x256xf32> -> vector<88x256xf32>
      %c0_19 = arith.constant 0 : index
      %c0_20 = arith.constant 0 : index
      %91 = vector.load %arg4[%c0_19, %c0_20] : memref<88x1xf32, #tpu.memory_space<vmem>>, vector<88x1xf32>
      %92 = vector.broadcast %91 : vector<88x1xf32> to vector<88x256xf32>
      %93 = arith.addf %90, %92 : vector<88x256xf32>
      %94 = vector.extract_strided_slice %93 {offsets = [0, 0], sizes = [64, 256], strides = [1, 1]} : vector<88x256xf32> to vector<64x256xf32>
      %95 = vector.extract_strided_slice %93 {offsets = [64, 0], sizes = [16, 256], strides = [1, 1]} : vector<88x256xf32> to vector<16x256xf32>
      %96 = vector.extract_strided_slice %93 {offsets = [80, 0], sizes = [4, 256], strides = [1, 1]} : vector<88x256xf32> to vector<4x256xf32>
      %cst_21 = arith.constant dense<0xFF800000> : vector<16xf32>
      %97 = vector.multi_reduction <maximumf>, %95, %cst_21 [1] : vector<16x256xf32> to vector<16xf32>
      %98 = vector.shape_cast %97 : vector<16xf32> to vector<16x1xf32>
      %99 = vector.broadcast %98 : vector<16x1xf32> to vector<16x256xf32>
      %100 = arith.subf %95, %99 : vector<16x256xf32>
      %101 = math.exp %100 : vector<16x256xf32>
      %cst_22 = arith.constant dense<0.000000e+00> : vector<16xf32>
      %102 = vector.multi_reduction <add>, %101, %cst_22 [1] : vector<16x256xf32> to vector<16xf32>
      %103 = vector.shape_cast %102 : vector<16xf32> to vector<16x1xf32>
      %104 = tpu.reciprocal %103 {approx = true} : vector<16x1xf32> -> vector<16x1xf32>
      %105 = vector.broadcast %104 : vector<16x1xf32> to vector<16x256xf32>
      %106 = arith.mulf %101, %105 : vector<16x256xf32>
      %cst_23 = arith.constant dense<0.000000e+00> : vector<4x16xf32>
      %107 = tpu.matmul %96, %106, %cst_23 {dimension_numbers = #tpu.dot_dimension_numbers<[1], [1], [0], [0], [0, 0, 1, 0], [], []>} : vector<4x256xf32>, vector<16x256xf32>, vector<4x16xf32> -> vector<4x16xf32>
      %108 = vector.shape_cast %94 : vector<64x256xf32> to vector<4x16x256xf32>
      %109 = vector.shape_cast %107 : vector<4x16xf32> to vector<1x4x16xf32>
      %110 = vector.shape_cast %109 : vector<1x4x16xf32> to vector<1x4x16xf32>
      %111 = vector.broadcast %110 : vector<1x4x16xf32> to vector<4x4x16xf32>
      %cst_24 = arith.constant dense<0.000000e+00> : vector<4x4x256xf32>
      %112 = tpu.matmul %111, %108, %cst_24 {dimension_numbers = #tpu.dot_dimension_numbers<[2], [1], [1], [2], [0, 0, 0, 1, 1, 2], [0], [0]>} : vector<4x4x16xf32>, vector<4x16x256xf32>, vector<4x4x256xf32> -> vector<4x4x256xf32>
      %c0_25 = arith.constant 0 : index
      %c0_26 = arith.constant 0 : index
      %c0_27 = arith.constant 0 : index
      %113 = vector.load %arg9[%c0_25, %c0_26, %c0_27] : memref<4x4x256xf32, #tpu.memory_space<vmem>>, vector<4x4x256xf32>
      tpu.vector_store %arg9[%c0_25, %c0_26, %c0_27], %112 {strides = array<i32>} : memref<4x4x256xf32, #tpu.memory_space<vmem>>, vector<4x4x256xf32>,
      %c0_28 = arith.constant 0 : index
      %c0_29 = arith.constant 0 : index
      %c0_30 = arith.constant 0 : index
      %114 = vector.load %arg7[%c0_28, %c0_29, %c0_30] : memref<4x16x256xf32, #tpu.memory_space<vmem>>, vector<4x16x256xf32>
      tpu.vector_store %arg7[%c0_28, %c0_29, %c0_30], %108 {strides = array<i32>} : memref<4x16x256xf32, #tpu.memory_space<vmem>>, vector<4x16x256xf32>,
      %115 = arith.truncf %96 : vector<4x256xf32> to vector<4x256xbf16>
      %c0_31 = arith.constant 0 : index
      %c0_32 = arith.constant 0 : index
      %116 = vector.load %arg8[%c0_31, %c0_32] : memref<4x256xbf16, #tpu.memory_space<vmem>>, vector<4x256xbf16>
      tpu.vector_store %arg8[%c0_31, %c0_32], %115 {strides = array<i32>} : memref<4x256xbf16, #tpu.memory_space<vmem>>, vector<4x256xbf16>,
    } else {
    }
    %c8_i32 = arith.constant 8 : i32
    %3 = arith.muli %arg1, %c8_i32 : i32
    %4 = tpu.assume_multiple %3, 8 : i32
    %c0 = arith.constant 0 : index
    %c0_1 = arith.constant 0 : index
    %5 = vector.load %arg8[%c0, %c0_1] : memref<4x256xbf16, #tpu.memory_space<vmem>>, vector<4x256xbf16>
    %c0_2 = arith.constant 0 : index
    %c0_3 = arith.constant 0 : index
    %6 = vector.load %arg5[%c0_2, %c0_3] : memref<256x2048xbf16, #tpu.memory_space<vmem>>, vector<256x2048xbf16>
    %cst = arith.constant dense<0.000000e+00> : vector<4x2048xf32>
    %7 = tpu.matmul %5, %6, %cst {dimension_numbers = #tpu.dot_dimension_numbers<[1], [0], [0], [1], [0, 0, 1, 1], [], []>} : vector<4x256xbf16>, vector<256x2048xbf16>, vector<4x2048xf32> -> vector<4x2048xf32>
    %c0_4 = arith.constant 0 : index
    %8 = arith.index_cast %4 : i32 to index
    %c0_5 = arith.constant 0 : index
    %9 = vector.load %arg7[%c0_4, %8, %c0_5] : memref<4x16x256xf32, #tpu.memory_space<vmem>>, vector<4x8x256xf32>
    %c0_6 = arith.constant 0 : index
    %c0_7 = arith.constant 0 : index
    %c0_8 = arith.constant 0 : index
    %10 = vector.load %arg9[%c0_6, %c0_7, %c0_8] : memref<4x4x256xf32, #tpu.memory_space<vmem>>, vector<4x4x256xf32>
    %11 = vector.extract_strided_slice %7 {offsets = [0, 0], sizes = [4, 256], strides = [1, 1]} : vector<4x2048xf32> to vector<4x256xf32>
    %12 = vector.extract_strided_slice %9 {offsets = [0, 0, 0], sizes = [4, 1, 256], strides = [1, 1, 1]} : vector<4x8x256xf32> to vector<4x1x256xf32>
    %13 = vector.shape_cast %12 : vector<4x1x256xf32> to vector<4x256xf32>
    %14 = vector.shape_cast %13 : vector<4x256xf32> to vector<4x1x256xf32>
    %15 = vector.shape_cast %11 : vector<4x256xf32> to vector<1x4x256xf32>
    %16 = vector.broadcast %14 : vector<4x1x256xf32> to vector<4x4x256xf32>
    %17 = vector.broadcast %15 : vector<1x4x256xf32> to vector<4x4x256xf32>
    %18 = arith.mulf %16, %17 : vector<4x4x256xf32>
    %19 = arith.addf %10, %18 : vector<4x4x256xf32>
    %20 = vector.extract_strided_slice %7 {offsets = [0, 256], sizes = [4, 256], strides = [1, 1]} : vector<4x2048xf32> to vector<4x256xf32>
    %21 = vector.extract_strided_slice %9 {offsets = [0, 1, 0], sizes = [4, 1, 256], strides = [1, 1, 1]} : vector<4x8x256xf32> to vector<4x1x256xf32>
    %22 = vector.shape_cast %21 : vector<4x1x256xf32> to vector<4x256xf32>
    %23 = vector.shape_cast %22 : vector<4x256xf32> to vector<4x1x256xf32>
    %24 = vector.shape_cast %20 : vector<4x256xf32> to vector<1x4x256xf32>
    %25 = vector.broadcast %23 : vector<4x1x256xf32> to vector<4x4x256xf32>
    %26 = vector.broadcast %24 : vector<1x4x256xf32> to vector<4x4x256xf32>
    %27 = arith.mulf %25, %26 : vector<4x4x256xf32>
    %28 = arith.addf %19, %27 : vector<4x4x256xf32>
    %29 = vector.extract_strided_slice %7 {offsets = [0, 512], sizes = [4, 256], strides = [1, 1]} : vector<4x2048xf32> to vector<4x256xf32>
    %30 = vector.extract_strided_slice %9 {offsets = [0, 2, 0], sizes = [4, 1, 256], strides = [1, 1, 1]} : vector<4x8x256xf32> to vector<4x1x256xf32>
    %31 = vector.shape_cast %30 : vector<4x1x256xf32> to vector<4x256xf32>
    %32 = vector.shape_cast %31 : vector<4x256xf32> to vector<4x1x256xf32>
    %33 = vector.shape_cast %29 : vector<4x256xf32> to vector<1x4x256xf32>
    %34 = vector.broadcast %32 : vector<4x1x256xf32> to vector<4x4x256xf32>
    %35 = vector.broadcast %33 : vector<1x4x256xf32> to vector<4x4x256xf32>
    %36 = arith.mulf %34, %35 : vector<4x4x256xf32>
    %37 = arith.addf %28, %36 : vector<4x4x256xf32>
    %38 = vector.extract_strided_slice %7 {offsets = [0, 768], sizes = [4, 256], strides = [1, 1]} : vector<4x2048xf32> to vector<4x256xf32>
    %39 = vector.extract_strided_slice %9 {offsets = [0, 3, 0], sizes = [4, 1, 256], strides = [1, 1, 1]} : vector<4x8x256xf32> to vector<4x1x256xf32>
    %40 = vector.shape_cast %39 : vector<4x1x256xf32> to vector<4x256xf32>
    %41 = vector.shape_cast %40 : vector<4x256xf32> to vector<4x1x256xf32>
    %42 = vector.shape_cast %38 : vector<4x256xf32> to vector<1x4x256xf32>
    %43 = vector.broadcast %41 : vector<4x1x256xf32> to vector<4x4x256xf32>
    %44 = vector.broadcast %42 : vector<1x4x256xf32> to vector<4x4x256xf32>
    %45 = arith.mulf %43, %44 : vector<4x4x256xf32>
    %46 = arith.addf %37, %45 : vector<4x4x256xf32>
    %47 = vector.extract_strided_slice %7 {offsets = [0, 1024], sizes = [4, 256], strides = [1, 1]} : vector<4x2048xf32> to vector<4x256xf32>
    %48 = vector.extract_strided_slice %9 {offsets = [0, 4, 0], sizes = [4, 1, 256], strides = [1, 1, 1]} : vector<4x8x256xf32> to vector<4x1x256xf32>
    %49 = vector.shape_cast %48 : vector<4x1x256xf32> to vector<4x256xf32>
    %50 = vector.shape_cast %49 : vector<4x256xf32> to vector<4x1x256xf32>
    %51 = vector.shape_cast %47 : vector<4x256xf32> to vector<1x4x256xf32>
    %52 = vector.broadcast %50 : vector<4x1x256xf32> to vector<4x4x256xf32>
    %53 = vector.broadcast %51 : vector<1x4x256xf32> to vector<4x4x256xf32>
    %54 = arith.mulf %52, %53 : vector<4x4x256xf32>
    %55 = arith.addf %46, %54 : vector<4x4x256xf32>
    %56 = vector.extract_strided_slice %7 {offsets = [0, 1280], sizes = [4, 256], strides = [1, 1]} : vector<4x2048xf32> to vector<4x256xf32>
    %57 = vector.extract_strided_slice %9 {offsets = [0, 5, 0], sizes = [4, 1, 256], strides = [1, 1, 1]} : vector<4x8x256xf32> to vector<4x1x256xf32>
    %58 = vector.shape_cast %57 : vector<4x1x256xf32> to vector<4x256xf32>
    %59 = vector.shape_cast %58 : vector<4x256xf32> to vector<4x1x256xf32>
    %60 = vector.shape_cast %56 : vector<4x256xf32> to vector<1x4x256xf32>
    %61 = vector.broadcast %59 : vector<4x1x256xf32> to vector<4x4x256xf32>
    %62 = vector.broadcast %60 : vector<1x4x256xf32> to vector<4x4x256xf32>
    %63 = arith.mulf %61, %62 : vector<4x4x256xf32>
    %64 = arith.addf %55, %63 : vector<4x4x256xf32>
    %65 = vector.extract_strided_slice %7 {offsets = [0, 1536], sizes = [4, 256], strides = [1, 1]} : vector<4x2048xf32> to vector<4x256xf32>
    %66 = vector.extract_strided_slice %9 {offsets = [0, 6, 0], sizes = [4, 1, 256], strides = [1, 1, 1]} : vector<4x8x256xf32> to vector<4x1x256xf32>
    %67 = vector.shape_cast %66 : vector<4x1x256xf32> to vector<4x256xf32>
    %68 = vector.shape_cast %67 : vector<4x256xf32> to vector<4x1x256xf32>
    %69 = vector.shape_cast %65 : vector<4x256xf32> to vector<1x4x256xf32>
    %70 = vector.broadcast %68 : vector<4x1x256xf32> to vector<4x4x256xf32>
    %71 = vector.broadcast %69 : vector<1x4x256xf32> to vector<4x4x256xf32>
    %72 = arith.mulf %70, %71 : vector<4x4x256xf32>
    %73 = arith.addf %64, %72 : vector<4x4x256xf32>
    %74 = vector.extract_strided_slice %7 {offsets = [0, 1792], sizes = [4, 256], strides = [1, 1]} : vector<4x2048xf32> to vector<4x256xf32>
    %75 = vector.extract_strided_slice %9 {offsets = [0, 7, 0], sizes = [4, 1, 256], strides = [1, 1, 1]} : vector<4x8x256xf32> to vector<4x1x256xf32>
    %76 = vector.shape_cast %75 : vector<4x1x256xf32> to vector<4x256xf32>
    %77 = vector.shape_cast %76 : vector<4x256xf32> to vector<4x1x256xf32>
    %78 = vector.shape_cast %74 : vector<4x256xf32> to vector<1x4x256xf32>
    %79 = vector.broadcast %77 : vector<4x1x256xf32> to vector<4x4x256xf32>
    %80 = vector.broadcast %78 : vector<1x4x256xf32> to vector<4x4x256xf32>
    %81 = arith.mulf %79, %80 : vector<4x4x256xf32>
    %82 = arith.addf %73, %81 : vector<4x4x256xf32>
    %c0_9 = arith.constant 0 : index
    %c0_10 = arith.constant 0 : index
    %c0_11 = arith.constant 0 : index
    %83 = vector.load %arg9[%c0_9, %c0_10, %c0_11] : memref<4x4x256xf32, #tpu.memory_space<vmem>>, vector<4x4x256xf32>
    tpu.vector_store %arg9[%c0_9, %c0_10, %c0_11], %82 {strides = array<i32>} : memref<4x4x256xf32, #tpu.memory_space<vmem>>, vector<4x4x256xf32>,
    %c1_i32 = arith.constant 1 : i32
    %84 = arith.cmpi eq, %arg1, %c1_i32 : i32
    %85 = arith.extui %84 : i1 to i32
    %c0_i32_12 = arith.constant 0 : i32
    %86 = arith.cmpi ne, %85, %c0_i32_12 : i32
    scf.if %86 {
      %c0_13 = arith.constant 0 : index
      %c0_14 = arith.constant 0 : index
      %c0_15 = arith.constant 0 : index
      %87 = vector.load %arg9[%c0_13, %c0_14, %c0_15] : memref<4x4x256xf32, #tpu.memory_space<vmem>>, vector<4x4x256xf32>
      %88 = vector.shape_cast %87 : vector<4x4x256xf32> to vector<16x256xf32>
      %c0_16 = arith.constant 0 : index
      %c0_17 = arith.constant 0 : index
      %c0_18 = arith.constant 0 : index
      %89 = vector.load %arg6[%c0_16, %c0_17, %c0_18] : memref<1x16x256xf32, #tpu.memory_space<vmem>>, vector<1x16x256xf32>
      %90 = vector.shape_cast %89 : vector<1x16x256xf32> to vector<16x256xf32>
      %91 = vector.shape_cast %88 : vector<16x256xf32> to vector<1x16x256xf32>
      tpu.vector_store %arg6[%c0_16, %c0_17, %c0_18], %91 {strides = array<i32>} : memref<1x16x256xf32, #tpu.memory_space<vmem>>, vector<1x16x256xf32>,
    } else {
    }
    return
  }
  func.func @transform_0(%arg0: i32, %arg1: i32) -> (i32, i32, i32) {
    %c0_i32 = arith.constant 0 : i32
    %c0_i32_0 = arith.constant 0 : i32
    %c0_i32_1 = arith.constant 0 : i32
    return %arg0, %c0_i32, %c0_i32_0 : i32, i32, i32
  }
  func.func @transform_1(%arg0: i32, %arg1: i32) -> (i32, i32) {
    %c0_i32 = arith.constant 0 : i32
    %c0_i32_0 = arith.constant 0 : i32
    %c0_i32_1 = arith.constant 0 : i32
    return %c0_i32, %c0_i32_0 : i32, i32
  }
  func.func @transform_2(%arg0: i32, %arg1: i32) -> (i32, i32) {
    %c0_i32 = arith.constant 0 : i32
    %c0_i32_0 = arith.constant 0 : i32
    %c0_i32_1 = arith.constant 0 : i32
    return %c0_i32, %c0_i32_0 : i32, i32
  }
  func.func @transform_3(%arg0: i32, %arg1: i32) -> (i32, i32) {
    %c0_i32 = arith.constant 0 : i32
    %c0_i32_0 = arith.constant 0 : i32
    return %c0_i32, %arg1 : i32, i32
  }
  func.func @transform_4(%arg0: i32, %arg1: i32) -> (i32, i32, i32) {
    %c0_i32 = arith.constant 0 : i32
    %c0_i32_0 = arith.constant 0 : i32
    %c0_i32_1 = arith.constant 0 : i32
    return %arg0, %c0_i32, %c0_i32_0 : i32, i32, i32
  }
}

</mosaic_0001>

<llo_original>
// kernel: tpu_custom_call.1
$region0: #{tpu_custom_call.1}
  #allocation0 [shape = 'u32[]', space=smem, size = 0x4, offset = 0x4, fixed_abs, tag = 'smem constant byte address 0x4 - core index']
  #allocation1 [shape = 'u32[144,128]{1,0:T(1,128)}', space=vmem, size = 0x12000, scoped, tag = 'internal scratch']
  #allocation2 [shape = 'f32[4,16,256]{2,1,0:T(8,128)}', space=vmem, size = 0x10000, scoped, tag = 'scratch operand']
  #allocation3 [shape = 'bf16[4,256]{1,0:T(4,128)(2,1)}', space=vmem, size = 0x800, scoped, tag = 'scratch operand']
  #allocation4 [shape = 'f32[4,4,256]{2,1,0:T(4,128)}', space=vmem, size = 0x4000, scoped, tag = 'scratch operand']
  %s0 = inlined_call_operand.hbm [shape: f32[2,8,256], index: 0, kind: input, shape index: {}]
  %s1 = inlined_call_operand.vmem [shape: f32[88,8], index: 1, kind: input, shape index: {}]
  %s2 = inlined_call_operand.vmem [shape: f32[88,1], index: 2, kind: input, shape index: {}]
  %s3 = inlined_call_operand.hbm [shape: bf16[256,4096], index: 3, kind: input, shape index: {}]
  %s4 = inlined_call_operand.hbm [shape: f32[2,16,256], index: 4, kind: output, shape index: {}]
  %s5 = sld [smem:[#allocation0]]
  $region65: #{tpu_custom_call.1} parent=0
    _
  %s7 = ssub.s32 1, %s5
  %s8 = scalar_select 0, %s7, %s5
  $region1: #{tpu_custom_call.1} parent=0
    #allocation5 [shape = 'u8[16384]{0}', space=vmem, size = 0x4000, scoped, tag = 'input window, operand 0']
    #allocation6 [shape = 's32[2]{0}', space=sflag, size = 0x8, scoped, tag = 'scoped memory for tpu_custom_call.1']
    #allocation7 [shape = 's32[2]{0}', space=sflag, size = 0x8, scoped, tag = 'scoped memory for tpu_custom_call.1']
    #allocation8 [shape = 'u8[2097152]{0}', space=vmem, size = 0x200000, scoped, tag = 'input window, operand 3']
    #allocation9 [shape = 's32[2]{0}', space=sflag, size = 0x8, scoped, tag = 'scoped memory for tpu_custom_call.1']
    #allocation10 [shape = 'u8[32768]{0}', space=vmem, size = 0x8000, scoped, tag = 'output window, operand 0']
    %9 = vsyncpa [#allocation6], 0
    %s10 = scalar_lea.sflag [#allocation6], 1
    %11 = vsyncpa %s10, 0
    %12 = vsyncpa [#allocation9], 0
    %s13 = scalar_lea.sflag [#allocation9], 1
    %14 = vsyncpa %s13, 0
    %15 = vsyncpa [#allocation7], 0
    %s16 = scalar_lea.sflag [#allocation7], 1
    %17 = vsyncpa %s16, 0
    loop: start=0, step=1, limit=6
    $region2: #{tpu_custom_call.1} parent=1 // loop_pre_header
      _
    $region3: #{tpu_custom_call.1} parent=1 // loop_header
      %s19 = sphi 0, %s23
      %p20 = scmp.ge.s32.totalorder %s19, 6
      %s26 = sphi 0, %s38
      %s27 = sphi 0, %s34
      %s28 = sphi 0, %s26
      %s29 = sphi 0, %s27
      %s30 = sphi 0, %s28
      %s31 = sphi 0, %s29
      %s41 = sphi 0, %s43
      %s44 = sphi 0, %s41
      %s45 = sphi 0, %s44
      %s61 = sphi 0, %s45
      %s65 = sphi 0, %s65
      %s67 = sphi 0, %s65
      %s68 = sphi 0, %s67
      %s82 = sphi 0, %s68
      %s86 = sphi 0, %s86
      %s88 = sphi 0, %s86
      %s89 = sphi 0, %s88
      %s103 = sphi 0, %s89
      %s109 = sphi 0, %s111
      %s112 = sphi 0, %s109
      %s113 = sphi 0, %s112
      %s129 = sphi 0, %s113
      %s135 = sphi 0, %s137
      %s138 = sphi 0, %s135
      %s139 = sphi 0, %s138
      %s155 = sphi 0, %s139
    $region4: #{tpu_custom_call.1} parent=1 // loop_header_branch
      %22 = sbr.rel (%p20) target = $region8
    $region5: #{tpu_custom_call.1} parent=1 // loop_body
      %s24 = ssub.s32 %s19, 1
      %s25 = ssub.s32 %s19, 2
      %s32 = sadd.s32 1, %s27
      %p33 = scmp.ge.s32.totalorder %s32, 2
      %s34 = scalar_select %p33, 0, %s32
      %s35 = sadd.s32 1, %s26
      %s36 = scalar_select %p33, %s35, %s26
      %p37 = scmp.ge.s32.totalorder %s36, 2
      %s38 = scalar_select %p37, 0, %s36
      %s39 = ssub.s32 %s26, %s38
      %p40 = scmp.eq.s32.totalorder %s39, 0
      %s42 = sadd.s32 %s41, 1
      %s43 = scalar_select %p40, %s41, %s42
      %p46 = pneg %p40
      %p47 = scmp.eq.s32.totalorder %s19, 3
      %p48 = por %p46, %p47
      %p49 = scmp.ne.s32.totalorder %s41, %s44
      %p50 = scmp.eq.s32.totalorder %s19, 0
      %p51 = por %p49, %p50
      %p52 = scmp.ne.s32.totalorder %s41, %s44
      %p53 = scmp.eq.s32.totalorder %s24, 3
      %p54 = por %p52, %p53
      %p55 = scmp.ne.s32.totalorder %s44, %s45
      %p56 = scmp.eq.s32.totalorder %s24, 0
      %p57 = por %p55, %p56
      %p58 = scmp.ne.s32.totalorder %s44, %s45
      %p59 = scmp.eq.s32.totalorder %s25, 3
      %p60 = por %p58, %p59
      %p62 = scmp.ne.s32.totalorder %s45, %s61
      %p63 = scmp.eq.s32.totalorder %s25, 0
      %p64 = por %p62, %p63
      %s66 = sadd.s32 %s65, 1
      %p69 = scmp.eq.s32.totalorder %s19, 3
      %p70 = scmp.ne.s32.totalorder %s65, %s67
      %p71 = scmp.eq.s32.totalorder %s19, 0
      %p72 = por %p70, %p71
      %p73 = scmp.ne.s32.totalorder %s65, %s67
      %p74 = scmp.eq.s32.totalorder %s24, 3
      %p75 = por %p73, %p74
      %p76 = scmp.ne.s32.totalorder %s67, %s68
      %p77 = scmp.eq.s32.totalorder %s24, 0
      %p78 = por %p76, %p77
      %p79 = scmp.ne.s32.totalorder %s67, %s68
      %p80 = scmp.eq.s32.totalorder %s25, 3
      %p81 = por %p79, %p80
      %p83 = scmp.ne.s32.totalorder %s68, %s82
      %p84 = scmp.eq.s32.totalorder %s25, 0
      %p85 = por %p83, %p84
      %s87 = sadd.s32 %s86, 1
      %p90 = scmp.eq.s32.totalorder %s19, 3
      %p91 = scmp.ne.s32.totalorder %s86, %s88
      %p92 = scmp.eq.s32.totalorder %s19, 0
      %p93 = por %p91, %p92
      %p94 = scmp.ne.s32.totalorder %s86, %s88
      %p95 = scmp.eq.s32.totalorder %s24, 3
      %p96 = por %p94, %p95
      %p97 = scmp.ne.s32.totalorder %s88, %s89
      %p98 = scmp.eq.s32.totalorder %s24, 0
      %p99 = por %p97, %p98
      %p100 = scmp.ne.s32.totalorder %s88, %s89
      %p101 = scmp.eq.s32.totalorder %s25, 3
      %p102 = por %p100, %p101
      %p104 = scmp.ne.s32.totalorder %s89, %s103
      %p105 = scmp.eq.s32.totalorder %s25, 0
      %p106 = por %p104, %p105
      %s107 = ssub.s32 %s27, %s34
      %p108 = scmp.eq.s32.totalorder %s107, 0
      %s110 = sadd.s32 %s109, 1
      %s111 = scalar_select %p108, %s109, %s110
      %p114 = pneg %p108
      %p115 = scmp.eq.s32.totalorder %s19, 3
      %p116 = por %p114, %p115
      %p117 = scmp.ne.s32.totalorder %s109, %s112
      %p118 = scmp.eq.s32.totalorder %s19, 0
      %p119 = por %p117, %p118
      %p120 = scmp.ne.s32.totalorder %s109, %s112
      %p121 = scmp.eq.s32.totalorder %s24, 3
      %p122 = por %p120, %p121
      %p123 = scmp.ne.s32.totalorder %s112, %s113
      %p124 = scmp.eq.s32.totalorder %s24, 0
      %p125 = por %p123, %p124
      %p126 = scmp.ne.s32.totalorder %s112, %s113
      %p127 = scmp.eq.s32.totalorder %s25, 3
      %p128 = por %p126, %p127
      %p130 = scmp.ne.s32.totalorder %s113, %s129
      %p131 = scmp.eq.s32.totalorder %s25, 0
      %p132 = por %p130, %p131
      %s133 = ssub.s32 %s26, %s38
      %p134 = scmp.eq.s32.totalorder %s133, 0
      %s136 = sadd.s32 %s135, 1
      %s137 = scalar_select %p134, %s135, %s136
      %p140 = pneg %p134
      %p141 = scmp.eq.s32.totalorder %s19, 3
      %p142 = por %p140, %p141
      %p143 = scmp.ne.s32.totalorder %s135, %s138
      %p144 = scmp.eq.s32.totalorder %s19, 0
      %p145 = por %p143, %p144
      %p146 = scmp.ne.s32.totalorder %s135, %s138
      %p147 = scmp.eq.s32.totalorder %s24, 3
      %p148 = por %p146, %p147
      %p149 = scmp.ne.s32.totalorder %s138, %s139
      %p150 = scmp.eq.s32.totalorder %s24, 0
      %p151 = por %p149, %p150
      %p152 = scmp.ne.s32.totalorder %s138, %s139
      %p153 = scmp.eq.s32.totalorder %s25, 3
      %p154 = por %p152, %p153
      %p156 = scmp.ne.s32.totalorder %s139, %s155
      %p157 = scmp.eq.s32.totalorder %s25, 0
      %p158 = por %p156, %p157
      %p159 = scmp.le.s32.totalorder 1, %s19
      %p160 = scmp.lt.s32.totalorder %s19, 5
      %p161 = pnand %p159, %p160
      %p162 = pneg %p161
      // Predicated region
      $region9: #{tpu_custom_call.1} parent=5 // pred_check
        _
      $region10: #{tpu_custom_call.1} parent=5 // pred_check_branch
        %164 = sbr.rel (%p161) target = $region12
      $region11: #{tpu_custom_call.1} parent=5 // pred_region
        %s165 = ssub.s32 %s19, 1
        // Predicated region
        $region13: #{tpu_custom_call.1} parent=11 // pred_check
          %p166 = pneg %p78
        $region14: #{tpu_custom_call.1} parent=11 // pred_check_branch
          %168 = sbr.rel (%p166) target = $region16
        $region15: #{tpu_custom_call.1} parent=11 // pred_region
          _
        $region16: #{tpu_custom_call.1} parent=11 // pred_fallthru
          _
        // Predicated region
        $region17: #{tpu_custom_call.1} parent=11 // pred_check
          %p169 = pneg %p99
        $region18: #{tpu_custom_call.1} parent=11 // pred_check_branch
          %171 = sbr.rel (%p169) target = $region20
        $region19: #{tpu_custom_call.1} parent=11 // pred_region
          _
        $region20: #{tpu_custom_call.1} parent=11 // pred_fallthru
          _
      $region12: #{tpu_custom_call.1} parent=5 // pred_fallthru
        _
      %p172 = scmp.lt.s32.totalorder %s19, 4
      // Predicated region
      $region21: #{tpu_custom_call.1} parent=5 // pred_check
        %p173 = pneg %p172
      $region22: #{tpu_custom_call.1} parent=5 // pred_check_branch
        %175 = sbr.rel (%p173) target = $region24
      $region23: #{tpu_custom_call.1} parent=5 // pred_region
        // Predicated region
        $region25: #{tpu_custom_call.1} parent=23 // pred_check
          %p176 = pneg %p51
        $region26: #{tpu_custom_call.1} parent=23 // pred_check_branch
          %178 = sbr.rel (%p176) target = $region28
        $region27: #{tpu_custom_call.1} parent=23 // pred_region
          %s179 = sand.u32 %s41, 1
          %s180 = scalar_lea.sflag [#allocation6], %s179
          %s181 = sand.u32 %s41, 1
          %s182 = smul.addr %s181, 16
          %s183 = scalar_lea.vmem [#allocation5], %s182
          %s185 = ssub.s32 256, 256
          %186 = vsyncadd %s180, %s185
          %s187 = smul.addr %s26, 2
          %s188 = smul.addr %s187, 128
          %s189 = scalar_lea.hbm %s0, %s188
          %s191 = sshll.u32 %s183, 4
          %s192 = int_to_ptr.vmem [resolvable:$true] %s191
          %194 = dma.hbm_to_vmem [thread:$0]  %s189, 256, %s192, %s180
        $region28: #{tpu_custom_call.1} parent=23 // pred_fallthru
          _
        // Predicated region
        $region29: #{tpu_custom_call.1} parent=23 // pred_check
          %p195 = pneg %p119
        $region30: #{tpu_custom_call.1} parent=23 // pred_check_branch
          %197 = sbr.rel (%p195) target = $region32
        $region31: #{tpu_custom_call.1} parent=23 // pred_region
          %s198 = sand.u32 %s109, 1
          %s199 = scalar_lea.sflag [#allocation9], %s198
          %s200 = sand.u32 %s109, 1
          %s201 = smul.addr %s200, 2048
          %s202 = scalar_lea.vmem [#allocation8], %s201
          %s203 = smul.u32 16, %s27
          %s205 = ssub.s32 32768, 32768
          %206 = vsyncadd %s199, %s205
          %s207 = smul.addr %s203, 64
          %s208 = scalar_lea.hbm %s3, %s207
          %s209 = sshll.u32 %s202, 4
          %s210 = int_to_ptr.vmem [resolvable:$true] %s209
          %215 = dma.hbm_to_vmem [thread:$0]  %s208, 32768, %s210, %s199, 2048, 1024, 64
        $region32: #{tpu_custom_call.1} parent=23 // pred_fallthru
          _
      $region24: #{tpu_custom_call.1} parent=5 // pred_fallthru
        _
      %p216 = scmp.le.s32.totalorder 1, %s19
      %p217 = scmp.lt.s32.totalorder %s19, 5
      %p218 = pnand %p216, %p217
      %p219 = pneg %p218
      // Predicated region
      $region33: #{tpu_custom_call.1} parent=5 // pred_check
        _
      $region34: #{tpu_custom_call.1} parent=5 // pred_check_branch
        %221 = sbr.rel (%p218) target = $region36
      $region35: #{tpu_custom_call.1} parent=5 // pred_region
        %s222 = ssub.s32 %s19, 1
        %s223 = sand.u32 %s44, 1
        %s224 = scalar_lea.sflag [#allocation6], %s223
        %s225 = sand.u32 %s44, 1
        %s226 = smul.addr %s225, 16
        %s227 = scalar_lea.vmem [#allocation5], %s226
        // Predicated region
        $region37: #{tpu_custom_call.1} parent=35 // pred_check
          %p228 = pneg %p57
        $region38: #{tpu_custom_call.1} parent=35 // pred_check_branch
          %230 = sbr.rel (%p228) target = $region40
        $region39: #{tpu_custom_call.1} parent=35 // pred_region
          %231 = dma.done %s224, 256
        $region40: #{tpu_custom_call.1} parent=35 // pred_fallthru
          _
        %s232 = sand.u32 %s112, 1
        %s233 = scalar_lea.sflag [#allocation9], %s232
        %s234 = sand.u32 %s112, 1
        %s235 = smul.addr %s234, 2048
        %s236 = scalar_lea.vmem [#allocation8], %s235
        // Predicated region
        $region41: #{tpu_custom_call.1} parent=35 // pred_check
          %p237 = pneg %p125
        $region42: #{tpu_custom_call.1} parent=35 // pred_check_branch
          %239 = sbr.rel (%p237) target = $region44
        $region43: #{tpu_custom_call.1} parent=35 // pred_region
          %240 = dma.done %s233, 32768
        $region44: #{tpu_custom_call.1} parent=35 // pred_fallthru
          _
        %s241 = sand.u32 %s44, 1
        %s242 = scalar_lea.sflag [#allocation6], %s241
        %s243 = sand.u32 %s44, 1
        %s244 = smul.addr %s243, 16
        %s245 = scalar_lea.vmem [#allocation5], %s244
        %p246 = pneg %p57
        %p247 = pneg %p54
        %p248 = pneg %p78
        %p249 = pneg %p75
        %p250 = pneg %p99
        %p251 = pneg %p96
        %s252 = sand.u32 %s112, 1
        %s253 = scalar_lea.sflag [#allocation9], %s252
        %s254 = sand.u32 %s112, 1
        %s255 = smul.addr %s254, 2048
        %s256 = scalar_lea.vmem [#allocation8], %s255
        %p257 = pneg %p125
        %p258 = pneg %p122
        %p259 = pneg %p151
        %p260 = pneg %p148
        %s261 = sand.u32 %s138, 1
        %s262 = scalar_lea.sflag [#allocation7], %s261
        %s263 = sand.u32 %s138, 1
        %s264 = smul.addr %s263, 32
        %s265 = scalar_lea.vmem [#allocation10], %s264
        %s266 = smul.u32 16, %s29
        %p267 = scmp.eq.s32.totalorder %s29, 0
        // Predicated region
        $region45: #{tpu_custom_call.1} parent=35 // pred_check
          %p268 = pneg %p267
        $region46: #{tpu_custom_call.1} parent=35 // pred_check_branch
          %270 = sbr.rel (%p268) target = $region48
        $region47: #{tpu_custom_call.1} parent=35 // pred_region
          %v271 = vld [vmem:[%s227] sm:$0xff]
          %v272 = vld [vmem:[%s227 + $0x8] sm:$0xff]
          %v273 = vld [vmem:[%s1] sm:$0xff]
          %v274 = vld [vmem:[%s1 + $0x8] sm:$0xff]
          %v275 = vld [vmem:[%s1 + $0x10] sm:$0xff]
          %v276 = vld [vmem:[%s1 + $0x18] sm:$0xff]
          %v277 = vld [vmem:[%s1 + $0x20] sm:$0xff]
          %v278 = vld [vmem:[%s1 + $0x28] sm:$0xff]
          %v279 = vld [vmem:[%s1 + $0x30] sm:$0xff]
          %v280 = vld [vmem:[%s1 + $0x38] sm:$0xff]
          %v281 = vld [vmem:[%s1 + $0x40] sm:$0xff]
          %v282 = vld [vmem:[%s1 + $0x48] sm:$0xff]
          %v283 = vld [vmem:[%s1 + $0x50] sm:$0xff]
          %v284 = vld [vmem:[%s2] sm:$0xff]
          %v285 = vld [vmem:[%s2 + $0x8] sm:$0xff]
          %v286 = vld [vmem:[%s2 + $0x10] sm:$0xff]
          %v287 = vld [vmem:[%s2 + $0x18] sm:$0xff]
          %v288 = vld [vmem:[%s2 + $0x20] sm:$0xff]
          %v289 = vld [vmem:[%s2 + $0x28] sm:$0xff]
          %v290 = vld [vmem:[%s2 + $0x30] sm:$0xff]
          %v291 = vld [vmem:[%s2 + $0x38] sm:$0xff]
          %v292 = vld [vmem:[%s2 + $0x40] sm:$0xff]
          %v293 = vld [vmem:[%s2 + $0x48] sm:$0xff]
          %v294 = vld [vmem:[%s2 + $0x50] sm:$0xff]
          %296 = vset.pattern.permute.xlu0 0
          %297 = vperm.xlu0 %296, %v284
          %v298 = vpop.permute.xlu0 %297
          %301 = vset.pattern.permute.xlu0 0
          %302 = vperm.xlu0 %301, %v285
          %v303 = vpop.permute.xlu0 %302
          %306 = vset.pattern.permute.xlu0 0
          %307 = vperm.xlu0 %306, %v286
          %v308 = vpop.permute.xlu0 %307
          %311 = vset.pattern.permute.xlu0 0
          %312 = vperm.xlu0 %311, %v287
          %v313 = vpop.permute.xlu0 %312
          %316 = vset.pattern.permute.xlu0 0
          %317 = vperm.xlu0 %316, %v288
          %v318 = vpop.permute.xlu0 %317
          %321 = vset.pattern.permute.xlu0 0
          %322 = vperm.xlu0 %321, %v289
          %v323 = vpop.permute.xlu0 %322
          %326 = vset.pattern.permute.xlu0 0
          %327 = vperm.xlu0 %326, %v290
          %v328 = vpop.permute.xlu0 %327
          %331 = vset.pattern.permute.xlu0 0
          %332 = vperm.xlu0 %331, %v291
          %v333 = vpop.permute.xlu0 %332
          %336 = vset.pattern.permute.xlu0 0
          %337 = vperm.xlu0 %336, %v292
          %v338 = vpop.permute.xlu0 %337
          %341 = vset.pattern.permute.xlu0 0
          %342 = vperm.xlu0 %341, %v293
          %v343 = vpop.permute.xlu0 %342
          %346 = vset.pattern.permute.xlu0 0
          %347 = vperm.xlu0 %346, %v294
          %v348 = vpop.permute.xlu0 %347
          %vm350 = vcmask 64512
          %v352 = vsel %vm350, %v273, 0
          %v355 = vsel %vm350, %v274, 0
          %v358 = vsel %vm350, %v275, 0
          %v361 = vsel %vm350, %v276, 0
          %v364 = vsel %vm350, %v277, 0
          %v367 = vsel %vm350, %v278, 0
          %v370 = vsel %vm350, %v279, 0
          %v373 = vsel %vm350, %v280, 0
          %v376 = vsel %vm350, %v281, 0
          %v379 = vsel %vm350, %v282, 0
          %v382 = vsel %vm350, %v283, 0
          %384 = vmatprep.subr.mxu0 %v272
          %385 = vmatpush1.msra.mxu0 %v271
          %386 = vmatprep.subr.mxu0 0.0
          %387 = vmatpush1.msra.mxu0 0.0
          %388 = vmatprep.subr.mxu0 0.0
          %389 = vmatpush1.msra.mxu0 0.0
          %390 = vmatprep.subr.mxu0 0.0
          %391 = vmatpush1.msra.mxu0 0.0
          %392 = vmatprep.subr.mxu0 0.0
          %393 = vmatpush1.msra.mxu0 0.0
          %394 = vmatprep.subr.mxu0 0.0
          %395 = vmatpush1.msra.mxu0 0.0
          %396 = vmatprep.subr.mxu0 0.0
          %397 = vmatpush1.msra.mxu0 0.0
          %398 = vmatprep.subr.mxu0 0.0
          %399 = vmatpush1.msra.mxu0 0.0
          %400 = vmatprep.subr.mxu0 0.0
          %401 = vmatpush1.msra.mxu0 0.0
          %402 = vmatprep.subr.mxu0 0.0
          %403 = vmatpush1.msra.mxu0 0.0
          %404 = vmatprep.subr.mxu0 0.0
          %405 = vmatpush1.msra.mxu0 0.0
          %406 = vmatprep.subr.mxu0 0.0
          %407 = vmatpush1.msra.mxu0 0.0
          %408 = vmatprep.subr.mxu0 0.0
          %409 = vmatpush1.msra.mxu0 0.0
          %410 = vmatprep.subr.mxu0 0.0
          %411 = vmatpush1.msra.mxu0 0.0
          %412 = vmatprep.subr.mxu0 0.0
          %413 = vmatpush1.msra.mxu0 0.0
          %414 = vmatprep.subr.mxu0 0.0
          %415 = vmatpush1.msra.mxu0 0.0
          %416 = vmatprep.subr.mxu0 0.0
          %417 = vmatpush1.msra.mxu0 0.0
          %418 = vmatprep.subr.mxu0 0.0
          %419 = vmatpush1.msra.mxu0 0.0
          %420 = vmatprep.subr.mxu0 0.0
          %421 = vmatpush1.msra.mxu0 0.0
          %422 = vmatprep.subr.mxu0 0.0
          %423 = vmatpush1.msra.mxu0 0.0
          %424 = vmatprep.subr.mxu0 0.0
          %425 = vmatpush1.msra.mxu0 0.0
          %426 = vmatprep.subr.mxu0 0.0
          %427 = vmatpush1.msra.mxu0 0.0
          %428 = vmatprep.subr.mxu0 0.0
          %429 = vmatpush1.msra.mxu0 0.0
          %430 = vmatprep.subr.mxu0 0.0
          %431 = vmatpush1.msra.mxu0 0.0
          %432 = vmatprep.subr.mxu0 0.0
          %433 = vmatpush1.msra.mxu0 0.0
          %434 = vmatprep.subr.mxu0 0.0
          %435 = vmatpush1.msra.mxu0 0.0
          %436 = vmatprep.subr.mxu0 0.0
          %437 = vmatpush1.msra.mxu0 0.0
          %438 = vmatprep.subr.mxu0 0.0
          %439 = vmatpush1.msra.mxu0 0.0
          %440 = vmatprep.subr.mxu0 0.0
          %441 = vmatpush1.msra.mxu0 0.0
          %442 = vmatprep.subr.mxu0 0.0
          %443 = vmatpush1.msra.mxu0 0.0
          %444 = vmatprep.subr.mxu0 0.0
          %445 = vmatpush1.msra.mxu0 0.0
          %446 = vmatprep.subr.mxu0 0.0
          %447 = vmatpush1.msra.mxu0 0.0
          %448 = vmatprep.mubr.f32.mxu0 0.0
          %449 = vmatmul.mubr.f32.gmra.mrb[0].mxu0 %v352
          %v450 = vpop.f32.mrb[0].mxu0
          %v451 = vadd.f32 %v298, %v450
          %v452 = vpop.f32.mrb[0].mxu0
          %v453 = vadd.f32 %v298, %v452
          %454 = vmatprep.mubr.f32.mxu0 0.0
          %455 = vmatmul.mubr.f32.gmra.mrb[0].mxu0 %v355
          %v456 = vpop.f32.mrb[0].mxu0
          %v457 = vadd.f32 %v303, %v456
          %v458 = vpop.f32.mrb[0].mxu0
          %v459 = vadd.f32 %v303, %v458
          %460 = vmatprep.mubr.f32.mxu0 0.0
          %461 = vmatmul.mubr.f32.gmra.mrb[0].mxu0 %v358
          %v462 = vpop.f32.mrb[0].mxu0
          %v463 = vadd.f32 %v308, %v462
          %v464 = vpop.f32.mrb[0].mxu0
          %v465 = vadd.f32 %v308, %v464
          %466 = vmatprep.mubr.f32.mxu0 0.0
          %467 = vmatmul.mubr.f32.gmra.mrb[0].mxu0 %v361
          %v468 = vpop.f32.mrb[0].mxu0
          %v469 = vadd.f32 %v313, %v468
          %v470 = vpop.f32.mrb[0].mxu0
          %v471 = vadd.f32 %v313, %v470
          %472 = vmatprep.mubr.f32.mxu0 0.0
          %473 = vmatmul.mubr.f32.gmra.mrb[0].mxu0 %v364
          %v474 = vpop.f32.mrb[0].mxu0
          %v475 = vadd.f32 %v318, %v474
          %v476 = vpop.f32.mrb[0].mxu0
          %v477 = vadd.f32 %v318, %v476
          %478 = vmatprep.mubr.f32.mxu0 0.0
          %479 = vmatmul.mubr.f32.gmra.mrb[0].mxu0 %v367
          %v480 = vpop.f32.mrb[0].mxu0
          %v481 = vadd.f32 %v323, %v480
          %v482 = vpop.f32.mrb[0].mxu0
          %v483 = vadd.f32 %v323, %v482
          %484 = vmatprep.mubr.f32.mxu0 0.0
          %485 = vmatmul.mubr.f32.gmra.mrb[0].mxu0 %v370
          %v486 = vpop.f32.mrb[0].mxu0
          %v487 = vadd.f32 %v328, %v486
          %v488 = vpop.f32.mrb[0].mxu0
          %v489 = vadd.f32 %v328, %v488
          %490 = vmatprep.mubr.f32.mxu0 0.0
          %491 = vmatmul.mubr.f32.gmra.mrb[0].mxu0 %v373
          %v492 = vpop.f32.mrb[0].mxu0
          %v493 = vadd.f32 %v333, %v492
          %v494 = vpop.f32.mrb[0].mxu0
          %v495 = vadd.f32 %v333, %v494
          %496 = vmatprep.mubr.f32.mxu0 0.0
          %497 = vmatmul.mubr.f32.gmra.mrb[0].mxu0 %v376
          %v498 = vpop.f32.mrb[0].mxu0
          %v499 = vadd.f32 %v338, %v498
          %v500 = vpop.f32.mrb[0].mxu0
          %v501 = vadd.f32 %v338, %v500
          %502 = vmatprep.mubr.f32.mxu0 0.0
          %503 = vmatmul.mubr.f32.gmra.mrb[0].mxu0 %v379
          %v504 = vpop.f32.mrb[0].mxu0
          %v505 = vadd.f32 %v343, %v504
          %v506 = vpop.f32.mrb[0].mxu0
          %v507 = vadd.f32 %v343, %v506
          %508 = vmatprep.mubr.f32.mxu0 0.0
          %509 = vmatmul.mubr.f32.gmra.mrb[0].mxu0 %v382
          %v510 = vpop.f32.mrb[0].mxu0
          %v511 = vadd.f32 %v348, %v510
          %v512 = vpop.f32.mrb[0].mxu0
          %v513 = vadd.f32 %v348, %v512
          %514 = vdwg.mxu0
          %v515 = vmax.f32 %v499, %v501
          %516 = vmax.xlane.f32.xlu0 %v515
          %v517 = vpop.xlane.xlu0 %516
          %v518 = vmax.f32 %v505, %v507
          %519 = vmax.xlane.f32.xlu0 %v518
          %v520 = vpop.xlane.xlu0 %519
          %v521 = vsub.f32 %v499, %v517
          %v522 = vsub.f32 %v501, %v517
          %v523 = vsub.f32 %v505, %v520
          %v524 = vsub.f32 %v507, %v520
          %v525 = vmul.f32 %v521, 1.442695
          %v526 = vpow.pop %v525
          %v527 = vmul.f32 %v522, 1.442695
          %v528 = vpow.pop %v527
          %v529 = vmul.f32 %v523, 1.442695
          %v530 = vpow.pop %v529
          %v531 = vmul.f32 %v524, 1.442695
          %v532 = vpow.pop %v531
          %v533 = vadd.f32 %v526, %v528
          %534 = vadd.xlane.f32.xlu0 %v533
          %v535 = vpop.xlane.xlu0 %534
          %v536 = vadd.f32 %v530, %v532
          %537 = vadd.xlane.f32.xlu0 %v536
          %v538 = vpop.xlane.xlu0 %537
          %v539 = vrcp.pop %v535
          %v540 = vrcp.pop %v538
          %v541 = vmul.f32 %v526, %v539
          %v542 = vmul.f32 %v528, %v539
          %v543 = vmul.f32 %v530, %v540
          %v544 = vmul.f32 %v532, %v540
          %545 = vmatprep.subr.mxu0 %v542
          %546 = vmatpush1.xpose.msra.mxu0 %v541
          %547 = vmatprep.subr.mxu0 %v544
          %548 = vmatpush1.xpose.msra.mxu0 %v543
          %549 = vmatprep.subr.mxu0 0.0
          %550 = vmatpush1.xpose.msra.mxu0 0.0
          %551 = vmatprep.subr.mxu0 0.0
          %552 = vmatpush1.xpose.msra.mxu0 0.0
          %553 = vmatprep.subr.mxu0 0.0
          %554 = vmatpush1.xpose.msra.mxu0 0.0
          %555 = vmatprep.subr.mxu0 0.0
          %556 = vmatpush1.xpose.msra.mxu0 0.0
          %557 = vmatprep.subr.mxu0 0.0
          %558 = vmatpush1.xpose.msra.mxu0 0.0
          %559 = vmatprep.subr.mxu0 0.0
          %560 = vmatpush1.xpose.msra.mxu0 0.0
          %561 = vmatprep.subr.mxu0 0.0
          %562 = vmatpush1.xpose.msra.mxu0 0.0
          %563 = vmatprep.subr.mxu0 0.0
          %564 = vmatpush1.xpose.msra.mxu0 0.0
          %565 = vmatprep.subr.mxu0 0.0
          %566 = vmatpush1.xpose.msra.mxu0 0.0
          %567 = vmatprep.subr.mxu0 0.0
          %568 = vmatpush1.xpose.msra.mxu0 0.0
          %569 = vmatprep.subr.mxu0 0.0
          %570 = vmatpush1.xpose.msra.mxu0 0.0
          %571 = vmatprep.subr.mxu0 0.0
          %572 = vmatpush1.xpose.msra.mxu0 0.0
          %573 = vmatprep.subr.mxu0 0.0
          %574 = vmatpush1.xpose.msra.mxu0 0.0
          %575 = vmatprep.subr.mxu0 0.0
          %576 = vmatpush1.xpose.msra.mxu0 0.0
          %577 = vmatprep.subr.mxu0 0.0
          %578 = vmatpush1.xpose.msra.mxu0 0.0
          %579 = vmatprep.subr.mxu0 0.0
          %580 = vmatpush1.xpose.msra.mxu0 0.0
          %581 = vmatprep.subr.mxu0 0.0
          %582 = vmatpush1.xpose.msra.mxu0 0.0
          %583 = vmatprep.subr.mxu0 0.0
          %584 = vmatpush1.xpose.msra.mxu0 0.0
          %585 = vmatprep.subr.mxu0 0.0
          %586 = vmatpush1.xpose.msra.mxu0 0.0
          %587 = vmatprep.subr.mxu0 0.0
          %588 = vmatpush1.xpose.msra.mxu0 0.0
          %589 = vmatprep.subr.mxu0 0.0
          %590 = vmatpush1.xpose.msra.mxu0 0.0
          %591 = vmatprep.subr.mxu0 0.0
          %592 = vmatpush1.xpose.msra.mxu0 0.0
          %593 = vmatprep.subr.mxu0 0.0
          %594 = vmatpush1.xpose.msra.mxu0 0.0
          %595 = vmatprep.subr.mxu0 0.0
          %596 = vmatpush1.xpose.msra.mxu0 0.0
          %597 = vmatprep.subr.mxu0 0.0
          %598 = vmatpush1.xpose.msra.mxu0 0.0
          %599 = vmatprep.subr.mxu0 0.0
          %600 = vmatpush1.xpose.msra.mxu0 0.0
          %601 = vmatprep.subr.mxu0 0.0
          %602 = vmatpush1.xpose.msra.mxu0 0.0
          %603 = vmatprep.subr.mxu0 0.0
          %604 = vmatpush1.xpose.msra.mxu0 0.0
          %605 = vmatprep.subr.mxu0 0.0
          %606 = vmatpush1.xpose.msra.mxu0 0.0
          %607 = vmatprep.subr.mxu0 0.0
          %608 = vmatpush1.xpose.msra.mxu0 0.0
          %609 = vmatprep.mubr.f32.mxu0 %v513
          %610 = vmatmul.mubr.f32.gmra.mrb[0].mxu0 %v511
          %v611 = vpop.f32.mrb[0].mxu0
          %v612 = vadd.f32 0.0, %v611
          %v613 = vpop.f32.mrb[0].mxu0
          %614 = vdwg.mxu0
          %vm615 = vcmask 130048
          %v617 = vsel %vm615, %v612, 0
          %619 = vmatprep.subr.mxu0 %v453
          %620 = vmatpush1.msra.mxu0 %v451
          %621 = vmatprep.subr.mxu0 %v459
          %622 = vmatpush1.msra.mxu0 %v457
          %623 = vmatprep.subr.mxu0 0.0
          %624 = vmatpush1.msra.mxu0 0.0
          %625 = vmatprep.subr.mxu0 0.0
          %626 = vmatpush1.msra.mxu0 0.0
          %627 = vmatprep.subr.mxu0 0.0
          %628 = vmatpush1.msra.mxu0 0.0
          %629 = vmatprep.subr.mxu0 0.0
          %630 = vmatpush1.msra.mxu0 0.0
          %631 = vmatprep.subr.mxu0 0.0
          %632 = vmatpush1.msra.mxu0 0.0
          %633 = vmatprep.subr.mxu0 0.0
          %634 = vmatpush1.msra.mxu0 0.0
          %635 = vmatprep.subr.mxu0 0.0
          %636 = vmatpush1.msra.mxu0 0.0
          %637 = vmatprep.subr.mxu0 0.0
          %638 = vmatpush1.msra.mxu0 0.0
          %639 = vmatprep.subr.mxu0 0.0
          %640 = vmatpush1.msra.mxu0 0.0
          %641 = vmatprep.subr.mxu0 0.0
          %642 = vmatpush1.msra.mxu0 0.0
          %643 = vmatprep.subr.mxu0 0.0
          %644 = vmatpush1.msra.mxu0 0.0
          %645 = vmatprep.subr.mxu0 0.0
          %646 = vmatpush1.msra.mxu0 0.0
          %647 = vmatprep.subr.mxu0 0.0
          %648 = vmatpush1.msra.mxu0 0.0
          %649 = vmatprep.subr.mxu0 0.0
          %650 = vmatpush1.msra.mxu0 0.0
          %651 = vmatprep.subr.mxu0 0.0
          %652 = vmatpush1.msra.mxu0 0.0
          %653 = vmatprep.subr.mxu0 0.0
          %654 = vmatpush1.msra.mxu0 0.0
          %655 = vmatprep.subr.mxu0 0.0
          %656 = vmatpush1.msra.mxu0 0.0
          %657 = vmatprep.subr.mxu0 0.0
          %658 = vmatpush1.msra.mxu0 0.0
          %659 = vmatprep.subr.mxu0 0.0
          %660 = vmatpush1.msra.mxu0 0.0
          %661 = vmatprep.subr.mxu0 0.0
          %662 = vmatpush1.msra.mxu0 0.0
          %663 = vmatprep.subr.mxu0 0.0
          %664 = vmatpush1.msra.mxu0 0.0
          %665 = vmatprep.subr.mxu0 0.0
          %666 = vmatpush1.msra.mxu0 0.0
          %667 = vmatprep.subr.mxu0 0.0
          %668 = vmatpush1.msra.mxu0 0.0
          %669 = vmatprep.subr.mxu0 0.0
          %670 = vmatpush1.msra.mxu0 0.0
          %671 = vmatprep.subr.mxu0 0.0
          %672 = vmatpush1.msra.mxu0 0.0
          %673 = vmatprep.subr.mxu0 0.0
          %674 = vmatpush1.msra.mxu0 0.0
          %675 = vmatprep.subr.mxu0 0.0
          %676 = vmatpush1.msra.mxu0 0.0
          %677 = vmatprep.subr.mxu0 0.0
          %678 = vmatpush1.msra.mxu0 0.0
          %679 = vmatprep.subr.mxu0 0.0
          %680 = vmatpush1.msra.mxu0 0.0
          %681 = vmatprep.subr.mxu0 0.0
          %682 = vmatpush1.msra.mxu0 0.0
          %683 = vmatprep.mubr.f32.mxu0 0.0
          %684 = vmatmul.mubr.f32.gmra.mrb[0].mxu0 %v617
          %v685 = vpop.f32.mrb[0].mxu0
          %v686 = vadd.f32 0.0, %v685
          %v687 = vpop.f32.mrb[0].mxu0
          %v688 = vadd.f32 0.0, %v687
          %689 = vdwg.mxu0
          %690 = vmatprep.subr.mxu0 %v465
          %691 = vmatpush1.msra.mxu0 %v463
          %692 = vmatprep.subr.mxu0 %v471
          %693 = vmatpush1.msra.mxu0 %v469
          %694 = vmatprep.subr.mxu0 0.0
          %695 = vmatpush1.msra.mxu0 0.0
          %696 = vmatprep.subr.mxu0 0.0
          %697 = vmatpush1.msra.mxu0 0.0
          %698 = vmatprep.subr.mxu0 0.0
          %699 = vmatpush1.msra.mxu0 0.0
          %700 = vmatprep.subr.mxu0 0.0
          %701 = vmatpush1.msra.mxu0 0.0
          %702 = vmatprep.subr.mxu0 0.0
          %703 = vmatpush1.msra.mxu0 0.0
          %704 = vmatprep.subr.mxu0 0.0
          %705 = vmatpush1.msra.mxu0 0.0
          %706 = vmatprep.subr.mxu0 0.0
          %707 = vmatpush1.msra.mxu0 0.0
          %708 = vmatprep.subr.mxu0 0.0
          %709 = vmatpush1.msra.mxu0 0.0
          %710 = vmatprep.subr.mxu0 0.0
          %711 = vmatpush1.msra.mxu0 0.0
          %712 = vmatprep.subr.mxu0 0.0
          %713 = vmatpush1.msra.mxu0 0.0
          %714 = vmatprep.subr.mxu0 0.0
          %715 = vmatpush1.msra.mxu0 0.0
          %716 = vmatprep.subr.mxu0 0.0
          %717 = vmatpush1.msra.mxu0 0.0
          %718 = vmatprep.subr.mxu0 0.0
          %719 = vmatpush1.msra.mxu0 0.0
          %720 = vmatprep.subr.mxu0 0.0
          %721 = vmatpush1.msra.mxu0 0.0
          %722 = vmatprep.subr.mxu0 0.0
          %723 = vmatpush1.msra.mxu0 0.0
          %724 = vmatprep.subr.mxu0 0.0
          %725 = vmatpush1.msra.mxu0 0.0
          %726 = vmatprep.subr.mxu0 0.0
          %727 = vmatpush1.msra.mxu0 0.0
          %728 = vmatprep.subr.mxu0 0.0
          %729 = vmatpush1.msra.mxu0 0.0
          %730 = vmatprep.subr.mxu0 0.0
          %731 = vmatpush1.msra.mxu0 0.0
          %732 = vmatprep.subr.mxu0 0.0
          %733 = vmatpush1.msra.mxu0 0.0
          %734 = vmatprep.subr.mxu0 0.0
          %735 = vmatpush1.msra.mxu0 0.0
          %736 = vmatprep.subr.mxu0 0.0
          %737 = vmatpush1.msra.mxu0 0.0
          %738 = vmatprep.subr.mxu0 0.0
          %739 = vmatpush1.msra.mxu0 0.0
          %740 = vmatprep.subr.mxu0 0.0
          %741 = vmatpush1.msra.mxu0 0.0
          %742 = vmatprep.subr.mxu0 0.0
          %743 = vmatpush1.msra.mxu0 0.0
          %744 = vmatprep.subr.mxu0 0.0
          %745 = vmatpush1.msra.mxu0 0.0
          %746 = vmatprep.subr.mxu0 0.0
          %747 = vmatpush1.msra.mxu0 0.0
          %748 = vmatprep.subr.mxu0 0.0
          %749 = vmatpush1.msra.mxu0 0.0
          %750 = vmatprep.subr.mxu0 0.0
          %751 = vmatpush1.msra.mxu0 0.0
          %752 = vmatprep.subr.mxu0 0.0
          %753 = vmatpush1.msra.mxu0 0.0
          %754 = vmatprep.mubr.f32.mxu0 0.0
          %755 = vmatmul.mubr.f32.gmra.mrb[0].mxu0 %v617
          %v756 = vpop.f32.mrb[0].mxu0
          %v757 = vadd.f32 0.0, %v756
          %v758 = vpop.f32.mrb[0].mxu0
          %v759 = vadd.f32 0.0, %v758
          %760 = vdwg.mxu0
          %761 = vmatprep.subr.mxu0 %v477
          %762 = vmatpush1.msra.mxu0 %v475
          %763 = vmatprep.subr.mxu0 %v483
          %764 = vmatpush1.msra.mxu0 %v481
          %765 = vmatprep.subr.mxu0 0.0
          %766 = vmatpush1.msra.mxu0 0.0
          %767 = vmatprep.subr.mxu0 0.0
          %768 = vmatpush1.msra.mxu0 0.0
          %769 = vmatprep.subr.mxu0 0.0
          %770 = vmatpush1.msra.mxu0 0.0
          %771 = vmatprep.subr.mxu0 0.0
          %772 = vmatpush1.msra.mxu0 0.0
          %773 = vmatprep.subr.mxu0 0.0
          %774 = vmatpush1.msra.mxu0 0.0
          %775 = vmatprep.subr.mxu0 0.0
          %776 = vmatpush1.msra.mxu0 0.0
          %777 = vmatprep.subr.mxu0 0.0
          %778 = vmatpush1.msra.mxu0 0.0
          %779 = vmatprep.subr.mxu0 0.0
          %780 = vmatpush1.msra.mxu0 0.0
          %781 = vmatprep.subr.mxu0 0.0
          %782 = vmatpush1.msra.mxu0 0.0
          %783 = vmatprep.subr.mxu0 0.0
          %784 = vmatpush1.msra.mxu0 0.0
          %785 = vmatprep.subr.mxu0 0.0
          %786 = vmatpush1.msra.mxu0 0.0
          %787 = vmatprep.subr.mxu0 0.0
          %788 = vmatpush1.msra.mxu0 0.0
          %789 = vmatprep.subr.mxu0 0.0
          %790 = vmatpush1.msra.mxu0 0.0
          %791 = vmatprep.subr.mxu0 0.0
          %792 = vmatpush1.msra.mxu0 0.0
          %793 = vmatprep.subr.mxu0 0.0
          %794 = vmatpush1.msra.mxu0 0.0
          %795 = vmatprep.subr.mxu0 0.0
          %796 = vmatpush1.msra.mxu0 0.0
          %797 = vmatprep.subr.mxu0 0.0
          %798 = vmatpush1.msra.mxu0 0.0
          %799 = vmatprep.subr.mxu0 0.0
          %800 = vmatpush1.msra.mxu0 0.0
          %801 = vmatprep.subr.mxu0 0.0
          %802 = vmatpush1.msra.mxu0 0.0
          %803 = vmatprep.subr.mxu0 0.0
          %804 = vmatpush1.msra.mxu0 0.0
          %805 = vmatprep.subr.mxu0 0.0
          %806 = vmatpush1.msra.mxu0 0.0
          %807 = vmatprep.subr.mxu0 0.0
          %808 = vmatpush1.msra.mxu0 0.0
          %809 = vmatprep.subr.mxu0 0.0
          %810 = vmatpush1.msra.mxu0 0.0
          %811 = vmatprep.subr.mxu0 0.0
          %812 = vmatpush1.msra.mxu0 0.0
          %813 = vmatprep.subr.mxu0 0.0
          %814 = vmatpush1.msra.mxu0 0.0
          %815 = vmatprep.subr.mxu0 0.0
          %816 = vmatpush1.msra.mxu0 0.0
          %817 = vmatprep.subr.mxu0 0.0
          %818 = vmatpush1.msra.mxu0 0.0
          %819 = vmatprep.subr.mxu0 0.0
          %820 = vmatpush1.msra.mxu0 0.0
          %821 = vmatprep.subr.mxu0 0.0
          %822 = vmatpush1.msra.mxu0 0.0
          %823 = vmatprep.subr.mxu0 0.0
          %824 = vmatpush1.msra.mxu0 0.0
          %825 = vmatprep.mubr.f32.mxu0 0.0
          %826 = vmatmul.mubr.f32.gmra.mrb[0].mxu0 %v617
          %v827 = vpop.f32.mrb[0].mxu0
          %v828 = vadd.f32 0.0, %v827
          %v829 = vpop.f32.mrb[0].mxu0
          %v830 = vadd.f32 0.0, %v829
          %831 = vdwg.mxu0
          %832 = vmatprep.subr.mxu0 %v489
          %833 = vmatpush1.msra.mxu0 %v487
          %834 = vmatprep.subr.mxu0 %v495
          %835 = vmatpush1.msra.mxu0 %v493
          %836 = vmatprep.subr.mxu0 0.0
          %837 = vmatpush1.msra.mxu0 0.0
          %838 = vmatprep.subr.mxu0 0.0
          %839 = vmatpush1.msra.mxu0 0.0
          %840 = vmatprep.subr.mxu0 0.0
          %841 = vmatpush1.msra.mxu0 0.0
          %842 = vmatprep.subr.mxu0 0.0
          %843 = vmatpush1.msra.mxu0 0.0
          %844 = vmatprep.subr.mxu0 0.0
          %845 = vmatpush1.msra.mxu0 0.0
          %846 = vmatprep.subr.mxu0 0.0
          %847 = vmatpush1.msra.mxu0 0.0
          %848 = vmatprep.subr.mxu0 0.0
          %849 = vmatpush1.msra.mxu0 0.0
          %850 = vmatprep.subr.mxu0 0.0
          %851 = vmatpush1.msra.mxu0 0.0
          %852 = vmatprep.subr.mxu0 0.0
          %853 = vmatpush1.msra.mxu0 0.0
          %854 = vmatprep.subr.mxu0 0.0
          %855 = vmatpush1.msra.mxu0 0.0
          %856 = vmatprep.subr.mxu0 0.0
          %857 = vmatpush1.msra.mxu0 0.0
          %858 = vmatprep.subr.mxu0 0.0
          %859 = vmatpush1.msra.mxu0 0.0
          %860 = vmatprep.subr.mxu0 0.0
          %861 = vmatpush1.msra.mxu0 0.0
          %862 = vmatprep.subr.mxu0 0.0
          %863 = vmatpush1.msra.mxu0 0.0
          %864 = vmatprep.subr.mxu0 0.0
          %865 = vmatpush1.msra.mxu0 0.0
          %866 = vmatprep.subr.mxu0 0.0
          %867 = vmatpush1.msra.mxu0 0.0
          %868 = vmatprep.subr.mxu0 0.0
          %869 = vmatpush1.msra.mxu0 0.0
          %870 = vmatprep.subr.mxu0 0.0
          %871 = vmatpush1.msra.mxu0 0.0
          %872 = vmatprep.subr.mxu0 0.0
          %873 = vmatpush1.msra.mxu0 0.0
          %874 = vmatprep.subr.mxu0 0.0
          %875 = vmatpush1.msra.mxu0 0.0
          %876 = vmatprep.subr.mxu0 0.0
          %877 = vmatpush1.msra.mxu0 0.0
          %878 = vmatprep.subr.mxu0 0.0
          %879 = vmatpush1.msra.mxu0 0.0
          %880 = vmatprep.subr.mxu0 0.0
          %881 = vmatpush1.msra.mxu0 0.0
          %882 = vmatprep.subr.mxu0 0.0
          %883 = vmatpush1.msra.mxu0 0.0
          %884 = vmatprep.subr.mxu0 0.0
          %885 = vmatpush1.msra.mxu0 0.0
          %886 = vmatprep.subr.mxu0 0.0
          %887 = vmatpush1.msra.mxu0 0.0
          %888 = vmatprep.subr.mxu0 0.0
          %889 = vmatpush1.msra.mxu0 0.0
          %890 = vmatprep.subr.mxu0 0.0
          %891 = vmatpush1.msra.mxu0 0.0
          %892 = vmatprep.subr.mxu0 0.0
          %893 = vmatpush1.msra.mxu0 0.0
          %894 = vmatprep.subr.mxu0 0.0
          %895 = vmatpush1.msra.mxu0 0.0
          %896 = vmatprep.mubr.f32.mxu0 0.0
          %897 = vmatmul.mubr.f32.gmra.mrb[0].mxu0 %v617
          %v898 = vpop.f32.mrb[0].mxu0
          %v899 = vadd.f32 0.0, %v898
          %v900 = vpop.f32.mrb[0].mxu0
          %v901 = vadd.f32 0.0, %v900
          %902 = vdwg.mxu0
          %v911 = vcombine.low %v686, %v688
          %v912 = vcombine.low %v757, %v759
          %v913 = vcombine.low %v828, %v830
          %v914 = vcombine.low %v899, %v901
          %919 = vst [vmem:[#allocation4] sm:$0xff] %v911
          %920 = vst [vmem:[#allocation4 + $0x8] sm:$0xff] %v912
          %921 = vst [vmem:[#allocation4 + $0x10] sm:$0xff] %v913
          %922 = vst [vmem:[#allocation4 + $0x18] sm:$0xff] %v914
          %923 = vst [vmem:[#allocation2] sm:$0xff] %v451
          %924 = vst [vmem:[#allocation2 + $0x8] sm:$0xff] %v453
          %925 = vst [vmem:[#allocation2 + $0x10] sm:$0xff] %v457
          %926 = vst [vmem:[#allocation2 + $0x18] sm:$0xff] %v459
          %927 = vst [vmem:[#allocation2 + $0x20] sm:$0xff] %v463
          %928 = vst [vmem:[#allocation2 + $0x28] sm:$0xff] %v465
          %929 = vst [vmem:[#allocation2 + $0x30] sm:$0xff] %v469
          %930 = vst [vmem:[#allocation2 + $0x38] sm:$0xff] %v471
          %931 = vst [vmem:[#allocation2 + $0x40] sm:$0xff] %v475
          %932 = vst [vmem:[#allocation2 + $0x48] sm:$0xff] %v477
          %933 = vst [vmem:[#allocation2 + $0x50] sm:$0xff] %v481
          %934 = vst [vmem:[#allocation2 + $0x58] sm:$0xff] %v483
          %935 = vst [vmem:[#allocation2 + $0x60] sm:$0xff] %v487
          %936 = vst [vmem:[#allocation2 + $0x68] sm:$0xff] %v489
          %937 = vst [vmem:[#allocation2 + $0x70] sm:$0xff] %v493
          %938 = vst [vmem:[#allocation2 + $0x78] sm:$0xff] %v495
          %v939 = vpack.c.bf16 %v511, %v511
          %v940 = vpack.c.bf16 %v513, %v513
          %v943 = vcombine.low %v939, %v940
          %v945 = vunpack.c.l.s4 1983009808
          %v946 = vunpack.c.0.s8 %v945
          %v947 = vlaneseq
          %v948 = vshrl.u32 %v947, 7
          %v949 = vsub.s32 %v946, %v948
          %v950 = vrot.slane %v943, %v949
          %952 = vst [vmem:[#allocation3] sm:$0xf] %v950
        $region48: #{tpu_custom_call.1} parent=35 // pred_fallthru
          _
        %s953 = smul.u32 %s29, 8
        %v954 = vld [vmem:[#allocation3] sm:$0xf]
        %v955 = vld [vmem:[%s236] sm:$0xff]
        %v956 = vld [vmem:[%s236 + $0x8] sm:$0xff]
        %v957 = vld [vmem:[%s236 + $0x10] sm:$0xff]
        %v958 = vld [vmem:[%s236 + $0x18] sm:$0xff]
        %v959 = vld [vmem:[%s236 + $0x20] sm:$0xff]
        %v960 = vld [vmem:[%s236 + $0x28] sm:$0xff]
        %v961 = vld [vmem:[%s236 + $0x30] sm:$0xff]
        %v962 = vld [vmem:[%s236 + $0x38] sm:$0xff]
        %v963 = vld [vmem:[%s236 + $0x40] sm:$0xff]
        %v964 = vld [vmem:[%s236 + $0x48] sm:$0xff]
        %v965 = vld [vmem:[%s236 + $0x50] sm:$0xff]
        %v966 = vld [vmem:[%s236 + $0x58] sm:$0xff]
        %v967 = vld [vmem:[%s236 + $0x60] sm:$0xff]
        %v968 = vld [vmem:[%s236 + $0x68] sm:$0xff]
        %v969 = vld [vmem:[%s236 + $0x70] sm:$0xff]
        %v970 = vld [vmem:[%s236 + $0x78] sm:$0xff]
        %v971 = vld [vmem:[%s236 + $0x80] sm:$0xff]
        %v972 = vld [vmem:[%s236 + $0x88] sm:$0xff]
        %v973 = vld [vmem:[%s236 + $0x90] sm:$0xff]
        %v974 = vld [vmem:[%s236 + $0x98] sm:$0xff]
        %v975 = vld [vmem:[%s236 + $0xa0] sm:$0xff]
        %v976 = vld [vmem:[%s236 + $0xa8] sm:$0xff]
        %v977 = vld [vmem:[%s236 + $0xb0] sm:$0xff]
        %v978 = vld [vmem:[%s236 + $0xb8] sm:$0xff]
        %v979 = vld [vmem:[%s236 + $0xc0] sm:$0xff]
        %v980 = vld [vmem:[%s236 + $0xc8] sm:$0xff]
        %v981 = vld [vmem:[%s236 + $0xd0] sm:$0xff]
        %v982 = vld [vmem:[%s236 + $0xd8] sm:$0xff]
        %v983 = vld [vmem:[%s236 + $0xe0] sm:$0xff]
        %v984 = vld [vmem:[%s236 + $0xe8] sm:$0xff]
        %v985 = vld [vmem:[%s236 + $0xf0] sm:$0xff]
        %v986 = vld [vmem:[%s236 + $0xf8] sm:$0xff]
        %v987 = vld [vmem:[%s236 + $0x100] sm:$0xff]
        %v988 = vld [vmem:[%s236 + $0x108] sm:$0xff]
        %v989 = vld [vmem:[%s236 + $0x110] sm:$0xff]
        %v990 = vld [vmem:[%s236 + $0x118] sm:$0xff]
        %v991 = vld [vmem:[%s236 + $0x120] sm:$0xff]
        %v992 = vld [vmem:[%s236 + $0x128] sm:$0xff]
        %v993 = vld [vmem:[%s236 + $0x130] sm:$0xff]
        %v994 = vld [vmem:[%s236 + $0x138] sm:$0xff]
        %v995 = vld [vmem:[%s236 + $0x140] sm:$0xff]
        %v996 = vld [vmem:[%s236 + $0x148] sm:$0xff]
        %v997 = vld [vmem:[%s236 + $0x150] sm:$0xff]
        %v998 = vld [vmem:[%s236 + $0x158] sm:$0xff]
        %v999 = vld [vmem:[%s236 + $0x160] sm:$0xff]
        %v1000 = vld [vmem:[%s236 + $0x168] sm:$0xff]
        %v1001 = vld [vmem:[%s236 + $0x170] sm:$0xff]
        %v1002 = vld [vmem:[%s236 + $0x178] sm:$0xff]
        %v1003 = vld [vmem:[%s236 + $0x180] sm:$0xff]
        %v1004 = vld [vmem:[%s236 + $0x188] sm:$0xff]
        %v1005 = vld [vmem:[%s236 + $0x190] sm:$0xff]
        %v1006 = vld [vmem:[%s236 + $0x198] sm:$0xff]
        %v1007 = vld [vmem:[%s236 + $0x1a0] sm:$0xff]
        %v1008 = vld [vmem:[%s236 + $0x1a8] sm:$0xff]
        %v1009 = vld [vmem:[%s236 + $0x1b0] sm:$0xff]
        %v1010 = vld [vmem:[%s236 + $0x1b8] sm:$0xff]
        %v1011 = vld [vmem:[%s236 + $0x1c0] sm:$0xff]
        %v1012 = vld [vmem:[%s236 + $0x1c8] sm:$0xff]
        %v1013 = vld [vmem:[%s236 + $0x1d0] sm:$0xff]
        %v1014 = vld [vmem:[%s236 + $0x1d8] sm:$0xff]
        %v1015 = vld [vmem:[%s236 + $0x1e0] sm:$0xff]
        %v1016 = vld [vmem:[%s236 + $0x1e8] sm:$0xff]
        %v1017 = vld [vmem:[%s236 + $0x1f0] sm:$0xff]
        %v1018 = vld [vmem:[%s236 + $0x1f8] sm:$0xff]
        %v1019 = vld [vmem:[%s236 + $0x200] sm:$0xff]
        %v1020 = vld [vmem:[%s236 + $0x208] sm:$0xff]
        %v1021 = vld [vmem:[%s236 + $0x210] sm:$0xff]
        %v1022 = vld [vmem:[%s236 + $0x218] sm:$0xff]
        %v1023 = vld [vmem:[%s236 + $0x220] sm:$0xff]
        %v1024 = vld [vmem:[%s236 + $0x228] sm:$0xff]
        %v1025 = vld [vmem:[%s236 + $0x230] sm:$0xff]
        %v1026 = vld [vmem:[%s236 + $0x238] sm:$0xff]
        %v1027 = vld [vmem:[%s236 + $0x240] sm:$0xff]
        %v1028 = vld [vmem:[%s236 + $0x248] sm:$0xff]
        %v1029 = vld [vmem:[%s236 + $0x250] sm:$0xff]
        %v1030 = vld [vmem:[%s236 + $0x258] sm:$0xff]
        %v1031 = vld [vmem:[%s236 + $0x260] sm:$0xff]
        %v1032 = vld [vmem:[%s236 + $0x268] sm:$0xff]
        %v1033 = vld [vmem:[%s236 + $0x270] sm:$0xff]
        %v1034 = vld [vmem:[%s236 + $0x278] sm:$0xff]
        %v1035 = vld [vmem:[%s236 + $0x280] sm:$0xff]
        %v1036 = vld [vmem:[%s236 + $0x288] sm:$0xff]
        %v1037 = vld [vmem:[%s236 + $0x290] sm:$0xff]
        %v1038 = vld [vmem:[%s236 + $0x298] sm:$0xff]
        %v1039 = vld [vmem:[%s236 + $0x2a0] sm:$0xff]
        %v1040 = vld [vmem:[%s236 + $0x2a8] sm:$0xff]
        %v1041 = vld [vmem:[%s236 + $0x2b0] sm:$0xff]
        %v1042 = vld [vmem:[%s236 + $0x2b8] sm:$0xff]
        %v1043 = vld [vmem:[%s236 + $0x2c0] sm:$0xff]
        %v1044 = vld [vmem:[%s236 + $0x2c8] sm:$0xff]
        %v1045 = vld [vmem:[%s236 + $0x2d0] sm:$0xff]
        %v1046 = vld [vmem:[%s236 + $0x2d8] sm:$0xff]
        %v1047 = vld [vmem:[%s236 + $0x2e0] sm:$0xff]
        %v1048 = vld [vmem:[%s236 + $0x2e8] sm:$0xff]
        %v1049 = vld [vmem:[%s236 + $0x2f0] sm:$0xff]
        %v1050 = vld [vmem:[%s236 + $0x2f8] sm:$0xff]
        %v1051 = vld [vmem:[%s236 + $0x300] sm:$0xff]
        %v1052 = vld [vmem:[%s236 + $0x308] sm:$0xff]
        %v1053 = vld [vmem:[%s236 + $0x310] sm:$0xff]
        %v1054 = vld [vmem:[%s236 + $0x318] sm:$0xff]
        %v1055 = vld [vmem:[%s236 + $0x320] sm:$0xff]
        %v1056 = vld [vmem:[%s236 + $0x328] sm:$0xff]
        %v1057 = vld [vmem:[%s236 + $0x330] sm:$0xff]
        %v1058 = vld [vmem:[%s236 + $0x338] sm:$0xff]
        %v1059 = vld [vmem:[%s236 + $0x340] sm:$0xff]
        %v1060 = vld [vmem:[%s236 + $0x348] sm:$0xff]
        %v1061 = vld [vmem:[%s236 + $0x350] sm:$0xff]
        %v1062 = vld [vmem:[%s236 + $0x358] sm:$0xff]
        %v1063 = vld [vmem:[%s236 + $0x360] sm:$0xff]
        %v1064 = vld [vmem:[%s236 + $0x368] sm:$0xff]
        %v1065 = vld [vmem:[%s236 + $0x370] sm:$0xff]
        %v1066 = vld [vmem:[%s236 + $0x378] sm:$0xff]
        %v1067 = vld [vmem:[%s236 + $0x380] sm:$0xff]
        %v1068 = vld [vmem:[%s236 + $0x388] sm:$0xff]
        %v1069 = vld [vmem:[%s236 + $0x390] sm:$0xff]
        %v1070 = vld [vmem:[%s236 + $0x398] sm:$0xff]
        %v1071 = vld [vmem:[%s236 + $0x3a0] sm:$0xff]
        %v1072 = vld [vmem:[%s236 + $0x3a8] sm:$0xff]
        %v1073 = vld [vmem:[%s236 + $0x3b0] sm:$0xff]
        %v1074 = vld [vmem:[%s236 + $0x3b8] sm:$0xff]
        %v1075 = vld [vmem:[%s236 + $0x3c0] sm:$0xff]
        %v1076 = vld [vmem:[%s236 + $0x3c8] sm:$0xff]
        %v1077 = vld [vmem:[%s236 + $0x3d0] sm:$0xff]
        %v1078 = vld [vmem:[%s236 + $0x3d8] sm:$0xff]
        %v1079 = vld [vmem:[%s236 + $0x3e0] sm:$0xff]
        %v1080 = vld [vmem:[%s236 + $0x3e8] sm:$0xff]
        %v1081 = vld [vmem:[%s236 + $0x3f0] sm:$0xff]
        %v1082 = vld [vmem:[%s236 + $0x3f8] sm:$0xff]
        %v1083 = vld [vmem:[%s236 + $0x400] sm:$0xff]
        %v1084 = vld [vmem:[%s236 + $0x408] sm:$0xff]
        %v1085 = vld [vmem:[%s236 + $0x410] sm:$0xff]
        %v1086 = vld [vmem:[%s236 + $0x418] sm:$0xff]
        %v1087 = vld [vmem:[%s236 + $0x420] sm:$0xff]
        %v1088 = vld [vmem:[%s236 + $0x428] sm:$0xff]
        %v1089 = vld [vmem:[%s236 + $0x430] sm:$0xff]
        %v1090 = vld [vmem:[%s236 + $0x438] sm:$0xff]
        %v1091 = vld [vmem:[%s236 + $0x440] sm:$0xff]
        %v1092 = vld [vmem:[%s236 + $0x448] sm:$0xff]
        %v1093 = vld [vmem:[%s236 + $0x450] sm:$0xff]
        %v1094 = vld [vmem:[%s236 + $0x458] sm:$0xff]
        %v1095 = vld [vmem:[%s236 + $0x460] sm:$0xff]
        %v1096 = vld [vmem:[%s236 + $0x468] sm:$0xff]
        %v1097 = vld [vmem:[%s236 + $0x470] sm:$0xff]
        %v1098 = vld [vmem:[%s236 + $0x478] sm:$0xff]
        %v1099 = vld [vmem:[%s236 + $0x480] sm:$0xff]
        %v1100 = vld [vmem:[%s236 + $0x488] sm:$0xff]
        %v1101 = vld [vmem:[%s236 + $0x490] sm:$0xff]
        %v1102 = vld [vmem:[%s236 + $0x498] sm:$0xff]
        %v1103 = vld [vmem:[%s236 + $0x4a0] sm:$0xff]
        %v1104 = vld [vmem:[%s236 + $0x4a8] sm:$0xff]
        %v1105 = vld [vmem:[%s236 + $0x4b0] sm:$0xff]
        %v1106 = vld [vmem:[%s236 + $0x4b8] sm:$0xff]
        %v1107 = vld [vmem:[%s236 + $0x4c0] sm:$0xff]
        %v1108 = vld [vmem:[%s236 + $0x4c8] sm:$0xff]
        %v1109 = vld [vmem:[%s236 + $0x4d0] sm:$0xff]
        %v1110 = vld [vmem:[%s236 + $0x4d8] sm:$0xff]
        %v1111 = vld [vmem:[%s236 + $0x4e0] sm:$0xff]
        %v1112 = vld [vmem:[%s236 + $0x4e8] sm:$0xff]
        %v1113 = vld [vmem:[%s236 + $0x4f0] sm:$0xff]
        %v1114 = vld [vmem:[%s236 + $0x4f8] sm:$0xff]
        %v1115 = vld [vmem:[%s236 + $0x500] sm:$0xff]
        %v1116 = vld [vmem:[%s236 + $0x508] sm:$0xff]
        %v1117 = vld [vmem:[%s236 + $0x510] sm:$0xff]
        %v1118 = vld [vmem:[%s236 + $0x518] sm:$0xff]
        %v1119 = vld [vmem:[%s236 + $0x520] sm:$0xff]
        %v1120 = vld [vmem:[%s236 + $0x528] sm:$0xff]
        %v1121 = vld [vmem:[%s236 + $0x530] sm:$0xff]
        %v1122 = vld [vmem:[%s236 + $0x538] sm:$0xff]
        %v1123 = vld [vmem:[%s236 + $0x540] sm:$0xff]
        %v1124 = vld [vmem:[%s236 + $0x548] sm:$0xff]
        %v1125 = vld [vmem:[%s236 + $0x550] sm:$0xff]
        %v1126 = vld [vmem:[%s236 + $0x558] sm:$0xff]
        %v1127 = vld [vmem:[%s236 + $0x560] sm:$0xff]
        %v1128 = vld [vmem:[%s236 + $0x568] sm:$0xff]
        %v1129 = vld [vmem:[%s236 + $0x570] sm:$0xff]
        %v1130 = vld [vmem:[%s236 + $0x578] sm:$0xff]
        %v1131 = vld [vmem:[%s236 + $0x580] sm:$0xff]
        %v1132 = vld [vmem:[%s236 + $0x588] sm:$0xff]
        %v1133 = vld [vmem:[%s236 + $0x590] sm:$0xff]
        %v1134 = vld [vmem:[%s236 + $0x598] sm:$0xff]
        %v1135 = vld [vmem:[%s236 + $0x5a0] sm:$0xff]
        %v1136 = vld [vmem:[%s236 + $0x5a8] sm:$0xff]
        %v1137 = vld [vmem:[%s236 + $0x5b0] sm:$0xff]
        %v1138 = vld [vmem:[%s236 + $0x5b8] sm:$0xff]
        %v1139 = vld [vmem:[%s236 + $0x5c0] sm:$0xff]
        %v1140 = vld [vmem:[%s236 + $0x5c8] sm:$0xff]
        %v1141 = vld [vmem:[%s236 + $0x5d0] sm:$0xff]
        %v1142 = vld [vmem:[%s236 + $0x5d8] sm:$0xff]
        %v1143 = vld [vmem:[%s236 + $0x5e0] sm:$0xff]
        %v1144 = vld [vmem:[%s236 + $0x5e8] sm:$0xff]
        %v1145 = vld [vmem:[%s236 + $0x5f0] sm:$0xff]
        %v1146 = vld [vmem:[%s236 + $0x5f8] sm:$0xff]
        %v1147 = vld [vmem:[%s236 + $0x600] sm:$0xff]
        %v1148 = vld [vmem:[%s236 + $0x608] sm:$0xff]
        %v1149 = vld [vmem:[%s236 + $0x610] sm:$0xff]
        %v1150 = vld [vmem:[%s236 + $0x618] sm:$0xff]
        %v1151 = vld [vmem:[%s236 + $0x620] sm:$0xff]
        %v1152 = vld [vmem:[%s236 + $0x628] sm:$0xff]
        %v1153 = vld [vmem:[%s236 + $0x630] sm:$0xff]
        %v1154 = vld [vmem:[%s236 + $0x638] sm:$0xff]
        %v1155 = vld [vmem:[%s236 + $0x640] sm:$0xff]
        %v1156 = vld [vmem:[%s236 + $0x648] sm:$0xff]
        %v1157 = vld [vmem:[%s236 + $0x650] sm:$0xff]
        %v1158 = vld [vmem:[%s236 + $0x658] sm:$0xff]
        %v1159 = vld [vmem:[%s236 + $0x660] sm:$0xff]
        %v1160 = vld [vmem:[%s236 + $0x668] sm:$0xff]
        %v1161 = vld [vmem:[%s236 + $0x670] sm:$0xff]
        %v1162 = vld [vmem:[%s236 + $0x678] sm:$0xff]
        %v1163 = vld [vmem:[%s236 + $0x680] sm:$0xff]
        %v1164 = vld [vmem:[%s236 + $0x688] sm:$0xff]
        %v1165 = vld [vmem:[%s236 + $0x690] sm:$0xff]
        %v1166 = vld [vmem:[%s236 + $0x698] sm:$0xff]
        %v1167 = vld [vmem:[%s236 + $0x6a0] sm:$0xff]
        %v1168 = vld [vmem:[%s236 + $0x6a8] sm:$0xff]
        %v1169 = vld [vmem:[%s236 + $0x6b0] sm:$0xff]
        %v1170 = vld [vmem:[%s236 + $0x6b8] sm:$0xff]
        %v1171 = vld [vmem:[%s236 + $0x6c0] sm:$0xff]
        %v1172 = vld [vmem:[%s236 + $0x6c8] sm:$0xff]
        %v1173 = vld [vmem:[%s236 + $0x6d0] sm:$0xff]
        %v1174 = vld [vmem:[%s236 + $0x6d8] sm:$0xff]
        %v1175 = vld [vmem:[%s236 + $0x6e0] sm:$0xff]
        %v1176 = vld [vmem:[%s236 + $0x6e8] sm:$0xff]
        %v1177 = vld [vmem:[%s236 + $0x6f0] sm:$0xff]
        %v1178 = vld [vmem:[%s236 + $0x6f8] sm:$0xff]
        %v1179 = vld [vmem:[%s236 + $0x700] sm:$0xff]
        %v1180 = vld [vmem:[%s236 + $0x708] sm:$0xff]
        %v1181 = vld [vmem:[%s236 + $0x710] sm:$0xff]
        %v1182 = vld [vmem:[%s236 + $0x718] sm:$0xff]
        %v1183 = vld [vmem:[%s236 + $0x720] sm:$0xff]
        %v1184 = vld [vmem:[%s236 + $0x728] sm:$0xff]
        %v1185 = vld [vmem:[%s236 + $0x730] sm:$0xff]
        %v1186 = vld [vmem:[%s236 + $0x738] sm:$0xff]
        %v1187 = vld [vmem:[%s236 + $0x740] sm:$0xff]
        %v1188 = vld [vmem:[%s236 + $0x748] sm:$0xff]
        %v1189 = vld [vmem:[%s236 + $0x750] sm:$0xff]
        %v1190 = vld [vmem:[%s236 + $0x758] sm:$0xff]
        %v1191 = vld [vmem:[%s236 + $0x760] sm:$0xff]
        %v1192 = vld [vmem:[%s236 + $0x768] sm:$0xff]
        %v1193 = vld [vmem:[%s236 + $0x770] sm:$0xff]
        %v1194 = vld [vmem:[%s236 + $0x778] sm:$0xff]
        %v1195 = vld [vmem:[%s236 + $0x780] sm:$0xff]
        %v1196 = vld [vmem:[%s236 + $0x788] sm:$0xff]
        %v1197 = vld [vmem:[%s236 + $0x790] sm:$0xff]
        %v1198 = vld [vmem:[%s236 + $0x798] sm:$0xff]
        %v1199 = vld [vmem:[%s236 + $0x7a0] sm:$0xff]
        %v1200 = vld [vmem:[%s236 + $0x7a8] sm:$0xff]
        %v1201 = vld [vmem:[%s236 + $0x7b0] sm:$0xff]
        %v1202 = vld [vmem:[%s236 + $0x7b8] sm:$0xff]
        %v1203 = vld [vmem:[%s236 + $0x7c0] sm:$0xff]
        %v1204 = vld [vmem:[%s236 + $0x7c8] sm:$0xff]
        %v1205 = vld [vmem:[%s236 + $0x7d0] sm:$0xff]
        %v1206 = vld [vmem:[%s236 + $0x7d8] sm:$0xff]
        %v1207 = vld [vmem:[%s236 + $0x7e0] sm:$0xff]
        %v1208 = vld [vmem:[%s236 + $0x7e8] sm:$0xff]
        %v1209 = vld [vmem:[%s236 + $0x7f0] sm:$0xff]
        %v1210 = vld [vmem:[%s236 + $0x7f8] sm:$0xff]
        %v1213 = vunpack.c.l.s4 1983009808
        %v1214 = vunpack.c.0.s8 %v1213
        %v1215 = vlaneseq
        %v1216 = vshrl.u32 %v1215, 7
        %v1217 = vsub.s32 %v1214, %v1216
        %v1218 = vrot.slane %v954, %v1217
        %v1219 = vcombine.high %v1218, %v1218
        %v1478 = vunpack.c.l.b16 %v955
        %v1479 = vunpack.c.h.b16 %v955
        %v1480 = vunpack.c.l.b16 %v956
        %v1481 = vunpack.c.h.b16 %v956
        %v1482 = vunpack.c.l.b16 %v957
        %v1483 = vunpack.c.h.b16 %v957
        %v1484 = vunpack.c.l.b16 %v958
        %v1485 = vunpack.c.h.b16 %v958
        %v1486 = vunpack.c.l.b16 %v959
        %v1487 = vunpack.c.h.b16 %v959
        %v1488 = vunpack.c.l.b16 %v960
        %v1489 = vunpack.c.h.b16 %v960
        %v1490 = vunpack.c.l.b16 %v961
        %v1491 = vunpack.c.h.b16 %v961
        %v1492 = vunpack.c.l.b16 %v962
        %v1493 = vunpack.c.h.b16 %v962
        %v1494 = vunpack.c.l.b16 %v963
        %v1495 = vunpack.c.h.b16 %v963
        %v1496 = vunpack.c.l.b16 %v964
        %v1497 = vunpack.c.h.b16 %v964
        %v1498 = vunpack.c.l.b16 %v965
        %v1499 = vunpack.c.h.b16 %v965
        %v1500 = vunpack.c.l.b16 %v966
        %v1501 = vunpack.c.h.b16 %v966
        %v1502 = vunpack.c.l.b16 %v967
        %v1503 = vunpack.c.h.b16 %v967
        %v1504 = vunpack.c.l.b16 %v968
        %v1505 = vunpack.c.h.b16 %v968
        %v1506 = vunpack.c.l.b16 %v969
        %v1507 = vunpack.c.h.b16 %v969
        %v1508 = vunpack.c.l.b16 %v970
        %v1509 = vunpack.c.h.b16 %v970
        %v1510 = vunpack.c.l.b16 %v971
        %v1511 = vunpack.c.h.b16 %v971
        %v1512 = vunpack.c.l.b16 %v972
        %v1513 = vunpack.c.h.b16 %v972
        %v1514 = vunpack.c.l.b16 %v973
        %v1515 = vunpack.c.h.b16 %v973
        %v1516 = vunpack.c.l.b16 %v974
        %v1517 = vunpack.c.h.b16 %v974
        %v1518 = vunpack.c.l.b16 %v975
        %v1519 = vunpack.c.h.b16 %v975
        %v1520 = vunpack.c.l.b16 %v976
        %v1521 = vunpack.c.h.b16 %v976
        %v1522 = vunpack.c.l.b16 %v977
        %v1523 = vunpack.c.h.b16 %v977
        %v1524 = vunpack.c.l.b16 %v978
        %v1525 = vunpack.c.h.b16 %v978
        %v1526 = vunpack.c.l.b16 %v979
        %v1527 = vunpack.c.h.b16 %v979
        %v1528 = vunpack.c.l.b16 %v980
        %v1529 = vunpack.c.h.b16 %v980
        %v1530 = vunpack.c.l.b16 %v981
        %v1531 = vunpack.c.h.b16 %v981
        %v1532 = vunpack.c.l.b16 %v982
        %v1533 = vunpack.c.h.b16 %v982
        %v1534 = vunpack.c.l.b16 %v983
        %v1535 = vunpack.c.h.b16 %v983
        %v1536 = vunpack.c.l.b16 %v984
        %v1537 = vunpack.c.h.b16 %v984
        %v1538 = vunpack.c.l.b16 %v985
        %v1539 = vunpack.c.h.b16 %v985
        %v1540 = vunpack.c.l.b16 %v986
        %v1541 = vunpack.c.h.b16 %v986
        %v1542 = vunpack.c.l.b16 %v987
        %v1543 = vunpack.c.h.b16 %v987
        %v1544 = vunpack.c.l.b16 %v988
        %v1545 = vunpack.c.h.b16 %v988
        %v1546 = vunpack.c.l.b16 %v989
        %v1547 = vunpack.c.h.b16 %v989
        %v1548 = vunpack.c.l.b16 %v990
        %v1549 = vunpack.c.h.b16 %v990
        %v1550 = vunpack.c.l.b16 %v991
        %v1551 = vunpack.c.h.b16 %v991
        %v1552 = vunpack.c.l.b16 %v992
        %v1553 = vunpack.c.h.b16 %v992
        %v1554 = vunpack.c.l.b16 %v993
        %v1555 = vunpack.c.h.b16 %v993
        %v1556 = vunpack.c.l.b16 %v994
        %v1557 = vunpack.c.h.b16 %v994
        %v1558 = vunpack.c.l.b16 %v995
        %v1559 = vunpack.c.h.b16 %v995
        %v1560 = vunpack.c.l.b16 %v996
        %v1561 = vunpack.c.h.b16 %v996
        %v1562 = vunpack.c.l.b16 %v997
        %v1563 = vunpack.c.h.b16 %v997
        %v1564 = vunpack.c.l.b16 %v998
        %v1565 = vunpack.c.h.b16 %v998
        %v1566 = vunpack.c.l.b16 %v999
        %v1567 = vunpack.c.h.b16 %v999
        %v1568 = vunpack.c.l.b16 %v1000
        %v1569 = vunpack.c.h.b16 %v1000
        %v1570 = vunpack.c.l.b16 %v1001
        %v1571 = vunpack.c.h.b16 %v1001
        %v1572 = vunpack.c.l.b16 %v1002
        %v1573 = vunpack.c.h.b16 %v1002
        %v1574 = vunpack.c.l.b16 %v1003
        %v1575 = vunpack.c.h.b16 %v1003
        %v1576 = vunpack.c.l.b16 %v1004
        %v1577 = vunpack.c.h.b16 %v1004
        %v1578 = vunpack.c.l.b16 %v1005
        %v1579 = vunpack.c.h.b16 %v1005
        %v1580 = vunpack.c.l.b16 %v1006
        %v1581 = vunpack.c.h.b16 %v1006
        %v1582 = vunpack.c.l.b16 %v1007
        %v1583 = vunpack.c.h.b16 %v1007
        %v1584 = vunpack.c.l.b16 %v1008
        %v1585 = vunpack.c.h.b16 %v1008
        %v1586 = vunpack.c.l.b16 %v1009
        %v1587 = vunpack.c.h.b16 %v1009
        %v1588 = vunpack.c.l.b16 %v1010
        %v1589 = vunpack.c.h.b16 %v1010
        %v1590 = vunpack.c.l.b16 %v1011
        %v1591 = vunpack.c.h.b16 %v1011
        %v1592 = vunpack.c.l.b16 %v1012
        %v1593 = vunpack.c.h.b16 %v1012
        %v1594 = vunpack.c.l.b16 %v1013
        %v1595 = vunpack.c.h.b16 %v1013
        %v1596 = vunpack.c.l.b16 %v1014
        %v1597 = vunpack.c.h.b16 %v1014
        %v1598 = vunpack.c.l.b16 %v1015
        %v1599 = vunpack.c.h.b16 %v1015
        %v1600 = vunpack.c.l.b16 %v1016
        %v1601 = vunpack.c.h.b16 %v1016
        %v1602 = vunpack.c.l.b16 %v1017
        %v1603 = vunpack.c.h.b16 %v1017
        %v1604 = vunpack.c.l.b16 %v1018
        %v1605 = vunpack.c.h.b16 %v1018
        %v1606 = vunpack.c.l.b16 %v1019
        %v1607 = vunpack.c.h.b16 %v1019
        %v1608 = vunpack.c.l.b16 %v1020
        %v1609 = vunpack.c.h.b16 %v1020
        %v1610 = vunpack.c.l.b16 %v1021
        %v1611 = vunpack.c.h.b16 %v1021
        %v1612 = vunpack.c.l.b16 %v1022
        %v1613 = vunpack.c.h.b16 %v1022
        %v1614 = vunpack.c.l.b16 %v1023
        %v1615 = vunpack.c.h.b16 %v1023
        %v1616 = vunpack.c.l.b16 %v1024
        %v1617 = vunpack.c.h.b16 %v1024
        %v1618 = vunpack.c.l.b16 %v1025
        %v1619 = vunpack.c.h.b16 %v1025
        %v1620 = vunpack.c.l.b16 %v1026
        %v1621 = vunpack.c.h.b16 %v1026
        %v1622 = vunpack.c.l.b16 %v1027
        %v1623 = vunpack.c.h.b16 %v1027
        %v1624 = vunpack.c.l.b16 %v1028
        %v1625 = vunpack.c.h.b16 %v1028
        %v1626 = vunpack.c.l.b16 %v1029
        %v1627 = vunpack.c.h.b16 %v1029
        %v1628 = vunpack.c.l.b16 %v1030
        %v1629 = vunpack.c.h.b16 %v1030
        %v1630 = vunpack.c.l.b16 %v1031
        %v1631 = vunpack.c.h.b16 %v1031
        %v1632 = vunpack.c.l.b16 %v1032
        %v1633 = vunpack.c.h.b16 %v1032
        %v1634 = vunpack.c.l.b16 %v1033
        %v1635 = vunpack.c.h.b16 %v1033
        %v1636 = vunpack.c.l.b16 %v1034
        %v1637 = vunpack.c.h.b16 %v1034
        %v1638 = vunpack.c.l.b16 %v1035
        %v1639 = vunpack.c.h.b16 %v1035
        %v1640 = vunpack.c.l.b16 %v1036
        %v1641 = vunpack.c.h.b16 %v1036
        %v1642 = vunpack.c.l.b16 %v1037
        %v1643 = vunpack.c.h.b16 %v1037
        %v1644 = vunpack.c.l.b16 %v1038
        %v1645 = vunpack.c.h.b16 %v1038
        %v1646 = vunpack.c.l.b16 %v1039
        %v1647 = vunpack.c.h.b16 %v1039
        %v1648 = vunpack.c.l.b16 %v1040
        %v1649 = vunpack.c.h.b16 %v1040
        %v1650 = vunpack.c.l.b16 %v1041
        %v1651 = vunpack.c.h.b16 %v1041
        %v1652 = vunpack.c.l.b16 %v1042
        %v1653 = vunpack.c.h.b16 %v1042
        %v1654 = vunpack.c.l.b16 %v1043
        %v1655 = vunpack.c.h.b16 %v1043
        %v1656 = vunpack.c.l.b16 %v1044
        %v1657 = vunpack.c.h.b16 %v1044
        %v1658 = vunpack.c.l.b16 %v1045
        %v1659 = vunpack.c.h.b16 %v1045
        %v1660 = vunpack.c.l.b16 %v1046
        %v1661 = vunpack.c.h.b16 %v1046
        %v1662 = vunpack.c.l.b16 %v1047
        %v1663 = vunpack.c.h.b16 %v1047
        %v1664 = vunpack.c.l.b16 %v1048
        %v1665 = vunpack.c.h.b16 %v1048
        %v1666 = vunpack.c.l.b16 %v1049
        %v1667 = vunpack.c.h.b16 %v1049
        %v1668 = vunpack.c.l.b16 %v1050
        %v1669 = vunpack.c.h.b16 %v1050
        %v1670 = vunpack.c.l.b16 %v1051
        %v1671 = vunpack.c.h.b16 %v1051
        %v1672 = vunpack.c.l.b16 %v1052
        %v1673 = vunpack.c.h.b16 %v1052
        %v1674 = vunpack.c.l.b16 %v1053
        %v1675 = vunpack.c.h.b16 %v1053
        %v1676 = vunpack.c.l.b16 %v1054
        %v1677 = vunpack.c.h.b16 %v1054
        %v1678 = vunpack.c.l.b16 %v1055
        %v1679 = vunpack.c.h.b16 %v1055
        %v1680 = vunpack.c.l.b16 %v1056
        %v1681 = vunpack.c.h.b16 %v1056
        %v1682 = vunpack.c.l.b16 %v1057
        %v1683 = vunpack.c.h.b16 %v1057
        %v1684 = vunpack.c.l.b16 %v1058
        %v1685 = vunpack.c.h.b16 %v1058
        %v1686 = vunpack.c.l.b16 %v1059
        %v1687 = vunpack.c.h.b16 %v1059
        %v1688 = vunpack.c.l.b16 %v1060
        %v1689 = vunpack.c.h.b16 %v1060
        %v1690 = vunpack.c.l.b16 %v1061
        %v1691 = vunpack.c.h.b16 %v1061
        %v1692 = vunpack.c.l.b16 %v1062
        %v1693 = vunpack.c.h.b16 %v1062
        %v1694 = vunpack.c.l.b16 %v1063
        %v1695 = vunpack.c.h.b16 %v1063
        %v1696 = vunpack.c.l.b16 %v1064
        %v1697 = vunpack.c.h.b16 %v1064
        %v1698 = vunpack.c.l.b16 %v1065
        %v1699 = vunpack.c.h.b16 %v1065
        %v1700 = vunpack.c.l.b16 %v1066
        %v1701 = vunpack.c.h.b16 %v1066
        %v1702 = vunpack.c.l.b16 %v1067
        %v1703 = vunpack.c.h.b16 %v1067
        %v1704 = vunpack.c.l.b16 %v1068
        %v1705 = vunpack.c.h.b16 %v1068
        %v1706 = vunpack.c.l.b16 %v1069
        %v1707 = vunpack.c.h.b16 %v1069
        %v1708 = vunpack.c.l.b16 %v1070
        %v1709 = vunpack.c.h.b16 %v1070
        %v1710 = vunpack.c.l.b16 %v1071
        %v1711 = vunpack.c.h.b16 %v1071
        %v1712 = vunpack.c.l.b16 %v1072
        %v1713 = vunpack.c.h.b16 %v1072
        %v1714 = vunpack.c.l.b16 %v1073
        %v1715 = vunpack.c.h.b16 %v1073
        %v1716 = vunpack.c.l.b16 %v1074
        %v1717 = vunpack.c.h.b16 %v1074
        %v1718 = vunpack.c.l.b16 %v1075
        %v1719 = vunpack.c.h.b16 %v1075
        %v1720 = vunpack.c.l.b16 %v1076
        %v1721 = vunpack.c.h.b16 %v1076
        %v1722 = vunpack.c.l.b16 %v1077
        %v1723 = vunpack.c.h.b16 %v1077
        %v1724 = vunpack.c.l.b16 %v1078
        %v1725 = vunpack.c.h.b16 %v1078
        %v1726 = vunpack.c.l.b16 %v1079
        %v1727 = vunpack.c.h.b16 %v1079
        %v1728 = vunpack.c.l.b16 %v1080
        %v1729 = vunpack.c.h.b16 %v1080
        %v1730 = vunpack.c.l.b16 %v1081
        %v1731 = vunpack.c.h.b16 %v1081
        %v1732 = vunpack.c.l.b16 %v1082
        %v1733 = vunpack.c.h.b16 %v1082
        %v1734 = vunpack.c.l.b16 %v1083
        %v1735 = vunpack.c.h.b16 %v1083
        %v1736 = vunpack.c.l.b16 %v1084
        %v1737 = vunpack.c.h.b16 %v1084
        %v1738 = vunpack.c.l.b16 %v1085
        %v1739 = vunpack.c.h.b16 %v1085
        %v1740 = vunpack.c.l.b16 %v1086
        %v1741 = vunpack.c.h.b16 %v1086
        %v1742 = vunpack.c.l.b16 %v1087
        %v1743 = vunpack.c.h.b16 %v1087
        %v1744 = vunpack.c.l.b16 %v1088
        %v1745 = vunpack.c.h.b16 %v1088
        %v1746 = vunpack.c.l.b16 %v1089
        %v1747 = vunpack.c.h.b16 %v1089
        %v1748 = vunpack.c.l.b16 %v1090
        %v1749 = vunpack.c.h.b16 %v1090
        %v1750 = vunpack.c.l.b16 %v1091
        %v1751 = vunpack.c.h.b16 %v1091
        %v1752 = vunpack.c.l.b16 %v1092
        %v1753 = vunpack.c.h.b16 %v1092
        %v1754 = vunpack.c.l.b16 %v1093
        %v1755 = vunpack.c.h.b16 %v1093
        %v1756 = vunpack.c.l.b16 %v1094
        %v1757 = vunpack.c.h.b16 %v1094
        %v1758 = vunpack.c.l.b16 %v1095
        %v1759 = vunpack.c.h.b16 %v1095
        %v1760 = vunpack.c.l.b16 %v1096
        %v1761 = vunpack.c.h.b16 %v1096
        %v1762 = vunpack.c.l.b16 %v1097
        %v1763 = vunpack.c.h.b16 %v1097
        %v1764 = vunpack.c.l.b16 %v1098
        %v1765 = vunpack.c.h.b16 %v1098
        %v1766 = vunpack.c.l.b16 %v1099
        %v1767 = vunpack.c.h.b16 %v1099
        %v1768 = vunpack.c.l.b16 %v1100
        %v1769 = vunpack.c.h.b16 %v1100
        %v1770 = vunpack.c.l.b16 %v1101
        %v1771 = vunpack.c.h.b16 %v1101
        %v1772 = vunpack.c.l.b16 %v1102
        %v1773 = vunpack.c.h.b16 %v1102
        %v1774 = vunpack.c.l.b16 %v1103
        %v1775 = vunpack.c.h.b16 %v1103
        %v1776 = vunpack.c.l.b16 %v1104
        %v1777 = vunpack.c.h.b16 %v1104
        %v1778 = vunpack.c.l.b16 %v1105
        %v1779 = vunpack.c.h.b16 %v1105
        %v1780 = vunpack.c.l.b16 %v1106
        %v1781 = vunpack.c.h.b16 %v1106
        %v1782 = vunpack.c.l.b16 %v1107
        %v1783 = vunpack.c.h.b16 %v1107
        %v1784 = vunpack.c.l.b16 %v1108
        %v1785 = vunpack.c.h.b16 %v1108
        %v1786 = vunpack.c.l.b16 %v1109
        %v1787 = vunpack.c.h.b16 %v1109
        %v1788 = vunpack.c.l.b16 %v1110
        %v1789 = vunpack.c.h.b16 %v1110
        %v1790 = vunpack.c.l.b16 %v1111
        %v1791 = vunpack.c.h.b16 %v1111
        %v1792 = vunpack.c.l.b16 %v1112
        %v1793 = vunpack.c.h.b16 %v1112
        %v1794 = vunpack.c.l.b16 %v1113
        %v1795 = vunpack.c.h.b16 %v1113
        %v1796 = vunpack.c.l.b16 %v1114
        %v1797 = vunpack.c.h.b16 %v1114
        %v1798 = vunpack.c.l.b16 %v1115
        %v1799 = vunpack.c.h.b16 %v1115
        %v1800 = vunpack.c.l.b16 %v1116
        %v1801 = vunpack.c.h.b16 %v1116
        %v1802 = vunpack.c.l.b16 %v1117
        %v1803 = vunpack.c.h.b16 %v1117
        %v1804 = vunpack.c.l.b16 %v1118
        %v1805 = vunpack.c.h.b16 %v1118
        %v1806 = vunpack.c.l.b16 %v1119
        %v1807 = vunpack.c.h.b16 %v1119
        %v1808 = vunpack.c.l.b16 %v1120
        %v1809 = vunpack.c.h.b16 %v1120
        %v1810 = vunpack.c.l.b16 %v1121
        %v1811 = vunpack.c.h.b16 %v1121
        %v1812 = vunpack.c.l.b16 %v1122
        %v1813 = vunpack.c.h.b16 %v1122
        %v1814 = vunpack.c.l.b16 %v1123
        %v1815 = vunpack.c.h.b16 %v1123
        %v1816 = vunpack.c.l.b16 %v1124
        %v1817 = vunpack.c.h.b16 %v1124
        %v1818 = vunpack.c.l.b16 %v1125
        %v1819 = vunpack.c.h.b16 %v1125
        %v1820 = vunpack.c.l.b16 %v1126
        %v1821 = vunpack.c.h.b16 %v1126
        %v1822 = vunpack.c.l.b16 %v1127
        %v1823 = vunpack.c.h.b16 %v1127
        %v1824 = vunpack.c.l.b16 %v1128
        %v1825 = vunpack.c.h.b16 %v1128
        %v1826 = vunpack.c.l.b16 %v1129
        %v1827 = vunpack.c.h.b16 %v1129
        %v1828 = vunpack.c.l.b16 %v1130
        %v1829 = vunpack.c.h.b16 %v1130
        %v1830 = vunpack.c.l.b16 %v1131
        %v1831 = vunpack.c.h.b16 %v1131
        %v1832 = vunpack.c.l.b16 %v1132
        %v1833 = vunpack.c.h.b16 %v1132
        %v1834 = vunpack.c.l.b16 %v1133
        %v1835 = vunpack.c.h.b16 %v1133
        %v1836 = vunpack.c.l.b16 %v1134
        %v1837 = vunpack.c.h.b16 %v1134
        %v1838 = vunpack.c.l.b16 %v1135
        %v1839 = vunpack.c.h.b16 %v1135
        %v1840 = vunpack.c.l.b16 %v1136
        %v1841 = vunpack.c.h.b16 %v1136
        %v1842 = vunpack.c.l.b16 %v1137
        %v1843 = vunpack.c.h.b16 %v1137
        %v1844 = vunpack.c.l.b16 %v1138
        %v1845 = vunpack.c.h.b16 %v1138
        %v1846 = vunpack.c.l.b16 %v1139
        %v1847 = vunpack.c.h.b16 %v1139
        %v1848 = vunpack.c.l.b16 %v1140
        %v1849 = vunpack.c.h.b16 %v1140
        %v1850 = vunpack.c.l.b16 %v1141
        %v1851 = vunpack.c.h.b16 %v1141
        %v1852 = vunpack.c.l.b16 %v1142
        %v1853 = vunpack.c.h.b16 %v1142
        %v1854 = vunpack.c.l.b16 %v1143
        %v1855 = vunpack.c.h.b16 %v1143
        %v1856 = vunpack.c.l.b16 %v1144
        %v1857 = vunpack.c.h.b16 %v1144
        %v1858 = vunpack.c.l.b16 %v1145
        %v1859 = vunpack.c.h.b16 %v1145
        %v1860 = vunpack.c.l.b16 %v1146
        %v1861 = vunpack.c.h.b16 %v1146
        %v1862 = vunpack.c.l.b16 %v1147
        %v1863 = vunpack.c.h.b16 %v1147
        %v1864 = vunpack.c.l.b16 %v1148
        %v1865 = vunpack.c.h.b16 %v1148
        %v1866 = vunpack.c.l.b16 %v1149
        %v1867 = vunpack.c.h.b16 %v1149
        %v1868 = vunpack.c.l.b16 %v1150
        %v1869 = vunpack.c.h.b16 %v1150
        %v1870 = vunpack.c.l.b16 %v1151
        %v1871 = vunpack.c.h.b16 %v1151
        %v1872 = vunpack.c.l.b16 %v1152
        %v1873 = vunpack.c.h.b16 %v1152
        %v1874 = vunpack.c.l.b16 %v1153
        %v1875 = vunpack.c.h.b16 %v1153
        %v1876 = vunpack.c.l.b16 %v1154
        %v1877 = vunpack.c.h.b16 %v1154
        %v1878 = vunpack.c.l.b16 %v1155
        %v1879 = vunpack.c.h.b16 %v1155
        %v1880 = vunpack.c.l.b16 %v1156
        %v1881 = vunpack.c.h.b16 %v1156
        %v1882 = vunpack.c.l.b16 %v1157
        %v1883 = vunpack.c.h.b16 %v1157
        %v1884 = vunpack.c.l.b16 %v1158
        %v1885 = vunpack.c.h.b16 %v1158
        %v1886 = vunpack.c.l.b16 %v1159
        %v1887 = vunpack.c.h.b16 %v1159
        %v1888 = vunpack.c.l.b16 %v1160
        %v1889 = vunpack.c.h.b16 %v1160
        %v1890 = vunpack.c.l.b16 %v1161
        %v1891 = vunpack.c.h.b16 %v1161
        %v1892 = vunpack.c.l.b16 %v1162
        %v1893 = vunpack.c.h.b16 %v1162
        %v1894 = vunpack.c.l.b16 %v1163
        %v1895 = vunpack.c.h.b16 %v1163
        %v1896 = vunpack.c.l.b16 %v1164
        %v1897 = vunpack.c.h.b16 %v1164
        %v1898 = vunpack.c.l.b16 %v1165
        %v1899 = vunpack.c.h.b16 %v1165
        %v1900 = vunpack.c.l.b16 %v1166
        %v1901 = vunpack.c.h.b16 %v1166
        %v1902 = vunpack.c.l.b16 %v1167
        %v1903 = vunpack.c.h.b16 %v1167
        %v1904 = vunpack.c.l.b16 %v1168
        %v1905 = vunpack.c.h.b16 %v1168
        %v1906 = vunpack.c.l.b16 %v1169
        %v1907 = vunpack.c.h.b16 %v1169
        %v1908 = vunpack.c.l.b16 %v1170
        %v1909 = vunpack.c.h.b16 %v1170
        %v1910 = vunpack.c.l.b16 %v1171
        %v1911 = vunpack.c.h.b16 %v1171
        %v1912 = vunpack.c.l.b16 %v1172
        %v1913 = vunpack.c.h.b16 %v1172
        %v1914 = vunpack.c.l.b16 %v1173
        %v1915 = vunpack.c.h.b16 %v1173
        %v1916 = vunpack.c.l.b16 %v1174
        %v1917 = vunpack.c.h.b16 %v1174
        %v1918 = vunpack.c.l.b16 %v1175
        %v1919 = vunpack.c.h.b16 %v1175
        %v1920 = vunpack.c.l.b16 %v1176
        %v1921 = vunpack.c.h.b16 %v1176
        %v1922 = vunpack.c.l.b16 %v1177
        %v1923 = vunpack.c.h.b16 %v1177
        %v1924 = vunpack.c.l.b16 %v1178
        %v1925 = vunpack.c.h.b16 %v1178
        %v1926 = vunpack.c.l.b16 %v1179
        %v1927 = vunpack.c.h.b16 %v1179
        %v1928 = vunpack.c.l.b16 %v1180
        %v1929 = vunpack.c.h.b16 %v1180
        %v1930 = vunpack.c.l.b16 %v1181
        %v1931 = vunpack.c.h.b16 %v1181
        %v1932 = vunpack.c.l.b16 %v1182
        %v1933 = vunpack.c.h.b16 %v1182
        %v1934 = vunpack.c.l.b16 %v1183
        %v1935 = vunpack.c.h.b16 %v1183
        %v1936 = vunpack.c.l.b16 %v1184
        %v1937 = vunpack.c.h.b16 %v1184
        %v1938 = vunpack.c.l.b16 %v1185
        %v1939 = vunpack.c.h.b16 %v1185
        %v1940 = vunpack.c.l.b16 %v1186
        %v1941 = vunpack.c.h.b16 %v1186
        %v1942 = vunpack.c.l.b16 %v1187
        %v1943 = vunpack.c.h.b16 %v1187
        %v1944 = vunpack.c.l.b16 %v1188
        %v1945 = vunpack.c.h.b16 %v1188
        %v1946 = vunpack.c.l.b16 %v1189
        %v1947 = vunpack.c.h.b16 %v1189
        %v1948 = vunpack.c.l.b16 %v1190
        %v1949 = vunpack.c.h.b16 %v1190
        %v1950 = vunpack.c.l.b16 %v1191
        %v1951 = vunpack.c.h.b16 %v1191
        %v1952 = vunpack.c.l.b16 %v1192
        %v1953 = vunpack.c.h.b16 %v1192
        %v1954 = vunpack.c.l.b16 %v1193
        %v1955 = vunpack.c.h.b16 %v1193
        %v1956 = vunpack.c.l.b16 %v1194
        %v1957 = vunpack.c.h.b16 %v1194
        %v1958 = vunpack.c.l.b16 %v1195
        %v1959 = vunpack.c.h.b16 %v1195
        %v1960 = vunpack.c.l.b16 %v1196
        %v1961 = vunpack.c.h.b16 %v1196
        %v1962 = vunpack.c.l.b16 %v1197
        %v1963 = vunpack.c.h.b16 %v1197
        %v1964 = vunpack.c.l.b16 %v1198
        %v1965 = vunpack.c.h.b16 %v1198
        %v1966 = vunpack.c.l.b16 %v1199
        %v1967 = vunpack.c.h.b16 %v1199
        %v1968 = vunpack.c.l.b16 %v1200
        %v1969 = vunpack.c.h.b16 %v1200
        %v1970 = vunpack.c.l.b16 %v1201
        %v1971 = vunpack.c.h.b16 %v1201
        %v1972 = vunpack.c.l.b16 %v1202
        %v1973 = vunpack.c.h.b16 %v1202
        %v1974 = vunpack.c.l.b16 %v1203
        %v1975 = vunpack.c.h.b16 %v1203
        %v1976 = vunpack.c.l.b16 %v1204
        %v1977 = vunpack.c.h.b16 %v1204
        %v1978 = vunpack.c.l.b16 %v1205
        %v1979 = vunpack.c.h.b16 %v1205
        %v1980 = vunpack.c.l.b16 %v1206
        %v1981 = vunpack.c.h.b16 %v1206
        %v1982 = vunpack.c.l.b16 %v1207
        %v1983 = vunpack.c.h.b16 %v1207
        %v1984 = vunpack.c.l.b16 %v1208
        %v1985 = vunpack.c.h.b16 %v1208
        %v1986 = vunpack.c.l.b16 %v1209
        %v1987 = vunpack.c.h.b16 %v1209
        %v1988 = vunpack.c.l.b16 %v1210
        %v1989 = vunpack.c.h.b16 %v1210
        %v1990 = vpack.c.b16 %v1494, %v1478
        %v1991 = vpack.c.b16 %v1495, %v1479
        %v1992 = vpack.c.b16 %v1496, %v1480
        %v1993 = vpack.c.b16 %v1497, %v1481
        %v1994 = vpack.c.b16 %v1498, %v1482
        %v1995 = vpack.c.b16 %v1499, %v1483
        %v1996 = vpack.c.b16 %v1500, %v1484
        %v1997 = vpack.c.b16 %v1501, %v1485
        %v1998 = vpack.c.b16 %v1502, %v1486
        %v1999 = vpack.c.b16 %v1503, %v1487
        %v2000 = vpack.c.b16 %v1504, %v1488
        %v2001 = vpack.c.b16 %v1505, %v1489
        %v2002 = vpack.c.b16 %v1506, %v1490
        %v2003 = vpack.c.b16 %v1507, %v1491
        %v2004 = vpack.c.b16 %v1508, %v1492
        %v2005 = vpack.c.b16 %v1509, %v1493
        %v2006 = vpack.c.b16 %v1526, %v1510
        %v2007 = vpack.c.b16 %v1527, %v1511
        %v2008 = vpack.c.b16 %v1528, %v1512
        %v2009 = vpack.c.b16 %v1529, %v1513
        %v2010 = vpack.c.b16 %v1530, %v1514
        %v2011 = vpack.c.b16 %v1531, %v1515
        %v2012 = vpack.c.b16 %v1532, %v1516
        %v2013 = vpack.c.b16 %v1533, %v1517
        %v2014 = vpack.c.b16 %v1534, %v1518
        %v2015 = vpack.c.b16 %v1535, %v1519
        %v2016 = vpack.c.b16 %v1536, %v1520
        %v2017 = vpack.c.b16 %v1537, %v1521
        %v2018 = vpack.c.b16 %v1538, %v1522
        %v2019 = vpack.c.b16 %v1539, %v1523
        %v2020 = vpack.c.b16 %v1540, %v1524
        %v2021 = vpack.c.b16 %v1541, %v1525
        %v2022 = vpack.c.b16 %v1558, %v1542
        %v2023 = vpack.c.b16 %v1559, %v1543
        %v2024 = vpack.c.b16 %v1560, %v1544
        %v2025 = vpack.c.b16 %v1561, %v1545
        %v2026 = vpack.c.b16 %v1562, %v1546
        %v2027 = vpack.c.b16 %v1563, %v1547
        %v2028 = vpack.c.b16 %v1564, %v1548
        %v2029 = vpack.c.b16 %v1565, %v1549
        %v2030 = vpack.c.b16 %v1566, %v1550
        %v2031 = vpack.c.b16 %v1567, %v1551
        %v2032 = vpack.c.b16 %v1568, %v1552
        %v2033 = vpack.c.b16 %v1569, %v1553
        %v2034 = vpack.c.b16 %v1570, %v1554
        %v2035 = vpack.c.b16 %v1571, %v1555
        %v2036 = vpack.c.b16 %v1572, %v1556
        %v2037 = vpack.c.b16 %v1573, %v1557
        %v2038 = vpack.c.b16 %v1590, %v1574
        %v2039 = vpack.c.b16 %v1591, %v1575
        %v2040 = vpack.c.b16 %v1592, %v1576
        %v2041 = vpack.c.b16 %v1593, %v1577
        %v2042 = vpack.c.b16 %v1594, %v1578
        %v2043 = vpack.c.b16 %v1595, %v1579
        %v2044 = vpack.c.b16 %v1596, %v1580
        %v2045 = vpack.c.b16 %v1597, %v1581
        %v2046 = vpack.c.b16 %v1598, %v1582
        %v2047 = vpack.c.b16 %v1599, %v1583
        %v2048 = vpack.c.b16 %v1600, %v1584
        %v2049 = vpack.c.b16 %v1601, %v1585
        %v2050 = vpack.c.b16 %v1602, %v1586
        %v2051 = vpack.c.b16 %v1603, %v1587
        %v2052 = vpack.c.b16 %v1604, %v1588
        %v2053 = vpack.c.b16 %v1605, %v1589
        %v2054 = vpack.c.b16 %v1622, %v1606
        %v2055 = vpack.c.b16 %v1623, %v1607
        %v2056 = vpack.c.b16 %v1624, %v1608
        %v2057 = vpack.c.b16 %v1625, %v1609
        %v2058 = vpack.c.b16 %v1626, %v1610
        %v2059 = vpack.c.b16 %v1627, %v1611
        %v2060 = vpack.c.b16 %v1628, %v1612
        %v2061 = vpack.c.b16 %v1629, %v1613
        %v2062 = vpack.c.b16 %v1630, %v1614
        %v2063 = vpack.c.b16 %v1631, %v1615
        %v2064 = vpack.c.b16 %v1632, %v1616
        %v2065 = vpack.c.b16 %v1633, %v1617
        %v2066 = vpack.c.b16 %v1634, %v1618
        %v2067 = vpack.c.b16 %v1635, %v1619
        %v2068 = vpack.c.b16 %v1636, %v1620
        %v2069 = vpack.c.b16 %v1637, %v1621
        %v2070 = vpack.c.b16 %v1654, %v1638
        %v2071 = vpack.c.b16 %v1655, %v1639
        %v2072 = vpack.c.b16 %v1656, %v1640
        %v2073 = vpack.c.b16 %v1657, %v1641
        %v2074 = vpack.c.b16 %v1658, %v1642
        %v2075 = vpack.c.b16 %v1659, %v1643
        %v2076 = vpack.c.b16 %v1660, %v1644
        %v2077 = vpack.c.b16 %v1661, %v1645
        %v2078 = vpack.c.b16 %v1662, %v1646
        %v2079 = vpack.c.b16 %v1663, %v1647
        %v2080 = vpack.c.b16 %v1664, %v1648
        %v2081 = vpack.c.b16 %v1665, %v1649
        %v2082 = vpack.c.b16 %v1666, %v1650
        %v2083 = vpack.c.b16 %v1667, %v1651
        %v2084 = vpack.c.b16 %v1668, %v1652
        %v2085 = vpack.c.b16 %v1669, %v1653
        %v2086 = vpack.c.b16 %v1686, %v1670
        %v2087 = vpack.c.b16 %v1687, %v1671
        %v2088 = vpack.c.b16 %v1688, %v1672
        %v2089 = vpack.c.b16 %v1689, %v1673
        %v2090 = vpack.c.b16 %v1690, %v1674
        %v2091 = vpack.c.b16 %v1691, %v1675
        %v2092 = vpack.c.b16 %v1692, %v1676
        %v2093 = vpack.c.b16 %v1693, %v1677
        %v2094 = vpack.c.b16 %v1694, %v1678
        %v2095 = vpack.c.b16 %v1695, %v1679
        %v2096 = vpack.c.b16 %v1696, %v1680
        %v2097 = vpack.c.b16 %v1697, %v1681
        %v2098 = vpack.c.b16 %v1698, %v1682
        %v2099 = vpack.c.b16 %v1699, %v1683
        %v2100 = vpack.c.b16 %v1700, %v1684
        %v2101 = vpack.c.b16 %v1701, %v1685
        %v2102 = vpack.c.b16 %v1718, %v1702
        %v2103 = vpack.c.b16 %v1719, %v1703
        %v2104 = vpack.c.b16 %v1720, %v1704
        %v2105 = vpack.c.b16 %v1721, %v1705
        %v2106 = vpack.c.b16 %v1722, %v1706
        %v2107 = vpack.c.b16 %v1723, %v1707
        %v2108 = vpack.c.b16 %v1724, %v1708
        %v2109 = vpack.c.b16 %v1725, %v1709
        %v2110 = vpack.c.b16 %v1726, %v1710
        %v2111 = vpack.c.b16 %v1727, %v1711
        %v2112 = vpack.c.b16 %v1728, %v1712
        %v2113 = vpack.c.b16 %v1729, %v1713
        %v2114 = vpack.c.b16 %v1730, %v1714
        %v2115 = vpack.c.b16 %v1731, %v1715
        %v2116 = vpack.c.b16 %v1732, %v1716
        %v2117 = vpack.c.b16 %v1733, %v1717
        %v2118 = vpack.c.b16 %v1750, %v1734
        %v2119 = vpack.c.b16 %v1751, %v1735
        %v2120 = vpack.c.b16 %v1752, %v1736
        %v2121 = vpack.c.b16 %v1753, %v1737
        %v2122 = vpack.c.b16 %v1754, %v1738
        %v2123 = vpack.c.b16 %v1755, %v1739
        %v2124 = vpack.c.b16 %v1756, %v1740
        %v2125 = vpack.c.b16 %v1757, %v1741
        %v2126 = vpack.c.b16 %v1758, %v1742
        %v2127 = vpack.c.b16 %v1759, %v1743
        %v2128 = vpack.c.b16 %v1760, %v1744
        %v2129 = vpack.c.b16 %v1761, %v1745
        %v2130 = vpack.c.b16 %v1762, %v1746
        %v2131 = vpack.c.b16 %v1763, %v1747
        %v2132 = vpack.c.b16 %v1764, %v1748
        %v2133 = vpack.c.b16 %v1765, %v1749
        %v2134 = vpack.c.b16 %v1782, %v1766
        %v2135 = vpack.c.b16 %v1783, %v1767
        %v2136 = vpack.c.b16 %v1784, %v1768
        %v2137 = vpack.c.b16 %v1785, %v1769
        %v2138 = vpack.c.b16 %v1786, %v1770
        %v2139 = vpack.c.b16 %v1787, %v1771
        %v2140 = vpack.c.b16 %v1788, %v1772
        %v2141 = vpack.c.b16 %v1789, %v1773
        %v2142 = vpack.c.b16 %v1790, %v1774
        %v2143 = vpack.c.b16 %v1791, %v1775
        %v2144 = vpack.c.b16 %v1792, %v1776
        %v2145 = vpack.c.b16 %v1793, %v1777
        %v2146 = vpack.c.b16 %v1794, %v1778
        %v2147 = vpack.c.b16 %v1795, %v1779
        %v2148 = vpack.c.b16 %v1796, %v1780
        %v2149 = vpack.c.b16 %v1797, %v1781
        %v2150 = vpack.c.b16 %v1814, %v1798
        %v2151 = vpack.c.b16 %v1815, %v1799
        %v2152 = vpack.c.b16 %v1816, %v1800
        %v2153 = vpack.c.b16 %v1817, %v1801
        %v2154 = vpack.c.b16 %v1818, %v1802
        %v2155 = vpack.c.b16 %v1819, %v1803
        %v2156 = vpack.c.b16 %v1820, %v1804
        %v2157 = vpack.c.b16 %v1821, %v1805
        %v2158 = vpack.c.b16 %v1822, %v1806
        %v2159 = vpack.c.b16 %v1823, %v1807
        %v2160 = vpack.c.b16 %v1824, %v1808
        %v2161 = vpack.c.b16 %v1825, %v1809
        %v2162 = vpack.c.b16 %v1826, %v1810
        %v2163 = vpack.c.b16 %v1827, %v1811
        %v2164 = vpack.c.b16 %v1828, %v1812
        %v2165 = vpack.c.b16 %v1829, %v1813
        %v2166 = vpack.c.b16 %v1846, %v1830
        %v2167 = vpack.c.b16 %v1847, %v1831
        %v2168 = vpack.c.b16 %v1848, %v1832
        %v2169 = vpack.c.b16 %v1849, %v1833
        %v2170 = vpack.c.b16 %v1850, %v1834
        %v2171 = vpack.c.b16 %v1851, %v1835
        %v2172 = vpack.c.b16 %v1852, %v1836
        %v2173 = vpack.c.b16 %v1853, %v1837
        %v2174 = vpack.c.b16 %v1854, %v1838
        %v2175 = vpack.c.b16 %v1855, %v1839
        %v2176 = vpack.c.b16 %v1856, %v1840
        %v2177 = vpack.c.b16 %v1857, %v1841
        %v2178 = vpack.c.b16 %v1858, %v1842
        %v2179 = vpack.c.b16 %v1859, %v1843
        %v2180 = vpack.c.b16 %v1860, %v1844
        %v2181 = vpack.c.b16 %v1861, %v1845
        %v2182 = vpack.c.b16 %v1878, %v1862
        %v2183 = vpack.c.b16 %v1879, %v1863
        %v2184 = vpack.c.b16 %v1880, %v1864
        %v2185 = vpack.c.b16 %v1881, %v1865
        %v2186 = vpack.c.b16 %v1882, %v1866
        %v2187 = vpack.c.b16 %v1883, %v1867
        %v2188 = vpack.c.b16 %v1884, %v1868
        %v2189 = vpack.c.b16 %v1885, %v1869
        %v2190 = vpack.c.b16 %v1886, %v1870
        %v2191 = vpack.c.b16 %v1887, %v1871
        %v2192 = vpack.c.b16 %v1888, %v1872
        %v2193 = vpack.c.b16 %v1889, %v1873
        %v2194 = vpack.c.b16 %v1890, %v1874
        %v2195 = vpack.c.b16 %v1891, %v1875
        %v2196 = vpack.c.b16 %v1892, %v1876
        %v2197 = vpack.c.b16 %v1893, %v1877
        %v2198 = vpack.c.b16 %v1910, %v1894
        %v2199 = vpack.c.b16 %v1911, %v1895
        %v2200 = vpack.c.b16 %v1912, %v1896
        %v2201 = vpack.c.b16 %v1913, %v1897
        %v2202 = vpack.c.b16 %v1914, %v1898
        %v2203 = vpack.c.b16 %v1915, %v1899
        %v2204 = vpack.c.b16 %v1916, %v1900
        %v2205 = vpack.c.b16 %v1917, %v1901
        %v2206 = vpack.c.b16 %v1918, %v1902
        %v2207 = vpack.c.b16 %v1919, %v1903
        %v2208 = vpack.c.b16 %v1920, %v1904
        %v2209 = vpack.c.b16 %v1921, %v1905
        %v2210 = vpack.c.b16 %v1922, %v1906
        %v2211 = vpack.c.b16 %v1923, %v1907
        %v2212 = vpack.c.b16 %v1924, %v1908
        %v2213 = vpack.c.b16 %v1925, %v1909
        %v2214 = vpack.c.b16 %v1942, %v1926
        %v2215 = vpack.c.b16 %v1943, %v1927
        %v2216 = vpack.c.b16 %v1944, %v1928
        %v2217 = vpack.c.b16 %v1945, %v1929
        %v2218 = vpack.c.b16 %v1946, %v1930
        %v2219 = vpack.c.b16 %v1947, %v1931
        %v2220 = vpack.c.b16 %v1948, %v1932
        %v2221 = vpack.c.b16 %v1949, %v1933
        %v2222 = vpack.c.b16 %v1950, %v1934
        %v2223 = vpack.c.b16 %v1951, %v1935
        %v2224 = vpack.c.b16 %v1952, %v1936
        %v2225 = vpack.c.b16 %v1953, %v1937
        %v2226 = vpack.c.b16 %v1954, %v1938
        %v2227 = vpack.c.b16 %v1955, %v1939
        %v2228 = vpack.c.b16 %v1956, %v1940
        %v2229 = vpack.c.b16 %v1957, %v1941
        %v2230 = vpack.c.b16 %v1974, %v1958
        %v2231 = vpack.c.b16 %v1975, %v1959
        %v2232 = vpack.c.b16 %v1976, %v1960
        %v2233 = vpack.c.b16 %v1977, %v1961
        %v2234 = vpack.c.b16 %v1978, %v1962
        %v2235 = vpack.c.b16 %v1979, %v1963
        %v2236 = vpack.c.b16 %v1980, %v1964
        %v2237 = vpack.c.b16 %v1981, %v1965
        %v2238 = vpack.c.b16 %v1982, %v1966
        %v2239 = vpack.c.b16 %v1983, %v1967
        %v2240 = vpack.c.b16 %v1984, %v1968
        %v2241 = vpack.c.b16 %v1985, %v1969
        %v2242 = vpack.c.b16 %v1986, %v1970
        %v2243 = vpack.c.b16 %v1987, %v1971
        %v2244 = vpack.c.b16 %v1988, %v1972
        %v2245 = vpack.c.b16 %v1989, %v1973
        %2502 = vmatprep.subr.bf16.mxu0 %v1991
        %2503 = vmatpush1.bf16.msra.mxu0 %v1990
        %2504 = vmatprep.subr.bf16.mxu0 %v2007
        %2505 = vmatpush1.bf16.msra.mxu0 %v2006
        %2506 = vmatprep.subr.bf16.mxu0 %v2023
        %2507 = vmatpush1.bf16.msra.mxu0 %v2022
        %2508 = vmatprep.subr.bf16.mxu0 %v2039
        %2509 = vmatpush1.bf16.msra.mxu0 %v2038
        %2510 = vmatprep.subr.bf16.mxu0 %v2055
        %2511 = vmatpush1.bf16.msra.mxu0 %v2054
        %2512 = vmatprep.subr.bf16.mxu0 %v2071
        %2513 = vmatpush1.bf16.msra.mxu0 %v2070
        %2514 = vmatprep.subr.bf16.mxu0 %v2087
        %2515 = vmatpush1.bf16.msra.mxu0 %v2086
        %2516 = vmatprep.subr.bf16.mxu0 %v2103
        %2517 = vmatpush1.bf16.msra.mxu0 %v2102
        %2518 = vmatprep.subr.bf16.mxu0 %v2119
        %2519 = vmatpush1.bf16.msra.mxu0 %v2118
        %2520 = vmatprep.subr.bf16.mxu0 %v2135
        %2521 = vmatpush1.bf16.msra.mxu0 %v2134
        %2522 = vmatprep.subr.bf16.mxu0 %v2151
        %2523 = vmatpush1.bf16.msra.mxu0 %v2150
        %2524 = vmatprep.subr.bf16.mxu0 %v2167
        %2525 = vmatpush1.bf16.msra.mxu0 %v2166
        %2526 = vmatprep.subr.bf16.mxu0 %v2183
        %2527 = vmatpush1.bf16.msra.mxu0 %v2182
        %2528 = vmatprep.subr.bf16.mxu0 %v2199
        %2529 = vmatpush1.bf16.msra.mxu0 %v2198
        %2530 = vmatprep.subr.bf16.mxu0 %v2215
        %2531 = vmatpush1.bf16.msra.mxu0 %v2214
        %2532 = vmatprep.subr.bf16.mxu0 %v2231
        %2533 = vmatpush1.bf16.msra.mxu0 %v2230
        %2534 = vmatprep.mubr.bf16.mxu0 %v1219
        %2535 = vmatmul.mubr.bf16.gmra.mrb[0].mxu0 %v1218
        %v2536 = vpop.f32.mrb[0].mxu0
        %v2537 = vadd.f32 0.0, %v2536
        %v2538 = vpop.f32.mrb[0].mxu0
        %v2539 = vadd.f32 0.0, %v2538
        %v2540 = vpop.f32.mrb[0].mxu0
        %v2541 = vpop.f32.mrb[0].mxu0
        %2542 = vdwg.mxu0
        %2543 = vmatprep.subr.bf16.mxu0 %v1993
        %2544 = vmatpush1.bf16.msra.mxu0 %v1992
        %2545 = vmatprep.subr.bf16.mxu0 %v2009
        %2546 = vmatpush1.bf16.msra.mxu0 %v2008
        %2547 = vmatprep.subr.bf16.mxu0 %v2025
        %2548 = vmatpush1.bf16.msra.mxu0 %v2024
        %2549 = vmatprep.subr.bf16.mxu0 %v2041
        %2550 = vmatpush1.bf16.msra.mxu0 %v2040
        %2551 = vmatprep.subr.bf16.mxu0 %v2057
        %2552 = vmatpush1.bf16.msra.mxu0 %v2056
        %2553 = vmatprep.subr.bf16.mxu0 %v2073
        %2554 = vmatpush1.bf16.msra.mxu0 %v2072
        %2555 = vmatprep.subr.bf16.mxu0 %v2089
        %2556 = vmatpush1.bf16.msra.mxu0 %v2088
        %2557 = vmatprep.subr.bf16.mxu0 %v2105
        %2558 = vmatpush1.bf16.msra.mxu0 %v2104
        %2559 = vmatprep.subr.bf16.mxu0 %v2121
        %2560 = vmatpush1.bf16.msra.mxu0 %v2120
        %2561 = vmatprep.subr.bf16.mxu0 %v2137
        %2562 = vmatpush1.bf16.msra.mxu0 %v2136
        %2563 = vmatprep.subr.bf16.mxu0 %v2153
        %2564 = vmatpush1.bf16.msra.mxu0 %v2152
        %2565 = vmatprep.subr.bf16.mxu0 %v2169
        %2566 = vmatpush1.bf16.msra.mxu0 %v2168
        %2567 = vmatprep.subr.bf16.mxu0 %v2185
        %2568 = vmatpush1.bf16.msra.mxu0 %v2184
        %2569 = vmatprep.subr.bf16.mxu0 %v2201
        %2570 = vmatpush1.bf16.msra.mxu0 %v2200
        %2571 = vmatprep.subr.bf16.mxu0 %v2217
        %2572 = vmatpush1.bf16.msra.mxu0 %v2216
        %2573 = vmatprep.subr.bf16.mxu0 %v2233
        %2574 = vmatpush1.bf16.msra.mxu0 %v2232
        %2575 = vmatprep.mubr.bf16.mxu0 %v1219
        %2576 = vmatmul.mubr.bf16.gmra.mrb[0].mxu0 %v1218
        %v2577 = vpop.f32.mrb[0].mxu0
        %v2578 = vadd.f32 0.0, %v2577
        %v2579 = vpop.f32.mrb[0].mxu0
        %v2580 = vadd.f32 0.0, %v2579
        %v2581 = vpop.f32.mrb[0].mxu0
        %v2582 = vpop.f32.mrb[0].mxu0
        %2583 = vdwg.mxu0
        %2584 = vmatprep.subr.bf16.mxu0 %v1995
        %2585 = vmatpush1.bf16.msra.mxu0 %v1994
        %2586 = vmatprep.subr.bf16.mxu0 %v2011
        %2587 = vmatpush1.bf16.msra.mxu0 %v2010
        %2588 = vmatprep.subr.bf16.mxu0 %v2027
        %2589 = vmatpush1.bf16.msra.mxu0 %v2026
        %2590 = vmatprep.subr.bf16.mxu0 %v2043
        %2591 = vmatpush1.bf16.msra.mxu0 %v2042
        %2592 = vmatprep.subr.bf16.mxu0 %v2059
        %2593 = vmatpush1.bf16.msra.mxu0 %v2058
        %2594 = vmatprep.subr.bf16.mxu0 %v2075
        %2595 = vmatpush1.bf16.msra.mxu0 %v2074
        %2596 = vmatprep.subr.bf16.mxu0 %v2091
        %2597 = vmatpush1.bf16.msra.mxu0 %v2090
        %2598 = vmatprep.subr.bf16.mxu0 %v2107
        %2599 = vmatpush1.bf16.msra.mxu0 %v2106
        %2600 = vmatprep.subr.bf16.mxu0 %v2123
        %2601 = vmatpush1.bf16.msra.mxu0 %v2122
        %2602 = vmatprep.subr.bf16.mxu0 %v2139
        %2603 = vmatpush1.bf16.msra.mxu0 %v2138
        %2604 = vmatprep.subr.bf16.mxu0 %v2155
        %2605 = vmatpush1.bf16.msra.mxu0 %v2154
        %2606 = vmatprep.subr.bf16.mxu0 %v2171
        %2607 = vmatpush1.bf16.msra.mxu0 %v2170
        %2608 = vmatprep.subr.bf16.mxu0 %v2187
        %2609 = vmatpush1.bf16.msra.mxu0 %v2186
        %2610 = vmatprep.subr.bf16.mxu0 %v2203
        %2611 = vmatpush1.bf16.msra.mxu0 %v2202
        %2612 = vmatprep.subr.bf16.mxu0 %v2219
        %2613 = vmatpush1.bf16.msra.mxu0 %v2218
        %2614 = vmatprep.subr.bf16.mxu0 %v2235
        %2615 = vmatpush1.bf16.msra.mxu0 %v2234
        %2616 = vmatprep.mubr.bf16.mxu0 %v1219
        %2617 = vmatmul.mubr.bf16.gmra.mrb[0].mxu0 %v1218
        %v2618 = vpop.f32.mrb[0].mxu0
        %v2619 = vadd.f32 0.0, %v2618
        %v2620 = vpop.f32.mrb[0].mxu0
        %v2621 = vadd.f32 0.0, %v2620
        %v2622 = vpop.f32.mrb[0].mxu0
        %v2623 = vpop.f32.mrb[0].mxu0
        %2624 = vdwg.mxu0
        %2625 = vmatprep.subr.bf16.mxu0 %v1997
        %2626 = vmatpush1.bf16.msra.mxu0 %v1996
        %2627 = vmatprep.subr.bf16.mxu0 %v2013
        %2628 = vmatpush1.bf16.msra.mxu0 %v2012
        %2629 = vmatprep.subr.bf16.mxu0 %v2029
        %2630 = vmatpush1.bf16.msra.mxu0 %v2028
        %2631 = vmatprep.subr.bf16.mxu0 %v2045
        %2632 = vmatpush1.bf16.msra.mxu0 %v2044
        %2633 = vmatprep.subr.bf16.mxu0 %v2061
        %2634 = vmatpush1.bf16.msra.mxu0 %v2060
        %2635 = vmatprep.subr.bf16.mxu0 %v2077
        %2636 = vmatpush1.bf16.msra.mxu0 %v2076
        %2637 = vmatprep.subr.bf16.mxu0 %v2093
        %2638 = vmatpush1.bf16.msra.mxu0 %v2092
        %2639 = vmatprep.subr.bf16.mxu0 %v2109
        %2640 = vmatpush1.bf16.msra.mxu0 %v2108
        %2641 = vmatprep.subr.bf16.mxu0 %v2125
        %2642 = vmatpush1.bf16.msra.mxu0 %v2124
        %2643 = vmatprep.subr.bf16.mxu0 %v2141
        %2644 = vmatpush1.bf16.msra.mxu0 %v2140
        %2645 = vmatprep.subr.bf16.mxu0 %v2157
        %2646 = vmatpush1.bf16.msra.mxu0 %v2156
        %2647 = vmatprep.subr.bf16.mxu0 %v2173
        %2648 = vmatpush1.bf16.msra.mxu0 %v2172
        %2649 = vmatprep.subr.bf16.mxu0 %v2189
        %2650 = vmatpush1.bf16.msra.mxu0 %v2188
        %2651 = vmatprep.subr.bf16.mxu0 %v2205
        %2652 = vmatpush1.bf16.msra.mxu0 %v2204
        %2653 = vmatprep.subr.bf16.mxu0 %v2221
        %2654 = vmatpush1.bf16.msra.mxu0 %v2220
        %2655 = vmatprep.subr.bf16.mxu0 %v2237
        %2656 = vmatpush1.bf16.msra.mxu0 %v2236
        %2657 = vmatprep.mubr.bf16.mxu0 %v1219
        %2658 = vmatmul.mubr.bf16.gmra.mrb[0].mxu0 %v1218
        %v2659 = vpop.f32.mrb[0].mxu0
        %v2660 = vadd.f32 0.0, %v2659
        %v2661 = vpop.f32.mrb[0].mxu0
        %v2662 = vadd.f32 0.0, %v2661
        %v2663 = vpop.f32.mrb[0].mxu0
        %v2664 = vpop.f32.mrb[0].mxu0
        %2665 = vdwg.mxu0
        %2666 = vmatprep.subr.bf16.mxu0 %v1999
        %2667 = vmatpush1.bf16.msra.mxu0 %v1998
        %2668 = vmatprep.subr.bf16.mxu0 %v2015
        %2669 = vmatpush1.bf16.msra.mxu0 %v2014
        %2670 = vmatprep.subr.bf16.mxu0 %v2031
        %2671 = vmatpush1.bf16.msra.mxu0 %v2030
        %2672 = vmatprep.subr.bf16.mxu0 %v2047
        %2673 = vmatpush1.bf16.msra.mxu0 %v2046
        %2674 = vmatprep.subr.bf16.mxu0 %v2063
        %2675 = vmatpush1.bf16.msra.mxu0 %v2062
        %2676 = vmatprep.subr.bf16.mxu0 %v2079
        %2677 = vmatpush1.bf16.msra.mxu0 %v2078
        %2678 = vmatprep.subr.bf16.mxu0 %v2095
        %2679 = vmatpush1.bf16.msra.mxu0 %v2094
        %2680 = vmatprep.subr.bf16.mxu0 %v2111
        %2681 = vmatpush1.bf16.msra.mxu0 %v2110
        %2682 = vmatprep.subr.bf16.mxu0 %v2127
        %2683 = vmatpush1.bf16.msra.mxu0 %v2126
        %2684 = vmatprep.subr.bf16.mxu0 %v2143
        %2685 = vmatpush1.bf16.msra.mxu0 %v2142
        %2686 = vmatprep.subr.bf16.mxu0 %v2159
        %2687 = vmatpush1.bf16.msra.mxu0 %v2158
        %2688 = vmatprep.subr.bf16.mxu0 %v2175
        %2689 = vmatpush1.bf16.msra.mxu0 %v2174
        %2690 = vmatprep.subr.bf16.mxu0 %v2191
        %2691 = vmatpush1.bf16.msra.mxu0 %v2190
        %2692 = vmatprep.subr.bf16.mxu0 %v2207
        %2693 = vmatpush1.bf16.msra.mxu0 %v2206
        %2694 = vmatprep.subr.bf16.mxu0 %v2223
        %2695 = vmatpush1.bf16.msra.mxu0 %v2222
        %2696 = vmatprep.subr.bf16.mxu0 %v2239
        %2697 = vmatpush1.bf16.msra.mxu0 %v2238
        %2698 = vmatprep.mubr.bf16.mxu0 %v1219
        %2699 = vmatmul.mubr.bf16.gmra.mrb[0].mxu0 %v1218
        %v2700 = vpop.f32.mrb[0].mxu0
        %v2701 = vadd.f32 0.0, %v2700
        %v2702 = vpop.f32.mrb[0].mxu0
        %v2703 = vadd.f32 0.0, %v2702
        %v2704 = vpop.f32.mrb[0].mxu0
        %v2705 = vpop.f32.mrb[0].mxu0
        %2706 = vdwg.mxu0
        %2707 = vmatprep.subr.bf16.mxu0 %v2001
        %2708 = vmatpush1.bf16.msra.mxu0 %v2000
        %2709 = vmatprep.subr.bf16.mxu0 %v2017
        %2710 = vmatpush1.bf16.msra.mxu0 %v2016
        %2711 = vmatprep.subr.bf16.mxu0 %v2033
        %2712 = vmatpush1.bf16.msra.mxu0 %v2032
        %2713 = vmatprep.subr.bf16.mxu0 %v2049
        %2714 = vmatpush1.bf16.msra.mxu0 %v2048
        %2715 = vmatprep.subr.bf16.mxu0 %v2065
        %2716 = vmatpush1.bf16.msra.mxu0 %v2064
        %2717 = vmatprep.subr.bf16.mxu0 %v2081
        %2718 = vmatpush1.bf16.msra.mxu0 %v2080
        %2719 = vmatprep.subr.bf16.mxu0 %v2097
        %2720 = vmatpush1.bf16.msra.mxu0 %v2096
        %2721 = vmatprep.subr.bf16.mxu0 %v2113
        %2722 = vmatpush1.bf16.msra.mxu0 %v2112
        %2723 = vmatprep.subr.bf16.mxu0 %v2129
        %2724 = vmatpush1.bf16.msra.mxu0 %v2128
        %2725 = vmatprep.subr.bf16.mxu0 %v2145
        %2726 = vmatpush1.bf16.msra.mxu0 %v2144
        %2727 = vmatprep.subr.bf16.mxu0 %v2161
        %2728 = vmatpush1.bf16.msra.mxu0 %v2160
        %2729 = vmatprep.subr.bf16.mxu0 %v2177
        %2730 = vmatpush1.bf16.msra.mxu0 %v2176
        %2731 = vmatprep.subr.bf16.mxu0 %v2193
        %2732 = vmatpush1.bf16.msra.mxu0 %v2192
        %2733 = vmatprep.subr.bf16.mxu0 %v2209
        %2734 = vmatpush1.bf16.msra.mxu0 %v2208
        %2735 = vmatprep.subr.bf16.mxu0 %v2225
        %2736 = vmatpush1.bf16.msra.mxu0 %v2224
        %2737 = vmatprep.subr.bf16.mxu0 %v2241
        %2738 = vmatpush1.bf16.msra.mxu0 %v2240
        %2739 = vmatprep.mubr.bf16.mxu0 %v1219
        %2740 = vmatmul.mubr.bf16.gmra.mrb[0].mxu0 %v1218
        %v2741 = vpop.f32.mrb[0].mxu0
        %v2742 = vadd.f32 0.0, %v2741
        %v2743 = vpop.f32.mrb[0].mxu0
        %v2744 = vadd.f32 0.0, %v2743
        %v2745 = vpop.f32.mrb[0].mxu0
        %v2746 = vpop.f32.mrb[0].mxu0
        %2747 = vdwg.mxu0
        %2748 = vmatprep.subr.bf16.mxu0 %v2003
        %2749 = vmatpush1.bf16.msra.mxu0 %v2002
        %2750 = vmatprep.subr.bf16.mxu0 %v2019
        %2751 = vmatpush1.bf16.msra.mxu0 %v2018
        %2752 = vmatprep.subr.bf16.mxu0 %v2035
        %2753 = vmatpush1.bf16.msra.mxu0 %v2034
        %2754 = vmatprep.subr.bf16.mxu0 %v2051
        %2755 = vmatpush1.bf16.msra.mxu0 %v2050
        %2756 = vmatprep.subr.bf16.mxu0 %v2067
        %2757 = vmatpush1.bf16.msra.mxu0 %v2066
        %2758 = vmatprep.subr.bf16.mxu0 %v2083
        %2759 = vmatpush1.bf16.msra.mxu0 %v2082
        %2760 = vmatprep.subr.bf16.mxu0 %v2099
        %2761 = vmatpush1.bf16.msra.mxu0 %v2098
        %2762 = vmatprep.subr.bf16.mxu0 %v2115
        %2763 = vmatpush1.bf16.msra.mxu0 %v2114
        %2764 = vmatprep.subr.bf16.mxu0 %v2131
        %2765 = vmatpush1.bf16.msra.mxu0 %v2130
        %2766 = vmatprep.subr.bf16.mxu0 %v2147
        %2767 = vmatpush1.bf16.msra.mxu0 %v2146
        %2768 = vmatprep.subr.bf16.mxu0 %v2163
        %2769 = vmatpush1.bf16.msra.mxu0 %v2162
        %2770 = vmatprep.subr.bf16.mxu0 %v2179
        %2771 = vmatpush1.bf16.msra.mxu0 %v2178
        %2772 = vmatprep.subr.bf16.mxu0 %v2195
        %2773 = vmatpush1.bf16.msra.mxu0 %v2194
        %2774 = vmatprep.subr.bf16.mxu0 %v2211
        %2775 = vmatpush1.bf16.msra.mxu0 %v2210
        %2776 = vmatprep.subr.bf16.mxu0 %v2227
        %2777 = vmatpush1.bf16.msra.mxu0 %v2226
        %2778 = vmatprep.subr.bf16.mxu0 %v2243
        %2779 = vmatpush1.bf16.msra.mxu0 %v2242
        %2780 = vmatprep.mubr.bf16.mxu0 %v1219
        %2781 = vmatmul.mubr.bf16.gmra.mrb[0].mxu0 %v1218
        %v2782 = vpop.f32.mrb[0].mxu0
        %v2783 = vadd.f32 0.0, %v2782
        %v2784 = vpop.f32.mrb[0].mxu0
        %v2785 = vadd.f32 0.0, %v2784
        %v2786 = vpop.f32.mrb[0].mxu0
        %v2787 = vpop.f32.mrb[0].mxu0
        %2788 = vdwg.mxu0
        %2789 = vmatprep.subr.bf16.mxu0 %v2005
        %2790 = vmatpush1.bf16.msra.mxu0 %v2004
        %2791 = vmatprep.subr.bf16.mxu0 %v2021
        %2792 = vmatpush1.bf16.msra.mxu0 %v2020
        %2793 = vmatprep.subr.bf16.mxu0 %v2037
        %2794 = vmatpush1.bf16.msra.mxu0 %v2036
        %2795 = vmatprep.subr.bf16.mxu0 %v2053
        %2796 = vmatpush1.bf16.msra.mxu0 %v2052
        %2797 = vmatprep.subr.bf16.mxu0 %v2069
        %2798 = vmatpush1.bf16.msra.mxu0 %v2068
        %2799 = vmatprep.subr.bf16.mxu0 %v2085
        %2800 = vmatpush1.bf16.msra.mxu0 %v2084
        %2801 = vmatprep.subr.bf16.mxu0 %v2101
        %2802 = vmatpush1.bf16.msra.mxu0 %v2100
        %2803 = vmatprep.subr.bf16.mxu0 %v2117
        %2804 = vmatpush1.bf16.msra.mxu0 %v2116
        %2805 = vmatprep.subr.bf16.mxu0 %v2133
        %2806 = vmatpush1.bf16.msra.mxu0 %v2132
        %2807 = vmatprep.subr.bf16.mxu0 %v2149
        %2808 = vmatpush1.bf16.msra.mxu0 %v2148
        %2809 = vmatprep.subr.bf16.mxu0 %v2165
        %2810 = vmatpush1.bf16.msra.mxu0 %v2164
        %2811 = vmatprep.subr.bf16.mxu0 %v2181
        %2812 = vmatpush1.bf16.msra.mxu0 %v2180
        %2813 = vmatprep.subr.bf16.mxu0 %v2197
        %2814 = vmatpush1.bf16.msra.mxu0 %v2196
        %2815 = vmatprep.subr.bf16.mxu0 %v2213
        %2816 = vmatpush1.bf16.msra.mxu0 %v2212
        %2817 = vmatprep.subr.bf16.mxu0 %v2229
        %2818 = vmatpush1.bf16.msra.mxu0 %v2228
        %2819 = vmatprep.subr.bf16.mxu0 %v2245
        %2820 = vmatpush1.bf16.msra.mxu0 %v2244
        %2821 = vmatprep.mubr.bf16.mxu0 %v1219
        %2822 = vmatmul.mubr.bf16.gmra.mrb[0].mxu0 %v1218
        %v2823 = vpop.f32.mrb[0].mxu0
        %v2824 = vadd.f32 0.0, %v2823
        %v2825 = vpop.f32.mrb[0].mxu0
        %v2826 = vadd.f32 0.0, %v2825
        %v2827 = vpop.f32.mrb[0].mxu0
        %v2828 = vpop.f32.mrb[0].mxu0
        %2829 = vdwg.mxu0
        %s2830 = sshra.s32 %s953, 3
        %s2831 = sand.u32 %s953, 7
        %s2832 = smul.u32 %s2830, 2
        %s2833 = smul.addr %s2832, 8
        %s2834 = scalar_lea.vmem [#allocation2], %s2833
        %v2835 = vld [vmem:[%s2834] sm:$0xff]
        %v2836 = vld [vmem:[%s2834 + $0x8] sm:$0xff]
        %v2837 = vld [vmem:[%s2834 + $0x20] sm:$0xff]
        %v2838 = vld [vmem:[%s2834 + $0x28] sm:$0xff]
        %v2839 = vld [vmem:[%s2834 + $0x40] sm:$0xff]
        %v2840 = vld [vmem:[%s2834 + $0x48] sm:$0xff]
        %v2841 = vld [vmem:[%s2834 + $0x60] sm:$0xff]
        %v2842 = vld [vmem:[%s2834 + $0x68] sm:$0xff]
        %v2843 = vld [vmem:[#allocation4] sm:$0xff]
        %v2844 = vld [vmem:[#allocation4 + $0x8] sm:$0xff]
        %v2845 = vld [vmem:[#allocation4 + $0x10] sm:$0xff]
        %v2846 = vld [vmem:[#allocation4 + $0x18] sm:$0xff]
        %v2847 = vlaneseq
        %v2848 = vshrl.u32 %v2847, 7
        %v2849 = vsub.s32 0, %v2848
        %v2850 = vrot.slane %v2835, %v2849
        %v2851 = vlaneseq
        %v2852 = vshrl.u32 %v2851, 7
        %v2853 = vsub.s32 0, %v2852
        %v2854 = vrot.slane %v2836, %v2853
        %v2855 = vlaneseq
        %v2856 = vshrl.u32 %v2855, 7
        %v2857 = vsub.s32 0, %v2856
        %v2858 = vrot.slane %v2837, %v2857
        %v2859 = vlaneseq
        %v2860 = vshrl.u32 %v2859, 7
        %v2861 = vsub.s32 0, %v2860
        %v2862 = vrot.slane %v2838, %v2861
        %v2863 = vlaneseq
        %v2864 = vshrl.u32 %v2863, 7
        %v2865 = vsub.s32 0, %v2864
        %v2866 = vrot.slane %v2839, %v2865
        %v2867 = vlaneseq
        %v2868 = vshrl.u32 %v2867, 7
        %v2869 = vsub.s32 0, %v2868
        %v2870 = vrot.slane %v2840, %v2869
        %v2871 = vlaneseq
        %v2872 = vshrl.u32 %v2871, 7
        %v2873 = vsub.s32 0, %v2872
        %v2874 = vrot.slane %v2841, %v2873
        %v2875 = vlaneseq
        %v2876 = vshrl.u32 %v2875, 7
        %v2877 = vsub.s32 0, %v2876
        %v2878 = vrot.slane %v2842, %v2877
        %v2879 = vmul.f32 %v2850, %v2537
        %v2880 = vmul.f32 %v2854, %v2539
        %v2881 = vmul.f32 %v2858, %v2537
        %v2882 = vmul.f32 %v2862, %v2539
        %v2883 = vmul.f32 %v2866, %v2537
        %v2884 = vmul.f32 %v2870, %v2539
        %v2885 = vmul.f32 %v2874, %v2537
        %v2886 = vmul.f32 %v2878, %v2539
        %v2895 = vcombine.low %v2879, %v2880
        %v2896 = vcombine.low %v2881, %v2882
        %v2897 = vcombine.low %v2883, %v2884
        %v2898 = vcombine.low %v2885, %v2886
        %v2903 = vadd.f32 %v2843, %v2895
        %v2904 = vadd.f32 %v2844, %v2896
        %v2905 = vadd.f32 %v2845, %v2897
        %v2906 = vadd.f32 %v2846, %v2898
        %v2907 = vlaneseq
        %v2908 = vshrl.u32 %v2907, 7
        %v2909 = vsub.s32 1, %v2908
        %v2910 = vrot.slane %v2835, %v2909
        %v2911 = vlaneseq
        %v2912 = vshrl.u32 %v2911, 7
        %v2913 = vsub.s32 1, %v2912
        %v2914 = vrot.slane %v2836, %v2913
        %v2915 = vlaneseq
        %v2916 = vshrl.u32 %v2915, 7
        %v2917 = vsub.s32 1, %v2916
        %v2918 = vrot.slane %v2837, %v2917
        %v2919 = vlaneseq
        %v2920 = vshrl.u32 %v2919, 7
        %v2921 = vsub.s32 1, %v2920
        %v2922 = vrot.slane %v2838, %v2921
        %v2923 = vlaneseq
        %v2924 = vshrl.u32 %v2923, 7
        %v2925 = vsub.s32 1, %v2924
        %v2926 = vrot.slane %v2839, %v2925
        %v2927 = vlaneseq
        %v2928 = vshrl.u32 %v2927, 7
        %v2929 = vsub.s32 1, %v2928
        %v2930 = vrot.slane %v2840, %v2929
        %v2931 = vlaneseq
        %v2932 = vshrl.u32 %v2931, 7
        %v2933 = vsub.s32 1, %v2932
        %v2934 = vrot.slane %v2841, %v2933
        %v2935 = vlaneseq
        %v2936 = vshrl.u32 %v2935, 7
        %v2937 = vsub.s32 1, %v2936
        %v2938 = vrot.slane %v2842, %v2937
        %v2939 = vmul.f32 %v2910, %v2578
        %v2940 = vmul.f32 %v2914, %v2580
        %v2941 = vmul.f32 %v2918, %v2578
        %v2942 = vmul.f32 %v2922, %v2580
        %v2943 = vmul.f32 %v2926, %v2578
        %v2944 = vmul.f32 %v2930, %v2580
        %v2945 = vmul.f32 %v2934, %v2578
        %v2946 = vmul.f32 %v2938, %v2580
        %v2955 = vcombine.low %v2939, %v2940
        %v2956 = vcombine.low %v2941, %v2942
        %v2957 = vcombine.low %v2943, %v2944
        %v2958 = vcombine.low %v2945, %v2946
        %v2963 = vadd.f32 %v2903, %v2955
        %v2964 = vadd.f32 %v2904, %v2956
        %v2965 = vadd.f32 %v2905, %v2957
        %v2966 = vadd.f32 %v2906, %v2958
        %v2967 = vlaneseq
        %v2968 = vshrl.u32 %v2967, 7
        %v2969 = vsub.s32 2, %v2968
        %v2970 = vrot.slane %v2835, %v2969
        %v2971 = vlaneseq
        %v2972 = vshrl.u32 %v2971, 7
        %v2973 = vsub.s32 2, %v2972
        %v2974 = vrot.slane %v2836, %v2973
        %v2975 = vlaneseq
        %v2976 = vshrl.u32 %v2975, 7
        %v2977 = vsub.s32 2, %v2976
        %v2978 = vrot.slane %v2837, %v2977
        %v2979 = vlaneseq
        %v2980 = vshrl.u32 %v2979, 7
        %v2981 = vsub.s32 2, %v2980
        %v2982 = vrot.slane %v2838, %v2981
        %v2983 = vlaneseq
        %v2984 = vshrl.u32 %v2983, 7
        %v2985 = vsub.s32 2, %v2984
        %v2986 = vrot.slane %v2839, %v2985
        %v2987 = vlaneseq
        %v2988 = vshrl.u32 %v2987, 7
        %v2989 = vsub.s32 2, %v2988
        %v2990 = vrot.slane %v2840, %v2989
        %v2991 = vlaneseq
        %v2992 = vshrl.u32 %v2991, 7
        %v2993 = vsub.s32 2, %v2992
        %v2994 = vrot.slane %v2841, %v2993
        %v2995 = vlaneseq
        %v2996 = vshrl.u32 %v2995, 7
        %v2997 = vsub.s32 2, %v2996
        %v2998 = vrot.slane %v2842, %v2997
        %v2999 = vmul.f32 %v2970, %v2619
        %v3000 = vmul.f32 %v2974, %v2621
        %v3001 = vmul.f32 %v2978, %v2619
        %v3002 = vmul.f32 %v2982, %v2621
        %v3003 = vmul.f32 %v2986, %v2619
        %v3004 = vmul.f32 %v2990, %v2621
        %v3005 = vmul.f32 %v2994, %v2619
        %v3006 = vmul.f32 %v2998, %v2621
        %v3015 = vcombine.low %v2999, %v3000
        %v3016 = vcombine.low %v3001, %v3002
        %v3017 = vcombine.low %v3003, %v3004
        %v3018 = vcombine.low %v3005, %v3006
        %v3023 = vadd.f32 %v2963, %v3015
        %v3024 = vadd.f32 %v2964, %v3016
        %v3025 = vadd.f32 %v2965, %v3017
        %v3026 = vadd.f32 %v2966, %v3018
        %v3027 = vlaneseq
        %v3028 = vshrl.u32 %v3027, 7
        %v3029 = vsub.s32 3, %v3028
        %v3030 = vrot.slane %v2835, %v3029
        %v3031 = vlaneseq
        %v3032 = vshrl.u32 %v3031, 7
        %v3033 = vsub.s32 3, %v3032
        %v3034 = vrot.slane %v2836, %v3033
        %v3035 = vlaneseq
        %v3036 = vshrl.u32 %v3035, 7
        %v3037 = vsub.s32 3, %v3036
        %v3038 = vrot.slane %v2837, %v3037
        %v3039 = vlaneseq
        %v3040 = vshrl.u32 %v3039, 7
        %v3041 = vsub.s32 3, %v3040
        %v3042 = vrot.slane %v2838, %v3041
        %v3043 = vlaneseq
        %v3044 = vshrl.u32 %v3043, 7
        %v3045 = vsub.s32 3, %v3044
        %v3046 = vrot.slane %v2839, %v3045
        %v3047 = vlaneseq
        %v3048 = vshrl.u32 %v3047, 7
        %v3049 = vsub.s32 3, %v3048
        %v3050 = vrot.slane %v2840, %v3049
        %v3051 = vlaneseq
        %v3052 = vshrl.u32 %v3051, 7
        %v3053 = vsub.s32 3, %v3052
        %v3054 = vrot.slane %v2841, %v3053
        %v3055 = vlaneseq
        %v3056 = vshrl.u32 %v3055, 7
        %v3057 = vsub.s32 3, %v3056
        %v3058 = vrot.slane %v2842, %v3057
        %v3059 = vmul.f32 %v3030, %v2660
        %v3060 = vmul.f32 %v3034, %v2662
        %v3061 = vmul.f32 %v3038, %v2660
        %v3062 = vmul.f32 %v3042, %v2662
        %v3063 = vmul.f32 %v3046, %v2660
        %v3064 = vmul.f32 %v3050, %v2662
        %v3065 = vmul.f32 %v3054, %v2660
        %v3066 = vmul.f32 %v3058, %v2662
        %v3075 = vcombine.low %v3059, %v3060
        %v3076 = vcombine.low %v3061, %v3062
        %v3077 = vcombine.low %v3063, %v3064
        %v3078 = vcombine.low %v3065, %v3066
        %v3083 = vadd.f32 %v3023, %v3075
        %v3084 = vadd.f32 %v3024, %v3076
        %v3085 = vadd.f32 %v3025, %v3077
        %v3086 = vadd.f32 %v3026, %v3078
        %v3087 = vlaneseq
        %v3088 = vshrl.u32 %v3087, 7
        %v3089 = vsub.s32 4, %v3088
        %v3090 = vrot.slane %v2835, %v3089
        %v3091 = vlaneseq
        %v3092 = vshrl.u32 %v3091, 7
        %v3093 = vsub.s32 4, %v3092
        %v3094 = vrot.slane %v2836, %v3093
        %v3095 = vlaneseq
        %v3096 = vshrl.u32 %v3095, 7
        %v3097 = vsub.s32 4, %v3096
        %v3098 = vrot.slane %v2837, %v3097
        %v3099 = vlaneseq
        %v3100 = vshrl.u32 %v3099, 7
        %v3101 = vsub.s32 4, %v3100
        %v3102 = vrot.slane %v2838, %v3101
        %v3103 = vlaneseq
        %v3104 = vshrl.u32 %v3103, 7
        %v3105 = vsub.s32 4, %v3104
        %v3106 = vrot.slane %v2839, %v3105
        %v3107 = vlaneseq
        %v3108 = vshrl.u32 %v3107, 7
        %v3109 = vsub.s32 4, %v3108
        %v3110 = vrot.slane %v2840, %v3109
        %v3111 = vlaneseq
        %v3112 = vshrl.u32 %v3111, 7
        %v3113 = vsub.s32 4, %v3112
        %v3114 = vrot.slane %v2841, %v3113
        %v3115 = vlaneseq
        %v3116 = vshrl.u32 %v3115, 7
        %v3117 = vsub.s32 4, %v3116
        %v3118 = vrot.slane %v2842, %v3117
        %v3119 = vmul.f32 %v3090, %v2701
        %v3120 = vmul.f32 %v3094, %v2703
        %v3121 = vmul.f32 %v3098, %v2701
        %v3122 = vmul.f32 %v3102, %v2703
        %v3123 = vmul.f32 %v3106, %v2701
        %v3124 = vmul.f32 %v3110, %v2703
        %v3125 = vmul.f32 %v3114, %v2701
        %v3126 = vmul.f32 %v3118, %v2703
        %v3135 = vcombine.low %v3119, %v3120
        %v3136 = vcombine.low %v3121, %v3122
        %v3137 = vcombine.low %v3123, %v3124
        %v3138 = vcombine.low %v3125, %v3126
        %v3143 = vadd.f32 %v3083, %v3135
        %v3144 = vadd.f32 %v3084, %v3136
        %v3145 = vadd.f32 %v3085, %v3137
        %v3146 = vadd.f32 %v3086, %v3138
        %v3147 = vlaneseq
        %v3148 = vshrl.u32 %v3147, 7
        %v3149 = vsub.s32 5, %v3148
        %v3150 = vrot.slane %v2835, %v3149
        %v3151 = vlaneseq
        %v3152 = vshrl.u32 %v3151, 7
        %v3153 = vsub.s32 5, %v3152
        %v3154 = vrot.slane %v2836, %v3153
        %v3155 = vlaneseq
        %v3156 = vshrl.u32 %v3155, 7
        %v3157 = vsub.s32 5, %v3156
        %v3158 = vrot.slane %v2837, %v3157
        %v3159 = vlaneseq
        %v3160 = vshrl.u32 %v3159, 7
        %v3161 = vsub.s32 5, %v3160
        %v3162 = vrot.slane %v2838, %v3161
        %v3163 = vlaneseq
        %v3164 = vshrl.u32 %v3163, 7
        %v3165 = vsub.s32 5, %v3164
        %v3166 = vrot.slane %v2839, %v3165
        %v3167 = vlaneseq
        %v3168 = vshrl.u32 %v3167, 7
        %v3169 = vsub.s32 5, %v3168
        %v3170 = vrot.slane %v2840, %v3169
        %v3171 = vlaneseq
        %v3172 = vshrl.u32 %v3171, 7
        %v3173 = vsub.s32 5, %v3172
        %v3174 = vrot.slane %v2841, %v3173
        %v3175 = vlaneseq
        %v3176 = vshrl.u32 %v3175, 7
        %v3177 = vsub.s32 5, %v3176
        %v3178 = vrot.slane %v2842, %v3177
        %v3179 = vmul.f32 %v3150, %v2742
        %v3180 = vmul.f32 %v3154, %v2744
        %v3181 = vmul.f32 %v3158, %v2742
        %v3182 = vmul.f32 %v3162, %v2744
        %v3183 = vmul.f32 %v3166, %v2742
        %v3184 = vmul.f32 %v3170, %v2744
        %v3185 = vmul.f32 %v3174, %v2742
        %v3186 = vmul.f32 %v3178, %v2744
        %v3195 = vcombine.low %v3179, %v3180
        %v3196 = vcombine.low %v3181, %v3182
        %v3197 = vcombine.low %v3183, %v3184
        %v3198 = vcombine.low %v3185, %v3186
        %v3203 = vadd.f32 %v3143, %v3195
        %v3204 = vadd.f32 %v3144, %v3196
        %v3205 = vadd.f32 %v3145, %v3197
        %v3206 = vadd.f32 %v3146, %v3198
        %v3207 = vlaneseq
        %v3208 = vshrl.u32 %v3207, 7
        %v3209 = vsub.s32 6, %v3208
        %v3210 = vrot.slane %v2835, %v3209
        %v3211 = vlaneseq
        %v3212 = vshrl.u32 %v3211, 7
        %v3213 = vsub.s32 6, %v3212
        %v3214 = vrot.slane %v2836, %v3213
        %v3215 = vlaneseq
        %v3216 = vshrl.u32 %v3215, 7
        %v3217 = vsub.s32 6, %v3216
        %v3218 = vrot.slane %v2837, %v3217
        %v3219 = vlaneseq
        %v3220 = vshrl.u32 %v3219, 7
        %v3221 = vsub.s32 6, %v3220
        %v3222 = vrot.slane %v2838, %v3221
        %v3223 = vlaneseq
        %v3224 = vshrl.u32 %v3223, 7
        %v3225 = vsub.s32 6, %v3224
        %v3226 = vrot.slane %v2839, %v3225
        %v3227 = vlaneseq
        %v3228 = vshrl.u32 %v3227, 7
        %v3229 = vsub.s32 6, %v3228
        %v3230 = vrot.slane %v2840, %v3229
        %v3231 = vlaneseq
        %v3232 = vshrl.u32 %v3231, 7
        %v3233 = vsub.s32 6, %v3232
        %v3234 = vrot.slane %v2841, %v3233
        %v3235 = vlaneseq
        %v3236 = vshrl.u32 %v3235, 7
        %v3237 = vsub.s32 6, %v3236
        %v3238 = vrot.slane %v2842, %v3237
        %v3239 = vmul.f32 %v3210, %v2783
        %v3240 = vmul.f32 %v3214, %v2785
        %v3241 = vmul.f32 %v3218, %v2783
        %v3242 = vmul.f32 %v3222, %v2785
        %v3243 = vmul.f32 %v3226, %v2783
        %v3244 = vmul.f32 %v3230, %v2785
        %v3245 = vmul.f32 %v3234, %v2783
        %v3246 = vmul.f32 %v3238, %v2785
        %v3255 = vcombine.low %v3239, %v3240
        %v3256 = vcombine.low %v3241, %v3242
        %v3257 = vcombine.low %v3243, %v3244
        %v3258 = vcombine.low %v3245, %v3246
        %v3263 = vadd.f32 %v3203, %v3255
        %v3264 = vadd.f32 %v3204, %v3256
        %v3265 = vadd.f32 %v3205, %v3257
        %v3266 = vadd.f32 %v3206, %v3258
        %v3267 = vlaneseq
        %v3268 = vshrl.u32 %v3267, 7
        %v3269 = vsub.s32 7, %v3268
        %v3270 = vrot.slane %v2835, %v3269
        %v3271 = vlaneseq
        %v3272 = vshrl.u32 %v3271, 7
        %v3273 = vsub.s32 7, %v3272
        %v3274 = vrot.slane %v2836, %v3273
        %v3275 = vlaneseq
        %v3276 = vshrl.u32 %v3275, 7
        %v3277 = vsub.s32 7, %v3276
        %v3278 = vrot.slane %v2837, %v3277
        %v3279 = vlaneseq
        %v3280 = vshrl.u32 %v3279, 7
        %v3281 = vsub.s32 7, %v3280
        %v3282 = vrot.slane %v2838, %v3281
        %v3283 = vlaneseq
        %v3284 = vshrl.u32 %v3283, 7
        %v3285 = vsub.s32 7, %v3284
        %v3286 = vrot.slane %v2839, %v3285
        %v3287 = vlaneseq
        %v3288 = vshrl.u32 %v3287, 7
        %v3289 = vsub.s32 7, %v3288
        %v3290 = vrot.slane %v2840, %v3289
        %v3291 = vlaneseq
        %v3292 = vshrl.u32 %v3291, 7
        %v3293 = vsub.s32 7, %v3292
        %v3294 = vrot.slane %v2841, %v3293
        %v3295 = vlaneseq
        %v3296 = vshrl.u32 %v3295, 7
        %v3297 = vsub.s32 7, %v3296
        %v3298 = vrot.slane %v2842, %v3297
        %v3299 = vmul.f32 %v3270, %v2824
        %v3300 = vmul.f32 %v3274, %v2826
        %v3301 = vmul.f32 %v3278, %v2824
        %v3302 = vmul.f32 %v3282, %v2826
        %v3303 = vmul.f32 %v3286, %v2824
        %v3304 = vmul.f32 %v3290, %v2826
        %v3305 = vmul.f32 %v3294, %v2824
        %v3306 = vmul.f32 %v3298, %v2826
        %v3315 = vcombine.low %v3299, %v3300
        %v3316 = vcombine.low %v3301, %v3302
        %v3317 = vcombine.low %v3303, %v3304
        %v3318 = vcombine.low %v3305, %v3306
        %v3323 = vadd.f32 %v3263, %v3315
        %v3324 = vadd.f32 %v3264, %v3316
        %v3325 = vadd.f32 %v3265, %v3317
        %v3326 = vadd.f32 %v3266, %v3318
        %3327 = vst [vmem:[#allocation4] sm:$0xff] %v3323
        %3328 = vst [vmem:[#allocation4 + $0x8] sm:$0xff] %v3324
        %3329 = vst [vmem:[#allocation4 + $0x10] sm:$0xff] %v3325
        %3330 = vst [vmem:[#allocation4 + $0x18] sm:$0xff] %v3326
        %p3331 = scmp.eq.s32.totalorder %s29, 1
        // Predicated region
        $region49: #{tpu_custom_call.1} parent=35 // pred_check
          %p3332 = pneg %p3331
        $region50: #{tpu_custom_call.1} parent=35 // pred_check_branch
          %3334 = sbr.rel (%p3332) target = $region52
        $region51: #{tpu_custom_call.1} parent=35 // pred_region
          %v3335 = vld [vmem:[#allocation4] sm:$0xff]
          %v3336 = vld [vmem:[#allocation4 + $0x8] sm:$0xff]
          %v3337 = vld [vmem:[#allocation4 + $0x10] sm:$0xff]
          %v3338 = vld [vmem:[#allocation4 + $0x18] sm:$0xff]
          %v3343 = vcombine.low %v3335, %v3336
          %v3344 = vcombine.high %v3335, %v3336
          %v3345 = vcombine.low %v3337, %v3338
          %v3346 = vcombine.high %v3337, %v3338
          %3351 = vst [vmem:[%s265] sm:$0xff] %v3343
          %3352 = vst [vmem:[%s265 + $0x8] sm:$0xff] %v3344
          %3353 = vst [vmem:[%s265 + $0x10] sm:$0xff] %v3345
          %3354 = vst [vmem:[%s265 + $0x18] sm:$0xff] %v3346
        $region52: #{tpu_custom_call.1} parent=35 // pred_fallthru
          _
        %s3355 = sand.u32 %s138, 1
        %s3356 = scalar_lea.sflag [#allocation7], %s3355
        %s3357 = sand.u32 %s138, 1
        %s3358 = smul.addr %s3357, 32
        %s3359 = scalar_lea.vmem [#allocation10], %s3358
        // Predicated region
        $region53: #{tpu_custom_call.1} parent=35 // pred_check
          %p3360 = pneg %p148
        $region54: #{tpu_custom_call.1} parent=35 // pred_check_branch
          %3362 = sbr.rel (%p3360) target = $region56
        $region55: #{tpu_custom_call.1} parent=35 // pred_region
          %s3364 = ssub.s32 512, 512
          %3365 = vsyncadd %s3356, %s3364
          %s3366 = smul.addr %s28, 4
          %s3367 = smul.addr %s3366, 128
          %s3368 = scalar_lea.hbm %s4, %s3367
          %s3369 = sshll.u32 %s3359, 4
          %s3370 = int_to_ptr.vmem [resolvable:$true] %s3369
          %3375 = dma.vmem_to_hbm [thread:$0]  %s3370, 512, %s3368, %s3356, 256, 256, 16
        $region56: #{tpu_custom_call.1} parent=35 // pred_fallthru
          _
      $region36: #{tpu_custom_call.1} parent=5 // pred_fallthru
        _
      %p3376 = scmp.le.s32.totalorder 2, %s19
      // Predicated region
      $region57: #{tpu_custom_call.1} parent=5 // pred_check
        %p3377 = pneg %p3376
      $region58: #{tpu_custom_call.1} parent=5 // pred_check_branch
        %3379 = sbr.rel (%p3377) target = $region60
      $region59: #{tpu_custom_call.1} parent=5 // pred_region
        %s3380 = ssub.s32 %s19, 2
        // Predicated region
        $region61: #{tpu_custom_call.1} parent=59 // pred_check
          %p3381 = pneg %p154
        $region62: #{tpu_custom_call.1} parent=59 // pred_check_branch
          %3383 = sbr.rel (%p3381) target = $region64
        $region63: #{tpu_custom_call.1} parent=59 // pred_region
          %s3384 = sand.u32 %s139, 1
          %s3385 = scalar_lea.sflag [#allocation7], %s3384
          %s3386 = sand.u32 %s139, 1
          %s3387 = smul.addr %s3386, 32
          %s3388 = scalar_lea.vmem [#allocation10], %s3387
          %3389 = dma.done %s3385, 512
        $region64: #{tpu_custom_call.1} parent=59 // pred_fallthru
          _
      $region60: #{tpu_custom_call.1} parent=5 // pred_fallthru
        _
    $region6: #{tpu_custom_call.1} parent=1 // loop_footer
      %s23 = sadd.s32 1, %s19
    $region7: #{tpu_custom_call.1} parent=1 // loop_footer_branch
      %18 = sbr.rel target = $region3
    $region8: #{tpu_custom_call.1} parent=1 // loop_exit
      _
    %3390 = vsyncpa [#allocation6], 1
    %s3391 = scalar_lea.sflag [#allocation6], 1
    %3392 = vsyncpa %s3391, 1
    %3393 = vsyncpa [#allocation9], 1
    %s3394 = scalar_lea.sflag [#allocation9], 1
    %3395 = vsyncpa %s3394, 1
    %3396 = vsyncpa [#allocation7], 1
    %s3397 = scalar_lea.sflag [#allocation7], 1
    %3398 = vsyncpa %s3397, 1

</llo_original>
